<compile_context>
chip_gen: v6e
topology: v6e:2x2x1
jax: 0.10.0
libtpu: 0.0.40
codegen_flags: <defaults>
</compile_context>

<pallas_src>
import numpy as np
import jax
import jax.numpy as jnp
from jax.experimental import pallas as pl
from jax.experimental.pallas import tpu as pltpu

CLAMP = 2.0  # GLOWCouplingBlock clamp used by INN


# ---------------------------------------------------------------------------
# In-kernel math helpers (VPU / EUP safe)
# ---------------------------------------------------------------------------
def _atan_f32(x):
    """float32 arctan: Cephes-style range reduction + odd polynomial.

    Uses only mul/add/div/select/abs so it is guaranteed to lower in Mosaic;
    accurate to a few float32 ulps.
    """
    a = jnp.abs(x)
    tan3pio8 = 2.414213562373095
    tanpio8 = 0.4142135623730951
    # reduced argument (unselected branches may produce inf; discarded by where)
    z = jnp.where(a > tan3pio8, -1.0 / a,
                  jnp.where(a > tanpio8, (a - 1.0) / (a + 1.0), a))
    y0 = jnp.where(a > tan3pio8, jnp.float32(np.pi / 2),
                   jnp.where(a > tanpio8, jnp.float32(np.pi / 4), jnp.float32(0.0)))
    zz = z * z
    p = ((8.05374449538e-2 * zz - 1.38776856032e-1) * zz
         + 1.99777106478e-1) * zz - 3.33329491539e-1
    r = y0 + z + z * zz * p
    return jnp.where(x < 0, -r, r)


def _soft_exp(s):
    # e(s) = exp(clamp * 0.636 * atan(s / clamp))  -- exp lands on the EUP slot.
    return jnp.exp(CLAMP * 0.636 * _atan_f32(s * (1.0 / CLAMP)))


# ---------------------------------------------------------------------------
# Fused Pallas kernel: full INN forward on a (ndim, batch_tile) slab
# ---------------------------------------------------------------------------
def inn_fused_kernel(x_ref, w1_ref, b1_ref, w2_ref, b2_ref, sel_ref, pfin_ref, o_ref):
    n_blocks = w1_ref.shape[0]
    half = w1_ref.shape[3]

    z = x_ref[...]                                    # (ndim, bt), batch on lanes
    for k in range(n_blocks):                         # static unroll over 4 blocks
        # Fold the previous PermuteRandom into this block's input via a tiny
        # constant matmul (identity for block 0) -- MXU, no cross-lane gather.
        xk = jnp.dot(sel_ref[k], z, preferred_element_type=jnp.float32)
        x1, x2 = xk[:half, :], xk[half:, :]

        # subnet s2(x2): Linear -> ReLU -> Linear      (r2 = [s2 | t2])
        h = jnp.maximum(
            jnp.dot(w1_ref[k, 0], x2, preferred_element_type=jnp.float32) + b1_ref[k, 0],
            0.0)
        r2 = jnp.dot(w2_ref[k, 0], h, preferred_element_type=jnp.float32) + b2_ref[k, 0]
        y1 = _soft_exp(r2[:half, :]) * x1 + r2[half:, :]

        # subnet s1(y1): Linear -> ReLU -> Linear      (r1 = [s1 | t1])
        h = jnp.maximum(
            jnp.dot(w1_ref[k, 1], y1, preferred_element_type=jnp.float32) + b1_ref[k, 1],
            0.0)
        r1 = jnp.dot(w2_ref[k, 1], h, preferred_element_type=jnp.float32) + b2_ref[k, 1]
        y2 = _soft_exp(r1[:half, :]) * x2 + r1[half:, :]

        z = jnp.concatenate([y1, y2], axis=0)          # (ndim, bt)

    # Final PermuteRandom (seed = n_blocks-1)
    o_ref[...] = jnp.dot(pfin_ref[...], z, preferred_element_type=jnp.float32).astype(o_ref.dtype)


def inn_forward_pallas(x, packed, *, batch_tile=128):
    """x: (B, ndim_total) f32  ->  (B, ndim_total) f32 (full INN forward)."""
    w1, b1, w2, b2, sel, pfin = packed
    B, ndim = x.shape

    # batch rides the lane axis; pad to a multiple of batch_tile (>=128 lanes)
    Bp = pl.cdiv(B, batch_tile) * batch_tile
    xT = x.T
    if Bp != B:
        xT = jnp.pad(xT, ((0, 0), (0, Bp - B)))

    grid = (Bp // batch_tile,)
    outT = pl.pallas_call(
        inn_fused_kernel,
        out_shape=jax.ShapeDtypeStruct((ndim, Bp), x.dtype),
        grid=grid,
        in_specs=[
            pl.BlockSpec((ndim, batch_tile), lambda i: (0, i)),      # activations (batch tiled on lanes)
            pl.BlockSpec(w1.shape, lambda i: (0, 0, 0, 0)),          # weights: constant index_map
            pl.BlockSpec(b1.shape, lambda i: (0, 0, 0, 0)),          #  -> single resident copy
            pl.BlockSpec(w2.shape, lambda i: (0, 0, 0, 0)),
            pl.BlockSpec(b2.shape, lambda i: (0, 0, 0, 0)),
            pl.BlockSpec(sel.shape, lambda i: (0, 0, 0)),            # permutation selectors
            pl.BlockSpec(pfin.shape, lambda i: (0, 0)),              # final permutation
        ],
        out_specs=pl.BlockSpec((ndim, batch_tile), lambda i: (0, i)),
        compiler_params=pltpu.CompilerParams(dimension_semantics=("parallel",)),
    )(xT, w1, b1, w2, b2, sel, pfin)
    return outT[:, :B].T


# ---------------------------------------------------------------------------
# Parameter / permutation setup (deterministic, in-script)
# ---------------------------------------------------------------------------
def _init_subnet(key, c_in, c_out, hidden):
    k1, k2, k3, k4 = jax.random.split(key, 4)
    bound1 = 1.0 / np.sqrt(c_in)
    bound2 = 1.0 / np.sqrt(hidden)
    w1 = jax.random.uniform(k1, (hidden, c_in), jnp.float32, -bound1, bound1)   # PyTorch (out, in)
    b1 = jax.random.uniform(k2, (hidden,), jnp.float32, -bound1, bound1)
    w2 = jax.random.uniform(k3, (c_out, hidden), jnp.float32, -bound2, bound2)
    b2 = jax.random.uniform(k4, (c_out,), jnp.float32, -bound2, bound2)
    return (w1, b1, w2, b2)


def init_inn(key, ndim_total, hidden_dim, n_blocks=4):
    assert ndim_total % 2 == 0
    half = ndim_total // 2
    params = []
    for _ in range(n_blocks):
        key, ks1, ks2 = jax.random.split(key, 3)
        params.append({
            # FrEIA GLOWCouplingBlock: s1: (len1 -> 2*len2), s2: (len2 -> 2*len1)
            "s1": _init_subnet(ks1, half, 2 * half, hidden_dim),
            "s2": _init_subnet(ks2, half, 2 * half, hidden_dim),
        })
    # PermuteRandom(seed=k): np.random.seed(k); np.random.permutation(n)
    perms = [np.random.RandomState(k).permutation(ndim_total) for k in range(n_blocks)]
    return params, perms


def pack_params(params, perms, ndim_total):
    """Pack per-block weights and fold permutations into constant selector matrices."""
    n_blocks = len(params)

    def perm_matrix(perm):
        m = np.zeros((ndim_total, ndim_total), np.float32)
        m[np.arange(ndim_total), perm] = 1.0       # (P @ z)[i] = z[perm[i]]
        return m

    # index [k, 0] = subnet s2, [k, 1] = subnet s1
    w1 = jnp.stack([jnp.stack([blk["s2"][0], blk["s1"][0]]) for blk in params])            # (nb,2,hid,half)
    b1 = jnp.stack([jnp.stack([blk["s2"][1], blk["s1"][1]]) for blk in params])[..., None]  # (nb,2,hid,1)
    w2 = jnp.stack([jnp.stack([blk["s2"][2], blk["s1"][2]]) for blk in params])            # (nb,2,ndim,hid)
    b2 = jnp.stack([jnp.stack([blk["s2"][3], blk["s1"][3]]) for blk in params])[..., None]  # (nb,2,ndim,1)

    # sel[k]: permutation preceding block k (identity for block 0); pfin: last permutation.
    sels = [np.eye(ndim_total, dtype=np.float32)] + [perm_matrix(perms[k]) for k in range(n_blocks - 1)]
    sel = jnp.asarray(np.stack(sels))                       # (nb, ndim, ndim)
    pfin = jnp.asarray(perm_matrix(perms[n_blocks - 1]))    # (ndim, ndim)
    return (w1, b1, w2, b2, sel, pfin)


# ---------------------------------------------------------------------------
# Pure-JAX reference (batch-first layout, exact arctan) for a numerical check
# ---------------------------------------------------------------------------
def _subnet_ref(x, w1, b1, w2, b2):
    h = jnp.maximum(x @ w1.T + b1, 0.0)
    return h @ w2.T + b2


def inn_forward_ref(x, params, perms):
    half = x.shape[1] // 2
    for k, blk in enumerate(params):
        x1, x2 = x[:, :half], x[:, half:]
        r2 = _subnet_ref(x2, *blk["s2"])
        y1 = jnp.exp(CLAMP * 0.636 * jnp.arctan(r2[:, :half] / CLAMP)) * x1 + r2[:, half:]
        r1 = _subnet_ref(y1, *blk["s1"])
        y2 = jnp.exp(CLAMP * 0.636 * jnp.arctan(r1[:, :half] / CLAMP)) * x2 + r1[:, half:]
        x = jnp.concatenate([y1, y2], axis=1)[:, jnp.asarray(perms[k])]
    return x


# ---------------------------------------------------------------------------
if __name__ == "__main__":
    NDIM_TOTAL, DIM_X, DIM_Y, DIM_Z, HIDDEN = 16, 8, 4, 4, 32
    BATCH = 128   # batch rides the 128-wide lane axis inside the fused kernel

    key = jax.random.PRNGKey(0)
    pkey, xkey = jax.random.split(key)
    params, perms = init_inn(pkey, NDIM_TOTAL, HIDDEN, n_blocks=4)
    packed = pack_params(params, perms, NDIM_TOTAL)
    x = jax.random.normal(xkey, (BATCH, NDIM_TOTAL), jnp.float32)

    fwd = jax.jit(lambda xx: inn_forward_pallas(xx, packed))
    out = jax.block_until_ready(fwd(x))

    ref = inn_forward_ref(x, params, perms)
    assert out.shape == (BATCH, NDIM_TOTAL) and out.dtype == jnp.float32
    np.testing.assert_allclose(np.asarray(out), np.asarray(ref), rtol=2e-3, atol=2e-3)

    print("KERNEL_OK")
</pallas_src>

<mosaic_0001>
module attributes {stable_mosaic.version = 11 : i64} {
  func.func @inn_fused_kernel(%arg0: i32, %arg1: memref<16x128xf32, #tpu.memory_space<vmem>>, %arg2: memref<4x2x32x8xf32, #tpu.memory_space<vmem>>, %arg3: memref<4x2x32x1xf32, #tpu.memory_space<vmem>>, %arg4: memref<4x2x16x32xf32, #tpu.memory_space<vmem>>, %arg5: memref<4x2x16x1xf32, #tpu.memory_space<vmem>>, %arg6: memref<4x16x16xf32, #tpu.memory_space<vmem>>, %arg7: memref<16x16xf32, #tpu.memory_space<vmem>>, %arg8: memref<16x128xf32, #tpu.memory_space<vmem>>) attributes {dimension_semantics = [#tpu.dimension_semantics<parallel>], iteration_bounds = array<i64: 1>, scalar_prefetch = 0 : i64, scratch_operands = 0 : i64, tpu.core_type = #tpu.core_type<tc>, window_params = [{transform_indices = @transform_0, window_bounds = array<i64: 16, 128>}, {pipeline_mode = #tpu.pipeline_mode<synchronous>, transform_indices = @transform_1, window_bounds = array<i64: 4, 2, 32, 8>}, {pipeline_mode = #tpu.pipeline_mode<synchronous>, transform_indices = @transform_2, window_bounds = array<i64: 4, 2, 32, 1>}, {pipeline_mode = #tpu.pipeline_mode<synchronous>, transform_indices = @transform_3, window_bounds = array<i64: 4, 2, 16, 32>}, {pipeline_mode = #tpu.pipeline_mode<synchronous>, transform_indices = @transform_4, window_bounds = array<i64: 4, 2, 16, 1>}, {pipeline_mode = #tpu.pipeline_mode<synchronous>, transform_indices = @transform_5, window_bounds = array<i64: 4, 16, 16>}, {pipeline_mode = #tpu.pipeline_mode<synchronous>, transform_indices = @transform_6, window_bounds = array<i64: 16, 16>}, {transform_indices = @transform_7, window_bounds = array<i64: 16, 128>}]} {
    %c0 = arith.constant 0 : index
    %c0_0 = arith.constant 0 : index
    %0 = vector.load %arg1[%c0, %c0_0] : memref<16x128xf32, #tpu.memory_space<vmem>>, vector<16x128xf32>
    %c0_1 = arith.constant 0 : index
    %c0_2 = arith.constant 0 : index
    %c0_3 = arith.constant 0 : index
    %1 = vector.load %arg6[%c0_1, %c0_2, %c0_3] : memref<4x16x16xf32, #tpu.memory_space<vmem>>, vector<1x16x16xf32>
    %2 = vector.shape_cast %1 : vector<1x16x16xf32> to vector<16x16xf32>
    %cst = arith.constant dense<0.000000e+00> : vector<16x128xf32>
    %3 = tpu.matmul %2, %0, %cst {dimension_numbers = #tpu.dot_dimension_numbers<[1], [0], [0], [1], [0, 0, 1, 1], [], []>} : vector<16x16xf32>, vector<16x128xf32>, vector<16x128xf32> -> vector<16x128xf32>
    %4 = vector.extract_strided_slice %3 {offsets = [0, 0], sizes = [8, 128], strides = [1, 1]} : vector<16x128xf32> to vector<8x128xf32>
    %5 = vector.extract_strided_slice %3 {offsets = [8, 0], sizes = [8, 128], strides = [1, 1]} : vector<16x128xf32> to vector<8x128xf32>
    %c0_4 = arith.constant 0 : index
    %c0_5 = arith.constant 0 : index
    %c0_6 = arith.constant 0 : index
    %c0_7 = arith.constant 0 : index
    %6 = vector.load %arg2[%c0_4, %c0_5, %c0_6, %c0_7] : memref<4x2x32x8xf32, #tpu.memory_space<vmem>>, vector<1x1x32x8xf32>
    %7 = vector.shape_cast %6 : vector<1x1x32x8xf32> to vector<32x8xf32>
    %cst_8 = arith.constant dense<0.000000e+00> : vector<32x128xf32>
    %8 = tpu.matmul %7, %5, %cst_8 {dimension_numbers = #tpu.dot_dimension_numbers<[1], [0], [0], [1], [0, 0, 1, 1], [], []>} : vector<32x8xf32>, vector<8x128xf32>, vector<32x128xf32> -> vector<32x128xf32>
    %c0_9 = arith.constant 0 : index
    %c0_10 = arith.constant 0 : index
    %c0_11 = arith.constant 0 : index
    %c0_12 = arith.constant 0 : index
    %9 = vector.load %arg3[%c0_9, %c0_10, %c0_11, %c0_12] : memref<4x2x32x1xf32, #tpu.memory_space<vmem>>, vector<1x1x32x1xf32>
    %10 = vector.shape_cast %9 : vector<1x1x32x1xf32> to vector<32x1xf32>
    %11 = vector.broadcast %10 : vector<32x1xf32> to vector<32x128xf32>
    %12 = arith.addf %8, %11 : vector<32x128xf32>
    %cst_13 = arith.constant 0.000000e+00 : f32
    %13 = vector.broadcast %cst_13 : f32 to vector<32x128xf32>
    %14 = arith.maximumf %12, %13 : vector<32x128xf32>
    %c0_14 = arith.constant 0 : index
    %c0_15 = arith.constant 0 : index
    %c0_16 = arith.constant 0 : index
    %c0_17 = arith.constant 0 : index
    %15 = vector.load %arg4[%c0_14, %c0_15, %c0_16, %c0_17] : memref<4x2x16x32xf32, #tpu.memory_space<vmem>>, vector<1x1x16x32xf32>
    %16 = vector.shape_cast %15 : vector<1x1x16x32xf32> to vector<16x32xf32>
    %cst_18 = arith.constant dense<0.000000e+00> : vector<16x128xf32>
    %17 = tpu.matmul %16, %14, %cst_18 {dimension_numbers = #tpu.dot_dimension_numbers<[1], [0], [0], [1], [0, 0, 1, 1], [], []>} : vector<16x32xf32>, vector<32x128xf32>, vector<16x128xf32> -> vector<16x128xf32>
    %c0_19 = arith.constant 0 : index
    %c0_20 = arith.constant 0 : index
    %c0_21 = arith.constant 0 : index
    %c0_22 = arith.constant 0 : index
    %18 = vector.load %arg5[%c0_19, %c0_20, %c0_21, %c0_22] : memref<4x2x16x1xf32, #tpu.memory_space<vmem>>, vector<1x1x16x1xf32>
    %19 = vector.shape_cast %18 : vector<1x1x16x1xf32> to vector<16x1xf32>
    %20 = vector.broadcast %19 : vector<16x1xf32> to vector<16x128xf32>
    %21 = arith.addf %17, %20 : vector<16x128xf32>
    %22 = vector.extract_strided_slice %21 {offsets = [0, 0], sizes = [8, 128], strides = [1, 1]} : vector<16x128xf32> to vector<8x128xf32>
    %cst_23 = arith.constant 5.000000e-01 : f32
    %23 = vector.broadcast %cst_23 : f32 to vector<8x128xf32>
    %24 = arith.mulf %22, %23 : vector<8x128xf32>
    %25 = math.absf %24 : vector<8x128xf32>
    %cst_24 = arith.constant 2.41421366 : f32
    %26 = vector.broadcast %cst_24 : f32 to vector<8x128xf32>
    %27 = arith.cmpf ogt, %25, %26 : vector<8x128xf32>
    %cst_25 = arith.constant -1.000000e+00 : f32
    %28 = vector.broadcast %cst_25 : f32 to vector<8x128xf32>
    %29 = arith.divf %28, %25 : vector<8x128xf32>
    %cst_26 = arith.constant 0.414213568 : f32
    %30 = vector.broadcast %cst_26 : f32 to vector<8x128xf32>
    %31 = arith.cmpf ogt, %25, %30 : vector<8x128xf32>
    %cst_27 = arith.constant 1.000000e+00 : f32
    %32 = vector.broadcast %cst_27 : f32 to vector<8x128xf32>
    %33 = arith.subf %25, %32 : vector<8x128xf32>
    %cst_28 = arith.constant 1.000000e+00 : f32
    %34 = vector.broadcast %cst_28 : f32 to vector<8x128xf32>
    %35 = arith.addf %25, %34 : vector<8x128xf32>
    %36 = arith.divf %33, %35 : vector<8x128xf32>
    %37 = arith.select %31, %36, %25 : vector<8x128xi1>, vector<8x128xf32>
    %38 = arith.select %27, %29, %37 : vector<8x128xi1>, vector<8x128xf32>
    %cst_29 = arith.constant 2.41421366 : f32
    %39 = vector.broadcast %cst_29 : f32 to vector<8x128xf32>
    %40 = arith.cmpf ogt, %25, %39 : vector<8x128xf32>
    %cst_30 = arith.constant 0.414213568 : f32
    %41 = vector.broadcast %cst_30 : f32 to vector<8x128xf32>
    %42 = arith.cmpf ogt, %25, %41 : vector<8x128xf32>
    %cst_31 = arith.constant 0.785398185 : f32
    %cst_32 = arith.constant 0.000000e+00 : f32
    %43 = vector.broadcast %cst_31 : f32 to vector<8x128xf32>
    %44 = vector.broadcast %cst_32 : f32 to vector<8x128xf32>
    %45 = arith.select %42, %43, %44 : vector<8x128xi1>, vector<8x128xf32>
    %cst_33 = arith.constant 1.57079637 : f32
    %46 = vector.broadcast %cst_33 : f32 to vector<8x128xf32>
    %47 = arith.select %40, %46, %45 : vector<8x128xi1>, vector<8x128xf32>
    %48 = arith.mulf %38, %38 : vector<8x128xf32>
    %cst_34 = arith.constant 0.0805374458 : f32
    %49 = vector.broadcast %cst_34 : f32 to vector<8x128xf32>
    %50 = arith.mulf %49, %48 : vector<8x128xf32>
    %cst_35 = arith.constant 0.138776854 : f32
    %51 = vector.broadcast %cst_35 : f32 to vector<8x128xf32>
    %52 = arith.subf %50, %51 : vector<8x128xf32>
    %53 = arith.mulf %52, %48 : vector<8x128xf32>
    %cst_36 = arith.constant 0.199777111 : f32
    %54 = vector.broadcast %cst_36 : f32 to vector<8x128xf32>
    %55 = arith.addf %53, %54 : vector<8x128xf32>
    %56 = arith.mulf %55, %48 : vector<8x128xf32>
    %cst_37 = arith.constant 0.333329499 : f32
    %57 = vector.broadcast %cst_37 : f32 to vector<8x128xf32>
    %58 = arith.subf %56, %57 : vector<8x128xf32>
    %59 = arith.addf %47, %38 : vector<8x128xf32>
    %60 = arith.mulf %38, %48 : vector<8x128xf32>
    %61 = arith.mulf %60, %58 : vector<8x128xf32>
    %62 = arith.addf %59, %61 : vector<8x128xf32>
    %cst_38 = arith.constant 0.000000e+00 : f32
    %63 = vector.broadcast %cst_38 : f32 to vector<8x128xf32>
    %64 = arith.cmpf olt, %24, %63 : vector<8x128xf32>
    %cst_39 = arith.constant 0.000000e+00 : f32
    %65 = vector.broadcast %cst_39 : f32 to vector<8x128xf32>
    %66 = arith.subf %65, %62 : vector<8x128xf32>
    %67 = arith.select %64, %66, %62 : vector<8x128xi1>, vector<8x128xf32>
    %cst_40 = arith.constant 1.272000e+00 : f32
    %68 = vector.broadcast %cst_40 : f32 to vector<8x128xf32>
    %69 = arith.mulf %68, %67 : vector<8x128xf32>
    %70 = math.exp %69 : vector<8x128xf32>
    %71 = arith.mulf %70, %4 : vector<8x128xf32>
    %72 = vector.extract_strided_slice %21 {offsets = [8, 0], sizes = [8, 128], strides = [1, 1]} : vector<16x128xf32> to vector<8x128xf32>
    %73 = arith.addf %71, %72 : vector<8x128xf32>
    %c0_41 = arith.constant 0 : index
    %c1 = arith.constant 1 : index
    %c0_42 = arith.constant 0 : index
    %c0_43 = arith.constant 0 : index
    %74 = vector.load %arg2[%c0_41, %c1, %c0_42, %c0_43] : memref<4x2x32x8xf32, #tpu.memory_space<vmem>>, vector<1x1x32x8xf32>
    %75 = vector.shape_cast %74 : vector<1x1x32x8xf32> to vector<32x8xf32>
    %cst_44 = arith.constant dense<0.000000e+00> : vector<32x128xf32>
    %76 = tpu.matmul %75, %73, %cst_44 {dimension_numbers = #tpu.dot_dimension_numbers<[1], [0], [0], [1], [0, 0, 1, 1], [], []>} : vector<32x8xf32>, vector<8x128xf32>, vector<32x128xf32> -> vector<32x128xf32>
    %c0_45 = arith.constant 0 : index
    %c1_46 = arith.constant 1 : index
    %c0_47 = arith.constant 0 : index
    %c0_48 = arith.constant 0 : index
    %77 = vector.load %arg3[%c0_45, %c1_46, %c0_47, %c0_48] : memref<4x2x32x1xf32, #tpu.memory_space<vmem>>, vector<1x1x32x1xf32>
    %78 = vector.shape_cast %77 : vector<1x1x32x1xf32> to vector<32x1xf32>
    %79 = vector.broadcast %78 : vector<32x1xf32> to vector<32x128xf32>
    %80 = arith.addf %76, %79 : vector<32x128xf32>
    %cst_49 = arith.constant 0.000000e+00 : f32
    %81 = vector.broadcast %cst_49 : f32 to vector<32x128xf32>
    %82 = arith.maximumf %80, %81 : vector<32x128xf32>
    %c0_50 = arith.constant 0 : index
    %c1_51 = arith.constant 1 : index
    %c0_52 = arith.constant 0 : index
    %c0_53 = arith.constant 0 : index
    %83 = vector.load %arg4[%c0_50, %c1_51, %c0_52, %c0_53] : memref<4x2x16x32xf32, #tpu.memory_space<vmem>>, vector<1x1x16x32xf32>
    %84 = vector.shape_cast %83 : vector<1x1x16x32xf32> to vector<16x32xf32>
    %cst_54 = arith.constant dense<0.000000e+00> : vector<16x128xf32>
    %85 = tpu.matmul %84, %82, %cst_54 {dimension_numbers = #tpu.dot_dimension_numbers<[1], [0], [0], [1], [0, 0, 1, 1], [], []>} : vector<16x32xf32>, vector<32x128xf32>, vector<16x128xf32> -> vector<16x128xf32>
    %c0_55 = arith.constant 0 : index
    %c1_56 = arith.constant 1 : index
    %c0_57 = arith.constant 0 : index
    %c0_58 = arith.constant 0 : index
    %86 = vector.load %arg5[%c0_55, %c1_56, %c0_57, %c0_58] : memref<4x2x16x1xf32, #tpu.memory_space<vmem>>, vector<1x1x16x1xf32>
    %87 = vector.shape_cast %86 : vector<1x1x16x1xf32> to vector<16x1xf32>
    %88 = vector.broadcast %87 : vector<16x1xf32> to vector<16x128xf32>
    %89 = arith.addf %85, %88 : vector<16x128xf32>
    %90 = vector.extract_strided_slice %89 {offsets = [0, 0], sizes = [8, 128], strides = [1, 1]} : vector<16x128xf32> to vector<8x128xf32>
    %cst_59 = arith.constant 5.000000e-01 : f32
    %91 = vector.broadcast %cst_59 : f32 to vector<8x128xf32>
    %92 = arith.mulf %90, %91 : vector<8x128xf32>
    %93 = math.absf %92 : vector<8x128xf32>
    %cst_60 = arith.constant 2.41421366 : f32
    %94 = vector.broadcast %cst_60 : f32 to vector<8x128xf32>
    %95 = arith.cmpf ogt, %93, %94 : vector<8x128xf32>
    %cst_61 = arith.constant -1.000000e+00 : f32
    %96 = vector.broadcast %cst_61 : f32 to vector<8x128xf32>
    %97 = arith.divf %96, %93 : vector<8x128xf32>
    %cst_62 = arith.constant 0.414213568 : f32
    %98 = vector.broadcast %cst_62 : f32 to vector<8x128xf32>
    %99 = arith.cmpf ogt, %93, %98 : vector<8x128xf32>
    %cst_63 = arith.constant 1.000000e+00 : f32
    %100 = vector.broadcast %cst_63 : f32 to vector<8x128xf32>
    %101 = arith.subf %93, %100 : vector<8x128xf32>
    %cst_64 = arith.constant 1.000000e+00 : f32
    %102 = vector.broadcast %cst_64 : f32 to vector<8x128xf32>
    %103 = arith.addf %93, %102 : vector<8x128xf32>
    %104 = arith.divf %101, %103 : vector<8x128xf32>
    %105 = arith.select %99, %104, %93 : vector<8x128xi1>, vector<8x128xf32>
    %106 = arith.select %95, %97, %105 : vector<8x128xi1>, vector<8x128xf32>
    %cst_65 = arith.constant 2.41421366 : f32
    %107 = vector.broadcast %cst_65 : f32 to vector<8x128xf32>
    %108 = arith.cmpf ogt, %93, %107 : vector<8x128xf32>
    %cst_66 = arith.constant 0.414213568 : f32
    %109 = vector.broadcast %cst_66 : f32 to vector<8x128xf32>
    %110 = arith.cmpf ogt, %93, %109 : vector<8x128xf32>
    %cst_67 = arith.constant 0.785398185 : f32
    %cst_68 = arith.constant 0.000000e+00 : f32
    %111 = vector.broadcast %cst_67 : f32 to vector<8x128xf32>
    %112 = vector.broadcast %cst_68 : f32 to vector<8x128xf32>
    %113 = arith.select %110, %111, %112 : vector<8x128xi1>, vector<8x128xf32>
    %cst_69 = arith.constant 1.57079637 : f32
    %114 = vector.broadcast %cst_69 : f32 to vector<8x128xf32>
    %115 = arith.select %108, %114, %113 : vector<8x128xi1>, vector<8x128xf32>
    %116 = arith.mulf %106, %106 : vector<8x128xf32>
    %cst_70 = arith.constant 0.0805374458 : f32
    %117 = vector.broadcast %cst_70 : f32 to vector<8x128xf32>
    %118 = arith.mulf %117, %116 : vector<8x128xf32>
    %cst_71 = arith.constant 0.138776854 : f32
    %119 = vector.broadcast %cst_71 : f32 to vector<8x128xf32>
    %120 = arith.subf %118, %119 : vector<8x128xf32>
    %121 = arith.mulf %120, %116 : vector<8x128xf32>
    %cst_72 = arith.constant 0.199777111 : f32
    %122 = vector.broadcast %cst_72 : f32 to vector<8x128xf32>
    %123 = arith.addf %121, %122 : vector<8x128xf32>
    %124 = arith.mulf %123, %116 : vector<8x128xf32>
    %cst_73 = arith.constant 0.333329499 : f32
    %125 = vector.broadcast %cst_73 : f32 to vector<8x128xf32>
    %126 = arith.subf %124, %125 : vector<8x128xf32>
    %127 = arith.addf %115, %106 : vector<8x128xf32>
    %128 = arith.mulf %106, %116 : vector<8x128xf32>
    %129 = arith.mulf %128, %126 : vector<8x128xf32>
    %130 = arith.addf %127, %129 : vector<8x128xf32>
    %cst_74 = arith.constant 0.000000e+00 : f32
    %131 = vector.broadcast %cst_74 : f32 to vector<8x128xf32>
    %132 = arith.cmpf olt, %92, %131 : vector<8x128xf32>
    %cst_75 = arith.constant 0.000000e+00 : f32
    %133 = vector.broadcast %cst_75 : f32 to vector<8x128xf32>
    %134 = arith.subf %133, %130 : vector<8x128xf32>
    %135 = arith.select %132, %134, %130 : vector<8x128xi1>, vector<8x128xf32>
    %cst_76 = arith.constant 1.272000e+00 : f32
    %136 = vector.broadcast %cst_76 : f32 to vector<8x128xf32>
    %137 = arith.mulf %136, %135 : vector<8x128xf32>
    %138 = math.exp %137 : vector<8x128xf32>
    %139 = arith.mulf %138, %5 : vector<8x128xf32>
    %140 = vector.extract_strided_slice %89 {offsets = [8, 0], sizes = [8, 128], strides = [1, 1]} : vector<16x128xf32> to vector<8x128xf32>
    %141 = arith.addf %139, %140 : vector<8x128xf32>
    %142 = tpu.concatenate %73, %141 in 0 : vector<8x128xf32>, vector<8x128xf32> -> vector<16x128xf32>
    %c1_77 = arith.constant 1 : index
    %c0_78 = arith.constant 0 : index
    %c0_79 = arith.constant 0 : index
    %143 = vector.load %arg6[%c1_77, %c0_78, %c0_79] : memref<4x16x16xf32, #tpu.memory_space<vmem>>, vector<1x16x16xf32>
    %144 = vector.shape_cast %143 : vector<1x16x16xf32> to vector<16x16xf32>
    %cst_80 = arith.constant dense<0.000000e+00> : vector<16x128xf32>
    %145 = tpu.matmul %144, %142, %cst_80 {dimension_numbers = #tpu.dot_dimension_numbers<[1], [0], [0], [1], [0, 0, 1, 1], [], []>} : vector<16x16xf32>, vector<16x128xf32>, vector<16x128xf32> -> vector<16x128xf32>
    %146 = vector.extract_strided_slice %145 {offsets = [0, 0], sizes = [8, 128], strides = [1, 1]} : vector<16x128xf32> to vector<8x128xf32>
    %147 = vector.extract_strided_slice %145 {offsets = [8, 0], sizes = [8, 128], strides = [1, 1]} : vector<16x128xf32> to vector<8x128xf32>
    %c1_81 = arith.constant 1 : index
    %c0_82 = arith.constant 0 : index
    %c0_83 = arith.constant 0 : index
    %c0_84 = arith.constant 0 : index
    %148 = vector.load %arg2[%c1_81, %c0_82, %c0_83, %c0_84] : memref<4x2x32x8xf32, #tpu.memory_space<vmem>>, vector<1x1x32x8xf32>
    %149 = vector.shape_cast %148 : vector<1x1x32x8xf32> to vector<32x8xf32>
    %cst_85 = arith.constant dense<0.000000e+00> : vector<32x128xf32>
    %150 = tpu.matmul %149, %147, %cst_85 {dimension_numbers = #tpu.dot_dimension_numbers<[1], [0], [0], [1], [0, 0, 1, 1], [], []>} : vector<32x8xf32>, vector<8x128xf32>, vector<32x128xf32> -> vector<32x128xf32>
    %c1_86 = arith.constant 1 : index
    %c0_87 = arith.constant 0 : index
    %c0_88 = arith.constant 0 : index
    %c0_89 = arith.constant 0 : index
    %151 = vector.load %arg3[%c1_86, %c0_87, %c0_88, %c0_89] : memref<4x2x32x1xf32, #tpu.memory_space<vmem>>, vector<1x1x32x1xf32>
    %152 = vector.shape_cast %151 : vector<1x1x32x1xf32> to vector<32x1xf32>
    %153 = vector.broadcast %152 : vector<32x1xf32> to vector<32x128xf32>
    %154 = arith.addf %150, %153 : vector<32x128xf32>
    %cst_90 = arith.constant 0.000000e+00 : f32
    %155 = vector.broadcast %cst_90 : f32 to vector<32x128xf32>
    %156 = arith.maximumf %154, %155 : vector<32x128xf32>
    %c1_91 = arith.constant 1 : index
    %c0_92 = arith.constant 0 : index
    %c0_93 = arith.constant 0 : index
    %c0_94 = arith.constant 0 : index
    %157 = vector.load %arg4[%c1_91, %c0_92, %c0_93, %c0_94] : memref<4x2x16x32xf32, #tpu.memory_space<vmem>>, vector<1x1x16x32xf32>
    %158 = vector.shape_cast %157 : vector<1x1x16x32xf32> to vector<16x32xf32>
    %cst_95 = arith.constant dense<0.000000e+00> : vector<16x128xf32>
    %159 = tpu.matmul %158, %156, %cst_95 {dimension_numbers = #tpu.dot_dimension_numbers<[1], [0], [0], [1], [0, 0, 1, 1], [], []>} : vector<16x32xf32>, vector<32x128xf32>, vector<16x128xf32> -> vector<16x128xf32>
    %c1_96 = arith.constant 1 : index
    %c0_97 = arith.constant 0 : index
    %c0_98 = arith.constant 0 : index
    %c0_99 = arith.constant 0 : index
    %160 = vector.load %arg5[%c1_96, %c0_97, %c0_98, %c0_99] : memref<4x2x16x1xf32, #tpu.memory_space<vmem>>, vector<1x1x16x1xf32>
    %161 = vector.shape_cast %160 : vector<1x1x16x1xf32> to vector<16x1xf32>
    %162 = vector.broadcast %161 : vector<16x1xf32> to vector<16x128xf32>
    %163 = arith.addf %159, %162 : vector<16x128xf32>
    %164 = vector.extract_strided_slice %163 {offsets = [0, 0], sizes = [8, 128], strides = [1, 1]} : vector<16x128xf32> to vector<8x128xf32>
    %cst_100 = arith.constant 5.000000e-01 : f32
    %165 = vector.broadcast %cst_100 : f32 to vector<8x128xf32>
    %166 = arith.mulf %164, %165 : vector<8x128xf32>
    %167 = math.absf %166 : vector<8x128xf32>
    %cst_101 = arith.constant 2.41421366 : f32
    %168 = vector.broadcast %cst_101 : f32 to vector<8x128xf32>
    %169 = arith.cmpf ogt, %167, %168 : vector<8x128xf32>
    %cst_102 = arith.constant -1.000000e+00 : f32
    %170 = vector.broadcast %cst_102 : f32 to vector<8x128xf32>
    %171 = arith.divf %170, %167 : vector<8x128xf32>
    %cst_103 = arith.constant 0.414213568 : f32
    %172 = vector.broadcast %cst_103 : f32 to vector<8x128xf32>
    %173 = arith.cmpf ogt, %167, %172 : vector<8x128xf32>
    %cst_104 = arith.constant 1.000000e+00 : f32
    %174 = vector.broadcast %cst_104 : f32 to vector<8x128xf32>
    %175 = arith.subf %167, %174 : vector<8x128xf32>
    %cst_105 = arith.constant 1.000000e+00 : f32
    %176 = vector.broadcast %cst_105 : f32 to vector<8x128xf32>
    %177 = arith.addf %167, %176 : vector<8x128xf32>
    %178 = arith.divf %175, %177 : vector<8x128xf32>
    %179 = arith.select %173, %178, %167 : vector<8x128xi1>, vector<8x128xf32>
    %180 = arith.select %169, %171, %179 : vector<8x128xi1>, vector<8x128xf32>
    %cst_106 = arith.constant 2.41421366 : f32
    %181 = vector.broadcast %cst_106 : f32 to vector<8x128xf32>
    %182 = arith.cmpf ogt, %167, %181 : vector<8x128xf32>
    %cst_107 = arith.constant 0.414213568 : f32
    %183 = vector.broadcast %cst_107 : f32 to vector<8x128xf32>
    %184 = arith.cmpf ogt, %167, %183 : vector<8x128xf32>
    %cst_108 = arith.constant 0.785398185 : f32
    %cst_109 = arith.constant 0.000000e+00 : f32
    %185 = vector.broadcast %cst_108 : f32 to vector<8x128xf32>
    %186 = vector.broadcast %cst_109 : f32 to vector<8x128xf32>
    %187 = arith.select %184, %185, %186 : vector<8x128xi1>, vector<8x128xf32>
    %cst_110 = arith.constant 1.57079637 : f32
    %188 = vector.broadcast %cst_110 : f32 to vector<8x128xf32>
    %189 = arith.select %182, %188, %187 : vector<8x128xi1>, vector<8x128xf32>
    %190 = arith.mulf %180, %180 : vector<8x128xf32>
    %cst_111 = arith.constant 0.0805374458 : f32
    %191 = vector.broadcast %cst_111 : f32 to vector<8x128xf32>
    %192 = arith.mulf %191, %190 : vector<8x128xf32>
    %cst_112 = arith.constant 0.138776854 : f32
    %193 = vector.broadcast %cst_112 : f32 to vector<8x128xf32>
    %194 = arith.subf %192, %193 : vector<8x128xf32>
    %195 = arith.mulf %194, %190 : vector<8x128xf32>
    %cst_113 = arith.constant 0.199777111 : f32
    %196 = vector.broadcast %cst_113 : f32 to vector<8x128xf32>
    %197 = arith.addf %195, %196 : vector<8x128xf32>
    %198 = arith.mulf %197, %190 : vector<8x128xf32>
    %cst_114 = arith.constant 0.333329499 : f32
    %199 = vector.broadcast %cst_114 : f32 to vector<8x128xf32>
    %200 = arith.subf %198, %199 : vector<8x128xf32>
    %201 = arith.addf %189, %180 : vector<8x128xf32>
    %202 = arith.mulf %180, %190 : vector<8x128xf32>
    %203 = arith.mulf %202, %200 : vector<8x128xf32>
    %204 = arith.addf %201, %203 : vector<8x128xf32>
    %cst_115 = arith.constant 0.000000e+00 : f32
    %205 = vector.broadcast %cst_115 : f32 to vector<8x128xf32>
    %206 = arith.cmpf olt, %166, %205 : vector<8x128xf32>
    %cst_116 = arith.constant 0.000000e+00 : f32
    %207 = vector.broadcast %cst_116 : f32 to vector<8x128xf32>
    %208 = arith.subf %207, %204 : vector<8x128xf32>
    %209 = arith.select %206, %208, %204 : vector<8x128xi1>, vector<8x128xf32>
    %cst_117 = arith.constant 1.272000e+00 : f32
    %210 = vector.broadcast %cst_117 : f32 to vector<8x128xf32>
    %211 = arith.mulf %210, %209 : vector<8x128xf32>
    %212 = math.exp %211 : vector<8x128xf32>
    %213 = arith.mulf %212, %146 : vector<8x128xf32>
    %214 = vector.extract_strided_slice %163 {offsets = [8, 0], sizes = [8, 128], strides = [1, 1]} : vector<16x128xf32> to vector<8x128xf32>
    %215 = arith.addf %213, %214 : vector<8x128xf32>
    %c1_118 = arith.constant 1 : index
    %c1_119 = arith.constant 1 : index
    %c0_120 = arith.constant 0 : index
    %c0_121 = arith.constant 0 : index
    %216 = vector.load %arg2[%c1_118, %c1_119, %c0_120, %c0_121] : memref<4x2x32x8xf32, #tpu.memory_space<vmem>>, vector<1x1x32x8xf32>
    %217 = vector.shape_cast %216 : vector<1x1x32x8xf32> to vector<32x8xf32>
    %cst_122 = arith.constant dense<0.000000e+00> : vector<32x128xf32>
    %218 = tpu.matmul %217, %215, %cst_122 {dimension_numbers = #tpu.dot_dimension_numbers<[1], [0], [0], [1], [0, 0, 1, 1], [], []>} : vector<32x8xf32>, vector<8x128xf32>, vector<32x128xf32> -> vector<32x128xf32>
    %c1_123 = arith.constant 1 : index
    %c1_124 = arith.constant 1 : index
    %c0_125 = arith.constant 0 : index
    %c0_126 = arith.constant 0 : index
    %219 = vector.load %arg3[%c1_123, %c1_124, %c0_125, %c0_126] : memref<4x2x32x1xf32, #tpu.memory_space<vmem>>, vector<1x1x32x1xf32>
    %220 = vector.shape_cast %219 : vector<1x1x32x1xf32> to vector<32x1xf32>
    %221 = vector.broadcast %220 : vector<32x1xf32> to vector<32x128xf32>
    %222 = arith.addf %218, %221 : vector<32x128xf32>
    %cst_127 = arith.constant 0.000000e+00 : f32
    %223 = vector.broadcast %cst_127 : f32 to vector<32x128xf32>
    %224 = arith.maximumf %222, %223 : vector<32x128xf32>
    %c1_128 = arith.constant 1 : index
    %c1_129 = arith.constant 1 : index
    %c0_130 = arith.constant 0 : index
    %c0_131 = arith.constant 0 : index
    %225 = vector.load %arg4[%c1_128, %c1_129, %c0_130, %c0_131] : memref<4x2x16x32xf32, #tpu.memory_space<vmem>>, vector<1x1x16x32xf32>
    %226 = vector.shape_cast %225 : vector<1x1x16x32xf32> to vector<16x32xf32>
    %cst_132 = arith.constant dense<0.000000e+00> : vector<16x128xf32>
    %227 = tpu.matmul %226, %224, %cst_132 {dimension_numbers = #tpu.dot_dimension_numbers<[1], [0], [0], [1], [0, 0, 1, 1], [], []>} : vector<16x32xf32>, vector<32x128xf32>, vector<16x128xf32> -> vector<16x128xf32>
    %c1_133 = arith.constant 1 : index
    %c1_134 = arith.constant 1 : index
    %c0_135 = arith.constant 0 : index
    %c0_136 = arith.constant 0 : index
    %228 = vector.load %arg5[%c1_133, %c1_134, %c0_135, %c0_136] : memref<4x2x16x1xf32, #tpu.memory_space<vmem>>, vector<1x1x16x1xf32>
    %229 = vector.shape_cast %228 : vector<1x1x16x1xf32> to vector<16x1xf32>
    %230 = vector.broadcast %229 : vector<16x1xf32> to vector<16x128xf32>
    %231 = arith.addf %227, %230 : vector<16x128xf32>
    %232 = vector.extract_strided_slice %231 {offsets = [0, 0], sizes = [8, 128], strides = [1, 1]} : vector<16x128xf32> to vector<8x128xf32>
    %cst_137 = arith.constant 5.000000e-01 : f32
    %233 = vector.broadcast %cst_137 : f32 to vector<8x128xf32>
    %234 = arith.mulf %232, %233 : vector<8x128xf32>
    %235 = math.absf %234 : vector<8x128xf32>
    %cst_138 = arith.constant 2.41421366 : f32
    %236 = vector.broadcast %cst_138 : f32 to vector<8x128xf32>
    %237 = arith.cmpf ogt, %235, %236 : vector<8x128xf32>
    %cst_139 = arith.constant -1.000000e+00 : f32
    %238 = vector.broadcast %cst_139 : f32 to vector<8x128xf32>
    %239 = arith.divf %238, %235 : vector<8x128xf32>
    %cst_140 = arith.constant 0.414213568 : f32
    %240 = vector.broadcast %cst_140 : f32 to vector<8x128xf32>
    %241 = arith.cmpf ogt, %235, %240 : vector<8x128xf32>
    %cst_141 = arith.constant 1.000000e+00 : f32
    %242 = vector.broadcast %cst_141 : f32 to vector<8x128xf32>
    %243 = arith.subf %235, %242 : vector<8x128xf32>
    %cst_142 = arith.constant 1.000000e+00 : f32
    %244 = vector.broadcast %cst_142 : f32 to vector<8x128xf32>
    %245 = arith.addf %235, %244 : vector<8x128xf32>
    %246 = arith.divf %243, %245 : vector<8x128xf32>
    %247 = arith.select %241, %246, %235 : vector<8x128xi1>, vector<8x128xf32>
    %248 = arith.select %237, %239, %247 : vector<8x128xi1>, vector<8x128xf32>
    %cst_143 = arith.constant 2.41421366 : f32
    %249 = vector.broadcast %cst_143 : f32 to vector<8x128xf32>
    %250 = arith.cmpf ogt, %235, %249 : vector<8x128xf32>
    %cst_144 = arith.constant 0.414213568 : f32
    %251 = vector.broadcast %cst_144 : f32 to vector<8x128xf32>
    %252 = arith.cmpf ogt, %235, %251 : vector<8x128xf32>
    %cst_145 = arith.constant 0.785398185 : f32
    %cst_146 = arith.constant 0.000000e+00 : f32
    %253 = vector.broadcast %cst_145 : f32 to vector<8x128xf32>
    %254 = vector.broadcast %cst_146 : f32 to vector<8x128xf32>
    %255 = arith.select %252, %253, %254 : vector<8x128xi1>, vector<8x128xf32>
    %cst_147 = arith.constant 1.57079637 : f32
    %256 = vector.broadcast %cst_147 : f32 to vector<8x128xf32>
    %257 = arith.select %250, %256, %255 : vector<8x128xi1>, vector<8x128xf32>
    %258 = arith.mulf %248, %248 : vector<8x128xf32>
    %cst_148 = arith.constant 0.0805374458 : f32
    %259 = vector.broadcast %cst_148 : f32 to vector<8x128xf32>
    %260 = arith.mulf %259, %258 : vector<8x128xf32>
    %cst_149 = arith.constant 0.138776854 : f32
    %261 = vector.broadcast %cst_149 : f32 to vector<8x128xf32>
    %262 = arith.subf %260, %261 : vector<8x128xf32>
    %263 = arith.mulf %262, %258 : vector<8x128xf32>
    %cst_150 = arith.constant 0.199777111 : f32
    %264 = vector.broadcast %cst_150 : f32 to vector<8x128xf32>
    %265 = arith.addf %263, %264 : vector<8x128xf32>
    %266 = arith.mulf %265, %258 : vector<8x128xf32>
    %cst_151 = arith.constant 0.333329499 : f32
    %267 = vector.broadcast %cst_151 : f32 to vector<8x128xf32>
    %268 = arith.subf %266, %267 : vector<8x128xf32>
    %269 = arith.addf %257, %248 : vector<8x128xf32>
    %270 = arith.mulf %248, %258 : vector<8x128xf32>
    %271 = arith.mulf %270, %268 : vector<8x128xf32>
    %272 = arith.addf %269, %271 : vector<8x128xf32>
    %cst_152 = arith.constant 0.000000e+00 : f32
    %273 = vector.broadcast %cst_152 : f32 to vector<8x128xf32>
    %274 = arith.cmpf olt, %234, %273 : vector<8x128xf32>
    %cst_153 = arith.constant 0.000000e+00 : f32
    %275 = vector.broadcast %cst_153 : f32 to vector<8x128xf32>
    %276 = arith.subf %275, %272 : vector<8x128xf32>
    %277 = arith.select %274, %276, %272 : vector<8x128xi1>, vector<8x128xf32>
    %cst_154 = arith.constant 1.272000e+00 : f32
    %278 = vector.broadcast %cst_154 : f32 to vector<8x128xf32>
    %279 = arith.mulf %278, %277 : vector<8x128xf32>
    %280 = math.exp %279 : vector<8x128xf32>
    %281 = arith.mulf %280, %147 : vector<8x128xf32>
    %282 = vector.extract_strided_slice %231 {offsets = [8, 0], sizes = [8, 128], strides = [1, 1]} : vector<16x128xf32> to vector<8x128xf32>
    %283 = arith.addf %281, %282 : vector<8x128xf32>
    %284 = tpu.concatenate %215, %283 in 0 : vector<8x128xf32>, vector<8x128xf32> -> vector<16x128xf32>
    %c2 = arith.constant 2 : index
    %c0_155 = arith.constant 0 : index
    %c0_156 = arith.constant 0 : index
    %285 = vector.load %arg6[%c2, %c0_155, %c0_156] : memref<4x16x16xf32, #tpu.memory_space<vmem>>, vector<1x16x16xf32>
    %286 = vector.shape_cast %285 : vector<1x16x16xf32> to vector<16x16xf32>
    %cst_157 = arith.constant dense<0.000000e+00> : vector<16x128xf32>
    %287 = tpu.matmul %286, %284, %cst_157 {dimension_numbers = #tpu.dot_dimension_numbers<[1], [0], [0], [1], [0, 0, 1, 1], [], []>} : vector<16x16xf32>, vector<16x128xf32>, vector<16x128xf32> -> vector<16x128xf32>
    %288 = vector.extract_strided_slice %287 {offsets = [0, 0], sizes = [8, 128], strides = [1, 1]} : vector<16x128xf32> to vector<8x128xf32>
    %289 = vector.extract_strided_slice %287 {offsets = [8, 0], sizes = [8, 128], strides = [1, 1]} : vector<16x128xf32> to vector<8x128xf32>
    %c2_158 = arith.constant 2 : index
    %c0_159 = arith.constant 0 : index
    %c0_160 = arith.constant 0 : index
    %c0_161 = arith.constant 0 : index
    %290 = vector.load %arg2[%c2_158, %c0_159, %c0_160, %c0_161] : memref<4x2x32x8xf32, #tpu.memory_space<vmem>>, vector<1x1x32x8xf32>
    %291 = vector.shape_cast %290 : vector<1x1x32x8xf32> to vector<32x8xf32>
    %cst_162 = arith.constant dense<0.000000e+00> : vector<32x128xf32>
    %292 = tpu.matmul %291, %289, %cst_162 {dimension_numbers = #tpu.dot_dimension_numbers<[1], [0], [0], [1], [0, 0, 1, 1], [], []>} : vector<32x8xf32>, vector<8x128xf32>, vector<32x128xf32> -> vector<32x128xf32>
    %c2_163 = arith.constant 2 : index
    %c0_164 = arith.constant 0 : index
    %c0_165 = arith.constant 0 : index
    %c0_166 = arith.constant 0 : index
    %293 = vector.load %arg3[%c2_163, %c0_164, %c0_165, %c0_166] : memref<4x2x32x1xf32, #tpu.memory_space<vmem>>, vector<1x1x32x1xf32>
    %294 = vector.shape_cast %293 : vector<1x1x32x1xf32> to vector<32x1xf32>
    %295 = vector.broadcast %294 : vector<32x1xf32> to vector<32x128xf32>
    %296 = arith.addf %292, %295 : vector<32x128xf32>
    %cst_167 = arith.constant 0.000000e+00 : f32
    %297 = vector.broadcast %cst_167 : f32 to vector<32x128xf32>
    %298 = arith.maximumf %296, %297 : vector<32x128xf32>
    %c2_168 = arith.constant 2 : index
    %c0_169 = arith.constant 0 : index
    %c0_170 = arith.constant 0 : index
    %c0_171 = arith.constant 0 : index
    %299 = vector.load %arg4[%c2_168, %c0_169, %c0_170, %c0_171] : memref<4x2x16x32xf32, #tpu.memory_space<vmem>>, vector<1x1x16x32xf32>
    %300 = vector.shape_cast %299 : vector<1x1x16x32xf32> to vector<16x32xf32>
    %cst_172 = arith.constant dense<0.000000e+00> : vector<16x128xf32>
    %301 = tpu.matmul %300, %298, %cst_172 {dimension_numbers = #tpu.dot_dimension_numbers<[1], [0], [0], [1], [0, 0, 1, 1], [], []>} : vector<16x32xf32>, vector<32x128xf32>, vector<16x128xf32> -> vector<16x128xf32>
    %c2_173 = arith.constant 2 : index
    %c0_174 = arith.constant 0 : index
    %c0_175 = arith.constant 0 : index
    %c0_176 = arith.constant 0 : index
    %302 = vector.load %arg5[%c2_173, %c0_174, %c0_175, %c0_176] : memref<4x2x16x1xf32, #tpu.memory_space<vmem>>, vector<1x1x16x1xf32>
    %303 = vector.shape_cast %302 : vector<1x1x16x1xf32> to vector<16x1xf32>
    %304 = vector.broadcast %303 : vector<16x1xf32> to vector<16x128xf32>
    %305 = arith.addf %301, %304 : vector<16x128xf32>
    %306 = vector.extract_strided_slice %305 {offsets = [0, 0], sizes = [8, 128], strides = [1, 1]} : vector<16x128xf32> to vector<8x128xf32>
    %cst_177 = arith.constant 5.000000e-01 : f32
    %307 = vector.broadcast %cst_177 : f32 to vector<8x128xf32>
    %308 = arith.mulf %306, %307 : vector<8x128xf32>
    %309 = math.absf %308 : vector<8x128xf32>
    %cst_178 = arith.constant 2.41421366 : f32
    %310 = vector.broadcast %cst_178 : f32 to vector<8x128xf32>
    %311 = arith.cmpf ogt, %309, %310 : vector<8x128xf32>
    %cst_179 = arith.constant -1.000000e+00 : f32
    %312 = vector.broadcast %cst_179 : f32 to vector<8x128xf32>
    %313 = arith.divf %312, %309 : vector<8x128xf32>
    %cst_180 = arith.constant 0.414213568 : f32
    %314 = vector.broadcast %cst_180 : f32 to vector<8x128xf32>
    %315 = arith.cmpf ogt, %309, %314 : vector<8x128xf32>
    %cst_181 = arith.constant 1.000000e+00 : f32
    %316 = vector.broadcast %cst_181 : f32 to vector<8x128xf32>
    %317 = arith.subf %309, %316 : vector<8x128xf32>
    %cst_182 = arith.constant 1.000000e+00 : f32
    %318 = vector.broadcast %cst_182 : f32 to vector<8x128xf32>
    %319 = arith.addf %309, %318 : vector<8x128xf32>
    %320 = arith.divf %317, %319 : vector<8x128xf32>
    %321 = arith.select %315, %320, %309 : vector<8x128xi1>, vector<8x128xf32>
    %322 = arith.select %311, %313, %321 : vector<8x128xi1>, vector<8x128xf32>
    %cst_183 = arith.constant 2.41421366 : f32
    %323 = vector.broadcast %cst_183 : f32 to vector<8x128xf32>
    %324 = arith.cmpf ogt, %309, %323 : vector<8x128xf32>
    %cst_184 = arith.constant 0.414213568 : f32
    %325 = vector.broadcast %cst_184 : f32 to vector<8x128xf32>
    %326 = arith.cmpf ogt, %309, %325 : vector<8x128xf32>
    %cst_185 = arith.constant 0.785398185 : f32
    %cst_186 = arith.constant 0.000000e+00 : f32
    %327 = vector.broadcast %cst_185 : f32 to vector<8x128xf32>
    %328 = vector.broadcast %cst_186 : f32 to vector<8x128xf32>
    %329 = arith.select %326, %327, %328 : vector<8x128xi1>, vector<8x128xf32>
    %cst_187 = arith.constant 1.57079637 : f32
    %330 = vector.broadcast %cst_187 : f32 to vector<8x128xf32>
    %331 = arith.select %324, %330, %329 : vector<8x128xi1>, vector<8x128xf32>
    %332 = arith.mulf %322, %322 : vector<8x128xf32>
    %cst_188 = arith.constant 0.0805374458 : f32
    %333 = vector.broadcast %cst_188 : f32 to vector<8x128xf32>
    %334 = arith.mulf %333, %332 : vector<8x128xf32>
    %cst_189 = arith.constant 0.138776854 : f32
    %335 = vector.broadcast %cst_189 : f32 to vector<8x128xf32>
    %336 = arith.subf %334, %335 : vector<8x128xf32>
    %337 = arith.mulf %336, %332 : vector<8x128xf32>
    %cst_190 = arith.constant 0.199777111 : f32
    %338 = vector.broadcast %cst_190 : f32 to vector<8x128xf32>
    %339 = arith.addf %337, %338 : vector<8x128xf32>
    %340 = arith.mulf %339, %332 : vector<8x128xf32>
    %cst_191 = arith.constant 0.333329499 : f32
    %341 = vector.broadcast %cst_191 : f32 to vector<8x128xf32>
    %342 = arith.subf %340, %341 : vector<8x128xf32>
    %343 = arith.addf %331, %322 : vector<8x128xf32>
    %344 = arith.mulf %322, %332 : vector<8x128xf32>
    %345 = arith.mulf %344, %342 : vector<8x128xf32>
    %346 = arith.addf %343, %345 : vector<8x128xf32>
    %cst_192 = arith.constant 0.000000e+00 : f32
    %347 = vector.broadcast %cst_192 : f32 to vector<8x128xf32>
    %348 = arith.cmpf olt, %308, %347 : vector<8x128xf32>
    %cst_193 = arith.constant 0.000000e+00 : f32
    %349 = vector.broadcast %cst_193 : f32 to vector<8x128xf32>
    %350 = arith.subf %349, %346 : vector<8x128xf32>
    %351 = arith.select %348, %350, %346 : vector<8x128xi1>, vector<8x128xf32>
    %cst_194 = arith.constant 1.272000e+00 : f32
    %352 = vector.broadcast %cst_194 : f32 to vector<8x128xf32>
    %353 = arith.mulf %352, %351 : vector<8x128xf32>
    %354 = math.exp %353 : vector<8x128xf32>
    %355 = arith.mulf %354, %288 : vector<8x128xf32>
    %356 = vector.extract_strided_slice %305 {offsets = [8, 0], sizes = [8, 128], strides = [1, 1]} : vector<16x128xf32> to vector<8x128xf32>
    %357 = arith.addf %355, %356 : vector<8x128xf32>
    %c2_195 = arith.constant 2 : index
    %c1_196 = arith.constant 1 : index
    %c0_197 = arith.constant 0 : index
    %c0_198 = arith.constant 0 : index
    %358 = vector.load %arg2[%c2_195, %c1_196, %c0_197, %c0_198] : memref<4x2x32x8xf32, #tpu.memory_space<vmem>>, vector<1x1x32x8xf32>
    %359 = vector.shape_cast %358 : vector<1x1x32x8xf32> to vector<32x8xf32>
    %cst_199 = arith.constant dense<0.000000e+00> : vector<32x128xf32>
    %360 = tpu.matmul %359, %357, %cst_199 {dimension_numbers = #tpu.dot_dimension_numbers<[1], [0], [0], [1], [0, 0, 1, 1], [], []>} : vector<32x8xf32>, vector<8x128xf32>, vector<32x128xf32> -> vector<32x128xf32>
    %c2_200 = arith.constant 2 : index
    %c1_201 = arith.constant 1 : index
    %c0_202 = arith.constant 0 : index
    %c0_203 = arith.constant 0 : index
    %361 = vector.load %arg3[%c2_200, %c1_201, %c0_202, %c0_203] : memref<4x2x32x1xf32, #tpu.memory_space<vmem>>, vector<1x1x32x1xf32>
    %362 = vector.shape_cast %361 : vector<1x1x32x1xf32> to vector<32x1xf32>
    %363 = vector.broadcast %362 : vector<32x1xf32> to vector<32x128xf32>
    %364 = arith.addf %360, %363 : vector<32x128xf32>
    %cst_204 = arith.constant 0.000000e+00 : f32
    %365 = vector.broadcast %cst_204 : f32 to vector<32x128xf32>
    %366 = arith.maximumf %364, %365 : vector<32x128xf32>
    %c2_205 = arith.constant 2 : index
    %c1_206 = arith.constant 1 : index
    %c0_207 = arith.constant 0 : index
    %c0_208 = arith.constant 0 : index
    %367 = vector.load %arg4[%c2_205, %c1_206, %c0_207, %c0_208] : memref<4x2x16x32xf32, #tpu.memory_space<vmem>>, vector<1x1x16x32xf32>
    %368 = vector.shape_cast %367 : vector<1x1x16x32xf32> to vector<16x32xf32>
    %cst_209 = arith.constant dense<0.000000e+00> : vector<16x128xf32>
    %369 = tpu.matmul %368, %366, %cst_209 {dimension_numbers = #tpu.dot_dimension_numbers<[1], [0], [0], [1], [0, 0, 1, 1], [], []>} : vector<16x32xf32>, vector<32x128xf32>, vector<16x128xf32> -> vector<16x128xf32>
    %c2_210 = arith.constant 2 : index
    %c1_211 = arith.constant 1 : index
    %c0_212 = arith.constant 0 : index
    %c0_213 = arith.constant 0 : index
    %370 = vector.load %arg5[%c2_210, %c1_211, %c0_212, %c0_213] : memref<4x2x16x1xf32, #tpu.memory_space<vmem>>, vector<1x1x16x1xf32>
    %371 = vector.shape_cast %370 : vector<1x1x16x1xf32> to vector<16x1xf32>
    %372 = vector.broadcast %371 : vector<16x1xf32> to vector<16x128xf32>
    %373 = arith.addf %369, %372 : vector<16x128xf32>
    %374 = vector.extract_strided_slice %373 {offsets = [0, 0], sizes = [8, 128], strides = [1, 1]} : vector<16x128xf32> to vector<8x128xf32>
    %cst_214 = arith.constant 5.000000e-01 : f32
    %375 = vector.broadcast %cst_214 : f32 to vector<8x128xf32>
    %376 = arith.mulf %374, %375 : vector<8x128xf32>
    %377 = math.absf %376 : vector<8x128xf32>
    %cst_215 = arith.constant 2.41421366 : f32
    %378 = vector.broadcast %cst_215 : f32 to vector<8x128xf32>
    %379 = arith.cmpf ogt, %377, %378 : vector<8x128xf32>
    %cst_216 = arith.constant -1.000000e+00 : f32
    %380 = vector.broadcast %cst_216 : f32 to vector<8x128xf32>
    %381 = arith.divf %380, %377 : vector<8x128xf32>
    %cst_217 = arith.constant 0.414213568 : f32
    %382 = vector.broadcast %cst_217 : f32 to vector<8x128xf32>
    %383 = arith.cmpf ogt, %377, %382 : vector<8x128xf32>
    %cst_218 = arith.constant 1.000000e+00 : f32
    %384 = vector.broadcast %cst_218 : f32 to vector<8x128xf32>
    %385 = arith.subf %377, %384 : vector<8x128xf32>
    %cst_219 = arith.constant 1.000000e+00 : f32
    %386 = vector.broadcast %cst_219 : f32 to vector<8x128xf32>
    %387 = arith.addf %377, %386 : vector<8x128xf32>
    %388 = arith.divf %385, %387 : vector<8x128xf32>
    %389 = arith.select %383, %388, %377 : vector<8x128xi1>, vector<8x128xf32>
    %390 = arith.select %379, %381, %389 : vector<8x128xi1>, vector<8x128xf32>
    %cst_220 = arith.constant 2.41421366 : f32
    %391 = vector.broadcast %cst_220 : f32 to vector<8x128xf32>
    %392 = arith.cmpf ogt, %377, %391 : vector<8x128xf32>
    %cst_221 = arith.constant 0.414213568 : f32
    %393 = vector.broadcast %cst_221 : f32 to vector<8x128xf32>
    %394 = arith.cmpf ogt, %377, %393 : vector<8x128xf32>
    %cst_222 = arith.constant 0.785398185 : f32
    %cst_223 = arith.constant 0.000000e+00 : f32
    %395 = vector.broadcast %cst_222 : f32 to vector<8x128xf32>
    %396 = vector.broadcast %cst_223 : f32 to vector<8x128xf32>
    %397 = arith.select %394, %395, %396 : vector<8x128xi1>, vector<8x128xf32>
    %cst_224 = arith.constant 1.57079637 : f32
    %398 = vector.broadcast %cst_224 : f32 to vector<8x128xf32>
    %399 = arith.select %392, %398, %397 : vector<8x128xi1>, vector<8x128xf32>
    %400 = arith.mulf %390, %390 : vector<8x128xf32>
    %cst_225 = arith.constant 0.0805374458 : f32
    %401 = vector.broadcast %cst_225 : f32 to vector<8x128xf32>
    %402 = arith.mulf %401, %400 : vector<8x128xf32>
    %cst_226 = arith.constant 0.138776854 : f32
    %403 = vector.broadcast %cst_226 : f32 to vector<8x128xf32>
    %404 = arith.subf %402, %403 : vector<8x128xf32>
    %405 = arith.mulf %404, %400 : vector<8x128xf32>
    %cst_227 = arith.constant 0.199777111 : f32
    %406 = vector.broadcast %cst_227 : f32 to vector<8x128xf32>
    %407 = arith.addf %405, %406 : vector<8x128xf32>
    %408 = arith.mulf %407, %400 : vector<8x128xf32>
    %cst_228 = arith.constant 0.333329499 : f32
    %409 = vector.broadcast %cst_228 : f32 to vector<8x128xf32>
    %410 = arith.subf %408, %409 : vector<8x128xf32>
    %411 = arith.addf %399, %390 : vector<8x128xf32>
    %412 = arith.mulf %390, %400 : vector<8x128xf32>
    %413 = arith.mulf %412, %410 : vector<8x128xf32>
    %414 = arith.addf %411, %413 : vector<8x128xf32>
    %cst_229 = arith.constant 0.000000e+00 : f32
    %415 = vector.broadcast %cst_229 : f32 to vector<8x128xf32>
    %416 = arith.cmpf olt, %376, %415 : vector<8x128xf32>
    %cst_230 = arith.constant 0.000000e+00 : f32
    %417 = vector.broadcast %cst_230 : f32 to vector<8x128xf32>
    %418 = arith.subf %417, %414 : vector<8x128xf32>
    %419 = arith.select %416, %418, %414 : vector<8x128xi1>, vector<8x128xf32>
    %cst_231 = arith.constant 1.272000e+00 : f32
    %420 = vector.broadcast %cst_231 : f32 to vector<8x128xf32>
    %421 = arith.mulf %420, %419 : vector<8x128xf32>
    %422 = math.exp %421 : vector<8x128xf32>
    %423 = arith.mulf %422, %289 : vector<8x128xf32>
    %424 = vector.extract_strided_slice %373 {offsets = [8, 0], sizes = [8, 128], strides = [1, 1]} : vector<16x128xf32> to vector<8x128xf32>
    %425 = arith.addf %423, %424 : vector<8x128xf32>
    %426 = tpu.concatenate %357, %425 in 0 : vector<8x128xf32>, vector<8x128xf32> -> vector<16x128xf32>
    %c3 = arith.constant 3 : index
    %c0_232 = arith.constant 0 : index
    %c0_233 = arith.constant 0 : index
    %427 = vector.load %arg6[%c3, %c0_232, %c0_233] : memref<4x16x16xf32, #tpu.memory_space<vmem>>, vector<1x16x16xf32>
    %428 = vector.shape_cast %427 : vector<1x16x16xf32> to vector<16x16xf32>
    %cst_234 = arith.constant dense<0.000000e+00> : vector<16x128xf32>
    %429 = tpu.matmul %428, %426, %cst_234 {dimension_numbers = #tpu.dot_dimension_numbers<[1], [0], [0], [1], [0, 0, 1, 1], [], []>} : vector<16x16xf32>, vector<16x128xf32>, vector<16x128xf32> -> vector<16x128xf32>
    %430 = vector.extract_strided_slice %429 {offsets = [0, 0], sizes = [8, 128], strides = [1, 1]} : vector<16x128xf32> to vector<8x128xf32>
    %431 = vector.extract_strided_slice %429 {offsets = [8, 0], sizes = [8, 128], strides = [1, 1]} : vector<16x128xf32> to vector<8x128xf32>
    %c3_235 = arith.constant 3 : index
    %c0_236 = arith.constant 0 : index
    %c0_237 = arith.constant 0 : index
    %c0_238 = arith.constant 0 : index
    %432 = vector.load %arg2[%c3_235, %c0_236, %c0_237, %c0_238] : memref<4x2x32x8xf32, #tpu.memory_space<vmem>>, vector<1x1x32x8xf32>
    %433 = vector.shape_cast %432 : vector<1x1x32x8xf32> to vector<32x8xf32>
    %cst_239 = arith.constant dense<0.000000e+00> : vector<32x128xf32>
    %434 = tpu.matmul %433, %431, %cst_239 {dimension_numbers = #tpu.dot_dimension_numbers<[1], [0], [0], [1], [0, 0, 1, 1], [], []>} : vector<32x8xf32>, vector<8x128xf32>, vector<32x128xf32> -> vector<32x128xf32>
    %c3_240 = arith.constant 3 : index
    %c0_241 = arith.constant 0 : index
    %c0_242 = arith.constant 0 : index
    %c0_243 = arith.constant 0 : index
    %435 = vector.load %arg3[%c3_240, %c0_241, %c0_242, %c0_243] : memref<4x2x32x1xf32, #tpu.memory_space<vmem>>, vector<1x1x32x1xf32>
    %436 = vector.shape_cast %435 : vector<1x1x32x1xf32> to vector<32x1xf32>
    %437 = vector.broadcast %436 : vector<32x1xf32> to vector<32x128xf32>
    %438 = arith.addf %434, %437 : vector<32x128xf32>
    %cst_244 = arith.constant 0.000000e+00 : f32
    %439 = vector.broadcast %cst_244 : f32 to vector<32x128xf32>
    %440 = arith.maximumf %438, %439 : vector<32x128xf32>
    %c3_245 = arith.constant 3 : index
    %c0_246 = arith.constant 0 : index
    %c0_247 = arith.constant 0 : index
    %c0_248 = arith.constant 0 : index
    %441 = vector.load %arg4[%c3_245, %c0_246, %c0_247, %c0_248] : memref<4x2x16x32xf32, #tpu.memory_space<vmem>>, vector<1x1x16x32xf32>
    %442 = vector.shape_cast %441 : vector<1x1x16x32xf32> to vector<16x32xf32>
    %cst_249 = arith.constant dense<0.000000e+00> : vector<16x128xf32>
    %443 = tpu.matmul %442, %440, %cst_249 {dimension_numbers = #tpu.dot_dimension_numbers<[1], [0], [0], [1], [0, 0, 1, 1], [], []>} : vector<16x32xf32>, vector<32x128xf32>, vector<16x128xf32> -> vector<16x128xf32>
    %c3_250 = arith.constant 3 : index
    %c0_251 = arith.constant 0 : index
    %c0_252 = arith.constant 0 : index
    %c0_253 = arith.constant 0 : index
    %444 = vector.load %arg5[%c3_250, %c0_251, %c0_252, %c0_253] : memref<4x2x16x1xf32, #tpu.memory_space<vmem>>, vector<1x1x16x1xf32>
    %445 = vector.shape_cast %444 : vector<1x1x16x1xf32> to vector<16x1xf32>
    %446 = vector.broadcast %445 : vector<16x1xf32> to vector<16x128xf32>
    %447 = arith.addf %443, %446 : vector<16x128xf32>
    %448 = vector.extract_strided_slice %447 {offsets = [0, 0], sizes = [8, 128], strides = [1, 1]} : vector<16x128xf32> to vector<8x128xf32>
    %cst_254 = arith.constant 5.000000e-01 : f32
    %449 = vector.broadcast %cst_254 : f32 to vector<8x128xf32>
    %450 = arith.mulf %448, %449 : vector<8x128xf32>
    %451 = math.absf %450 : vector<8x128xf32>
    %cst_255 = arith.constant 2.41421366 : f32
    %452 = vector.broadcast %cst_255 : f32 to vector<8x128xf32>
    %453 = arith.cmpf ogt, %451, %452 : vector<8x128xf32>
    %cst_256 = arith.constant -1.000000e+00 : f32
    %454 = vector.broadcast %cst_256 : f32 to vector<8x128xf32>
    %455 = arith.divf %454, %451 : vector<8x128xf32>
    %cst_257 = arith.constant 0.414213568 : f32
    %456 = vector.broadcast %cst_257 : f32 to vector<8x128xf32>
    %457 = arith.cmpf ogt, %451, %456 : vector<8x128xf32>
    %cst_258 = arith.constant 1.000000e+00 : f32
    %458 = vector.broadcast %cst_258 : f32 to vector<8x128xf32>
    %459 = arith.subf %451, %458 : vector<8x128xf32>
    %cst_259 = arith.constant 1.000000e+00 : f32
    %460 = vector.broadcast %cst_259 : f32 to vector<8x128xf32>
    %461 = arith.addf %451, %460 : vector<8x128xf32>
    %462 = arith.divf %459, %461 : vector<8x128xf32>
    %463 = arith.select %457, %462, %451 : vector<8x128xi1>, vector<8x128xf32>
    %464 = arith.select %453, %455, %463 : vector<8x128xi1>, vector<8x128xf32>
    %cst_260 = arith.constant 2.41421366 : f32
    %465 = vector.broadcast %cst_260 : f32 to vector<8x128xf32>
    %466 = arith.cmpf ogt, %451, %465 : vector<8x128xf32>
    %cst_261 = arith.constant 0.414213568 : f32
    %467 = vector.broadcast %cst_261 : f32 to vector<8x128xf32>
    %468 = arith.cmpf ogt, %451, %467 : vector<8x128xf32>
    %cst_262 = arith.constant 0.785398185 : f32
    %cst_263 = arith.constant 0.000000e+00 : f32
    %469 = vector.broadcast %cst_262 : f32 to vector<8x128xf32>
    %470 = vector.broadcast %cst_263 : f32 to vector<8x128xf32>
    %471 = arith.select %468, %469, %470 : vector<8x128xi1>, vector<8x128xf32>
    %cst_264 = arith.constant 1.57079637 : f32
    %472 = vector.broadcast %cst_264 : f32 to vector<8x128xf32>
    %473 = arith.select %466, %472, %471 : vector<8x128xi1>, vector<8x128xf32>
    %474 = arith.mulf %464, %464 : vector<8x128xf32>
    %cst_265 = arith.constant 0.0805374458 : f32
    %475 = vector.broadcast %cst_265 : f32 to vector<8x128xf32>
    %476 = arith.mulf %475, %474 : vector<8x128xf32>
    %cst_266 = arith.constant 0.138776854 : f32
    %477 = vector.broadcast %cst_266 : f32 to vector<8x128xf32>
    %478 = arith.subf %476, %477 : vector<8x128xf32>
    %479 = arith.mulf %478, %474 : vector<8x128xf32>
    %cst_267 = arith.constant 0.199777111 : f32
    %480 = vector.broadcast %cst_267 : f32 to vector<8x128xf32>
    %481 = arith.addf %479, %480 : vector<8x128xf32>
    %482 = arith.mulf %481, %474 : vector<8x128xf32>
    %cst_268 = arith.constant 0.333329499 : f32
    %483 = vector.broadcast %cst_268 : f32 to vector<8x128xf32>
    %484 = arith.subf %482, %483 : vector<8x128xf32>
    %485 = arith.addf %473, %464 : vector<8x128xf32>
    %486 = arith.mulf %464, %474 : vector<8x128xf32>
    %487 = arith.mulf %486, %484 : vector<8x128xf32>
    %488 = arith.addf %485, %487 : vector<8x128xf32>
    %cst_269 = arith.constant 0.000000e+00 : f32
    %489 = vector.broadcast %cst_269 : f32 to vector<8x128xf32>
    %490 = arith.cmpf olt, %450, %489 : vector<8x128xf32>
    %cst_270 = arith.constant 0.000000e+00 : f32
    %491 = vector.broadcast %cst_270 : f32 to vector<8x128xf32>
    %492 = arith.subf %491, %488 : vector<8x128xf32>
    %493 = arith.select %490, %492, %488 : vector<8x128xi1>, vector<8x128xf32>
    %cst_271 = arith.constant 1.272000e+00 : f32
    %494 = vector.broadcast %cst_271 : f32 to vector<8x128xf32>
    %495 = arith.mulf %494, %493 : vector<8x128xf32>
    %496 = math.exp %495 : vector<8x128xf32>
    %497 = arith.mulf %496, %430 : vector<8x128xf32>
    %498 = vector.extract_strided_slice %447 {offsets = [8, 0], sizes = [8, 128], strides = [1, 1]} : vector<16x128xf32> to vector<8x128xf32>
    %499 = arith.addf %497, %498 : vector<8x128xf32>
    %c3_272 = arith.constant 3 : index
    %c1_273 = arith.constant 1 : index
    %c0_274 = arith.constant 0 : index
    %c0_275 = arith.constant 0 : index
    %500 = vector.load %arg2[%c3_272, %c1_273, %c0_274, %c0_275] : memref<4x2x32x8xf32, #tpu.memory_space<vmem>>, vector<1x1x32x8xf32>
    %501 = vector.shape_cast %500 : vector<1x1x32x8xf32> to vector<32x8xf32>
    %cst_276 = arith.constant dense<0.000000e+00> : vector<32x128xf32>
    %502 = tpu.matmul %501, %499, %cst_276 {dimension_numbers = #tpu.dot_dimension_numbers<[1], [0], [0], [1], [0, 0, 1, 1], [], []>} : vector<32x8xf32>, vector<8x128xf32>, vector<32x128xf32> -> vector<32x128xf32>
    %c3_277 = arith.constant 3 : index
    %c1_278 = arith.constant 1 : index
    %c0_279 = arith.constant 0 : index
    %c0_280 = arith.constant 0 : index
    %503 = vector.load %arg3[%c3_277, %c1_278, %c0_279, %c0_280] : memref<4x2x32x1xf32, #tpu.memory_space<vmem>>, vector<1x1x32x1xf32>
    %504 = vector.shape_cast %503 : vector<1x1x32x1xf32> to vector<32x1xf32>
    %505 = vector.broadcast %504 : vector<32x1xf32> to vector<32x128xf32>
    %506 = arith.addf %502, %505 : vector<32x128xf32>
    %cst_281 = arith.constant 0.000000e+00 : f32
    %507 = vector.broadcast %cst_281 : f32 to vector<32x128xf32>
    %508 = arith.maximumf %506, %507 : vector<32x128xf32>
    %c3_282 = arith.constant 3 : index
    %c1_283 = arith.constant 1 : index
    %c0_284 = arith.constant 0 : index
    %c0_285 = arith.constant 0 : index
    %509 = vector.load %arg4[%c3_282, %c1_283, %c0_284, %c0_285] : memref<4x2x16x32xf32, #tpu.memory_space<vmem>>, vector<1x1x16x32xf32>
    %510 = vector.shape_cast %509 : vector<1x1x16x32xf32> to vector<16x32xf32>
    %cst_286 = arith.constant dense<0.000000e+00> : vector<16x128xf32>
    %511 = tpu.matmul %510, %508, %cst_286 {dimension_numbers = #tpu.dot_dimension_numbers<[1], [0], [0], [1], [0, 0, 1, 1], [], []>} : vector<16x32xf32>, vector<32x128xf32>, vector<16x128xf32> -> vector<16x128xf32>
    %c3_287 = arith.constant 3 : index
    %c1_288 = arith.constant 1 : index
    %c0_289 = arith.constant 0 : index
    %c0_290 = arith.constant 0 : index
    %512 = vector.load %arg5[%c3_287, %c1_288, %c0_289, %c0_290] : memref<4x2x16x1xf32, #tpu.memory_space<vmem>>, vector<1x1x16x1xf32>
    %513 = vector.shape_cast %512 : vector<1x1x16x1xf32> to vector<16x1xf32>
    %514 = vector.broadcast %513 : vector<16x1xf32> to vector<16x128xf32>
    %515 = arith.addf %511, %514 : vector<16x128xf32>
    %516 = vector.extract_strided_slice %515 {offsets = [0, 0], sizes = [8, 128], strides = [1, 1]} : vector<16x128xf32> to vector<8x128xf32>
    %cst_291 = arith.constant 5.000000e-01 : f32
    %517 = vector.broadcast %cst_291 : f32 to vector<8x128xf32>
    %518 = arith.mulf %516, %517 : vector<8x128xf32>
    %519 = math.absf %518 : vector<8x128xf32>
    %cst_292 = arith.constant 2.41421366 : f32
    %520 = vector.broadcast %cst_292 : f32 to vector<8x128xf32>
    %521 = arith.cmpf ogt, %519, %520 : vector<8x128xf32>
    %cst_293 = arith.constant -1.000000e+00 : f32
    %522 = vector.broadcast %cst_293 : f32 to vector<8x128xf32>
    %523 = arith.divf %522, %519 : vector<8x128xf32>
    %cst_294 = arith.constant 0.414213568 : f32
    %524 = vector.broadcast %cst_294 : f32 to vector<8x128xf32>
    %525 = arith.cmpf ogt, %519, %524 : vector<8x128xf32>
    %cst_295 = arith.constant 1.000000e+00 : f32
    %526 = vector.broadcast %cst_295 : f32 to vector<8x128xf32>
    %527 = arith.subf %519, %526 : vector<8x128xf32>
    %cst_296 = arith.constant 1.000000e+00 : f32
    %528 = vector.broadcast %cst_296 : f32 to vector<8x128xf32>
    %529 = arith.addf %519, %528 : vector<8x128xf32>
    %530 = arith.divf %527, %529 : vector<8x128xf32>
    %531 = arith.select %525, %530, %519 : vector<8x128xi1>, vector<8x128xf32>
    %532 = arith.select %521, %523, %531 : vector<8x128xi1>, vector<8x128xf32>
    %cst_297 = arith.constant 2.41421366 : f32
    %533 = vector.broadcast %cst_297 : f32 to vector<8x128xf32>
    %534 = arith.cmpf ogt, %519, %533 : vector<8x128xf32>
    %cst_298 = arith.constant 0.414213568 : f32
    %535 = vector.broadcast %cst_298 : f32 to vector<8x128xf32>
    %536 = arith.cmpf ogt, %519, %535 : vector<8x128xf32>
    %cst_299 = arith.constant 0.785398185 : f32
    %cst_300 = arith.constant 0.000000e+00 : f32
    %537 = vector.broadcast %cst_299 : f32 to vector<8x128xf32>
    %538 = vector.broadcast %cst_300 : f32 to vector<8x128xf32>
    %539 = arith.select %536, %537, %538 : vector<8x128xi1>, vector<8x128xf32>
    %cst_301 = arith.constant 1.57079637 : f32
    %540 = vector.broadcast %cst_301 : f32 to vector<8x128xf32>
    %541 = arith.select %534, %540, %539 : vector<8x128xi1>, vector<8x128xf32>
    %542 = arith.mulf %532, %532 : vector<8x128xf32>
    %cst_302 = arith.constant 0.0805374458 : f32
    %543 = vector.broadcast %cst_302 : f32 to vector<8x128xf32>
    %544 = arith.mulf %543, %542 : vector<8x128xf32>
    %cst_303 = arith.constant 0.138776854 : f32
    %545 = vector.broadcast %cst_303 : f32 to vector<8x128xf32>
    %546 = arith.subf %544, %545 : vector<8x128xf32>
    %547 = arith.mulf %546, %542 : vector<8x128xf32>
    %cst_304 = arith.constant 0.199777111 : f32
    %548 = vector.broadcast %cst_304 : f32 to vector<8x128xf32>
    %549 = arith.addf %547, %548 : vector<8x128xf32>
    %550 = arith.mulf %549, %542 : vector<8x128xf32>
    %cst_305 = arith.constant 0.333329499 : f32
    %551 = vector.broadcast %cst_305 : f32 to vector<8x128xf32>
    %552 = arith.subf %550, %551 : vector<8x128xf32>
    %553 = arith.addf %541, %532 : vector<8x128xf32>
    %554 = arith.mulf %532, %542 : vector<8x128xf32>
    %555 = arith.mulf %554, %552 : vector<8x128xf32>
    %556 = arith.addf %553, %555 : vector<8x128xf32>
    %cst_306 = arith.constant 0.000000e+00 : f32
    %557 = vector.broadcast %cst_306 : f32 to vector<8x128xf32>
    %558 = arith.cmpf olt, %518, %557 : vector<8x128xf32>
    %cst_307 = arith.constant 0.000000e+00 : f32
    %559 = vector.broadcast %cst_307 : f32 to vector<8x128xf32>
    %560 = arith.subf %559, %556 : vector<8x128xf32>
    %561 = arith.select %558, %560, %556 : vector<8x128xi1>, vector<8x128xf32>
    %cst_308 = arith.constant 1.272000e+00 : f32
    %562 = vector.broadcast %cst_308 : f32 to vector<8x128xf32>
    %563 = arith.mulf %562, %561 : vector<8x128xf32>
    %564 = math.exp %563 : vector<8x128xf32>
    %565 = arith.mulf %564, %431 : vector<8x128xf32>
    %566 = vector.extract_strided_slice %515 {offsets = [8, 0], sizes = [8, 128], strides = [1, 1]} : vector<16x128xf32> to vector<8x128xf32>
    %567 = arith.addf %565, %566 : vector<8x128xf32>
    %568 = tpu.concatenate %499, %567 in 0 : vector<8x128xf32>, vector<8x128xf32> -> vector<16x128xf32>
    %c0_309 = arith.constant 0 : index
    %c0_310 = arith.constant 0 : index
    %569 = vector.load %arg7[%c0_309, %c0_310] : memref<16x16xf32, #tpu.memory_space<vmem>>, vector<16x16xf32>
    %cst_311 = arith.constant dense<0.000000e+00> : vector<16x128xf32>
    %570 = tpu.matmul %569, %568, %cst_311 {dimension_numbers = #tpu.dot_dimension_numbers<[1], [0], [0], [1], [0, 0, 1, 1], [], []>} : vector<16x16xf32>, vector<16x128xf32>, vector<16x128xf32> -> vector<16x128xf32>
    %c0_312 = arith.constant 0 : index
    %c0_313 = arith.constant 0 : index
    %571 = vector.load %arg8[%c0_312, %c0_313] : memref<16x128xf32, #tpu.memory_space<vmem>>, vector<16x128xf32>
    tpu.vector_store %arg8[%c0_312, %c0_313], %570 {strides = array<i32>} : memref<16x128xf32, #tpu.memory_space<vmem>>, vector<16x128xf32>,
    return
  }
  func.func @transform_0(%arg0: i32) -> (i32, i32) {
    %c0_i32 = arith.constant 0 : i32
    %c0_i32_0 = arith.constant 0 : i32
    return %c0_i32, %arg0 : i32, i32
  }
  func.func @transform_1(%arg0: i32) -> (i32, i32, i32, i32) {
    %c0_i32 = arith.constant 0 : i32
    %c0_i32_0 = arith.constant 0 : i32
    %c0_i32_1 = arith.constant 0 : i32
    %c0_i32_2 = arith.constant 0 : i32
    %c0_i32_3 = arith.constant 0 : i32
    return %c0_i32, %c0_i32_0, %c0_i32_1, %c0_i32_2 : i32, i32, i32, i32
  }
  func.func @transform_2(%arg0: i32) -> (i32, i32, i32, i32) {
    %c0_i32 = arith.constant 0 : i32
    %c0_i32_0 = arith.constant 0 : i32
    %c0_i32_1 = arith.constant 0 : i32
    %c0_i32_2 = arith.constant 0 : i32
    %c0_i32_3 = arith.constant 0 : i32
    return %c0_i32, %c0_i32_0, %c0_i32_1, %c0_i32_2 : i32, i32, i32, i32
  }
  func.func @transform_3(%arg0: i32) -> (i32, i32, i32, i32) {
    %c0_i32 = arith.constant 0 : i32
    %c0_i32_0 = arith.constant 0 : i32
    %c0_i32_1 = arith.constant 0 : i32
    %c0_i32_2 = arith.constant 0 : i32
    %c0_i32_3 = arith.constant 0 : i32
    return %c0_i32, %c0_i32_0, %c0_i32_1, %c0_i32_2 : i32, i32, i32, i32
  }
  func.func @transform_4(%arg0: i32) -> (i32, i32, i32, i32) {
    %c0_i32 = arith.constant 0 : i32
    %c0_i32_0 = arith.constant 0 : i32
    %c0_i32_1 = arith.constant 0 : i32
    %c0_i32_2 = arith.constant 0 : i32
    %c0_i32_3 = arith.constant 0 : i32
    return %c0_i32, %c0_i32_0, %c0_i32_1, %c0_i32_2 : i32, i32, i32, i32
  }
  func.func @transform_5(%arg0: i32) -> (i32, i32, i32) {
    %c0_i32 = arith.constant 0 : i32
    %c0_i32_0 = arith.constant 0 : i32
    %c0_i32_1 = arith.constant 0 : i32
    %c0_i32_2 = arith.constant 0 : i32
    return %c0_i32, %c0_i32_0, %c0_i32_1 : i32, i32, i32
  }
  func.func @transform_6(%arg0: i32) -> (i32, i32) {
    %c0_i32 = arith.constant 0 : i32
    %c0_i32_0 = arith.constant 0 : i32
    %c0_i32_1 = arith.constant 0 : i32
    return %c0_i32, %c0_i32_0 : i32, i32
  }
  func.func @transform_7(%arg0: i32) -> (i32, i32) {
    %c0_i32 = arith.constant 0 : i32
    %c0_i32_0 = arith.constant 0 : i32
    return %c0_i32, %arg0 : i32, i32
  }
}

</mosaic_0001>

<llo_original>
// kernel: _lambda_.1
$region0: #{_lambda_.1}
  #allocation0 [shape = 'u32[]', space=smem, size = 0x4, offset = 0x4, fixed_abs, tag = 'smem constant byte address 0x4 - core index']
  #allocation1 [shape = 'u32[144,128]{1,0:T(1,128)}', space=vmem, size = 0x12000, scoped, tag = 'internal scratch']
  %s0 = inlined_call_operand.hbm [shape: f32[16,128], index: 0, kind: input, shape index: {}]
  %s1 = inlined_call_operand.hbm [shape: f32[4,2,32,8], index: 1, kind: input, shape index: {}]
  %s2 = inlined_call_operand.hbm [shape: f32[4,2,32,1], index: 2, kind: input, shape index: {}]
  %s3 = inlined_call_operand.hbm [shape: f32[4,2,16,32], index: 3, kind: input, shape index: {}]
  %s4 = inlined_call_operand.hbm [shape: f32[4,2,16,1], index: 4, kind: input, shape index: {}]
  %s5 = inlined_call_operand.hbm [shape: f32[4,16,16], index: 5, kind: input, shape index: {}]
  %s6 = inlined_call_operand.hbm [shape: f32[16,16], index: 6, kind: input, shape index: {}]
  %s7 = inlined_call_operand.hbm [shape: f32[16,128], index: 7, kind: output, shape index: {}]
  %s8 = sld [smem:[#allocation0]]
  $region66: #{_lambda_.1} parent=0
    _
  %s10 = ssub.s32 1, %s8
  %s11 = scalar_select 0, %s10, %s8
  $region1: #{_lambda_.1} parent=0
    #allocation2 [shape = 'u8[8192]{0}', space=vmem, size = 0x2000, scoped, tag = 'input window, operand 0, single buffered']
    #allocation3 [shape = 's32[1]{0}', space=sflag, size = 0x4, scoped, tag = 'scoped memory for _lambda_.1']
    #allocation4 [shape = 's32[1]{0}', space=sflag, size = 0x4, scoped, tag = 'scoped memory for _lambda_.1']
    #allocation5 [shape = 'u8[131072]{0}', space=vmem, size = 0x20000, scoped, tag = 'input window, operand 1, single buffered']
    #allocation6 [shape = 's32[1]{0}', space=sflag, size = 0x4, scoped, tag = 'scoped memory for _lambda_.1']
    #allocation7 [shape = 'u8[131072]{0}', space=vmem, size = 0x20000, scoped, tag = 'input window, operand 2, single buffered']
    #allocation8 [shape = 'u8[65536]{0}', space=vmem, size = 0x10000, scoped, tag = 'input window, operand 3, single buffered']
    #allocation9 [shape = 's32[1]{0}', space=sflag, size = 0x4, scoped, tag = 'scoped memory for _lambda_.1']
    #allocation10 [shape = 'u8[65536]{0}', space=vmem, size = 0x10000, scoped, tag = 'input window, operand 4, single buffered']
    #allocation11 [shape = 'u8[32768]{0}', space=vmem, size = 0x8000, scoped, tag = 'input window, operand 5, single buffered']
    #allocation12 [shape = 's32[1]{0}', space=sflag, size = 0x4, scoped, tag = 'scoped memory for _lambda_.1']
    #allocation13 [shape = 'u8[8192]{0}', space=vmem, size = 0x2000, scoped, tag = 'input window, operand 6, single buffered']
    #allocation14 [shape = 'u8[8192]{0}', space=vmem, size = 0x2000, scoped, tag = 'output window, operand 0, single buffered']
    %12 = vsyncpa [#allocation3], 0
    %13 = vsyncpa [#allocation6], 0
    %14 = vsyncpa [#allocation9], 0
    %15 = vsyncpa [#allocation12], 0
    %16 = vsyncpa [#allocation4], 0
    // Predicated region
    $region2: #{_lambda_.1} parent=1 // pred_check
      _
    $region3: #{_lambda_.1} parent=1 // pred_check_branch
      %18 = sbr.rel (0) target = $region5
    $region4: #{_lambda_.1} parent=1 // pred_region
      %s20 = ssub.s32 256, 256
      %21 = vsyncadd [#allocation3], %s20
      %s22 = sshll.u32 [#allocation2], 4
      %s23 = int_to_ptr.vmem [resolvable:$true] %s22
      %28 = dma.hbm_to_vmem [thread:$0]  %s0, 256, %s23, [#allocation3], 128, 128, 8
    $region5: #{_lambda_.1} parent=1 // pred_fallthru
      _
    // Predicated region
    $region6: #{_lambda_.1} parent=1 // pred_check
      _
    $region7: #{_lambda_.1} parent=1 // pred_check_branch
      %30 = sbr.rel (0) target = $region9
    $region8: #{_lambda_.1} parent=1 // pred_region
      %s32 = ssub.s32 4096, 4096
      %33 = vsyncadd [#allocation6], %s32
      %s34 = sshll.u32 [#allocation5], 4
      %s35 = int_to_ptr.vmem [resolvable:$true] %s34
      %40 = dma.hbm_to_vmem [thread:$0]  %s1, 4096, %s35, [#allocation6], 128, 128, 8
    $region9: #{_lambda_.1} parent=1 // pred_fallthru
      _
    // Predicated region
    $region10: #{_lambda_.1} parent=1 // pred_check
      _
    $region11: #{_lambda_.1} parent=1 // pred_check_branch
      %42 = sbr.rel (0) target = $region13
    $region12: #{_lambda_.1} parent=1 // pred_region
      %s44 = ssub.s32 4096, 4096
      %45 = vsyncadd [#allocation6], %s44
      %s46 = sshll.u32 [#allocation7], 4
      %s47 = int_to_ptr.vmem [resolvable:$true] %s46
      %52 = dma.hbm_to_vmem [thread:$0]  %s2, 4096, %s47, [#allocation6], 128, 128, 8
    $region13: #{_lambda_.1} parent=1 // pred_fallthru
      _
    // Predicated region
    $region14: #{_lambda_.1} parent=1 // pred_check
      _
    $region15: #{_lambda_.1} parent=1 // pred_check_branch
      %54 = sbr.rel (0) target = $region17
    $region16: #{_lambda_.1} parent=1 // pred_region
      %s56 = ssub.s32 2048, 2048
      %57 = vsyncadd [#allocation9], %s56
      %s58 = sshll.u32 [#allocation8], 4
      %s59 = int_to_ptr.vmem [resolvable:$true] %s58
      %64 = dma.hbm_to_vmem [thread:$0]  %s3, 2048, %s59, [#allocation9], 128, 128, 8
    $region17: #{_lambda_.1} parent=1 // pred_fallthru
      _
    // Predicated region
    $region18: #{_lambda_.1} parent=1 // pred_check
      _
    $region19: #{_lambda_.1} parent=1 // pred_check_branch
      %66 = sbr.rel (0) target = $region21
    $region20: #{_lambda_.1} parent=1 // pred_region
      %s68 = ssub.s32 2048, 2048
      %69 = vsyncadd [#allocation9], %s68
      %s70 = sshll.u32 [#allocation10], 4
      %s71 = int_to_ptr.vmem [resolvable:$true] %s70
      %76 = dma.hbm_to_vmem [thread:$0]  %s4, 2048, %s71, [#allocation9], 128, 128, 8
    $region21: #{_lambda_.1} parent=1 // pred_fallthru
      _
    // Predicated region
    $region22: #{_lambda_.1} parent=1 // pred_check
      _
    $region23: #{_lambda_.1} parent=1 // pred_check_branch
      %78 = sbr.rel (0) target = $region25
    $region24: #{_lambda_.1} parent=1 // pred_region
      %s80 = ssub.s32 1024, 1024
      %81 = vsyncadd [#allocation12], %s80
      %s82 = sshll.u32 [#allocation11], 4
      %s83 = int_to_ptr.vmem [resolvable:$true] %s82
      %88 = dma.hbm_to_vmem [thread:$0]  %s5, 1024, %s83, [#allocation12], 128, 128, 8
    $region25: #{_lambda_.1} parent=1 // pred_fallthru
      _
    // Predicated region
    $region26: #{_lambda_.1} parent=1 // pred_check
      _
    $region27: #{_lambda_.1} parent=1 // pred_check_branch
      %90 = sbr.rel (0) target = $region29
    $region28: #{_lambda_.1} parent=1 // pred_region
      %s92 = ssub.s32 256, 256
      %93 = vsyncadd [#allocation12], %s92
      %s94 = sshll.u32 [#allocation13], 4
      %s95 = int_to_ptr.vmem [resolvable:$true] %s94
      %100 = dma.hbm_to_vmem [thread:$0]  %s6, 256, %s95, [#allocation12], 128, 128, 8
    $region29: #{_lambda_.1} parent=1 // pred_fallthru
      _
    // Predicated region
    $region30: #{_lambda_.1} parent=1 // pred_check
      _
    $region31: #{_lambda_.1} parent=1 // pred_check_branch
      %102 = sbr.rel (0) target = $region33
    $region32: #{_lambda_.1} parent=1 // pred_region
      %103 = dma.done [#allocation3], 256
    $region33: #{_lambda_.1} parent=1 // pred_fallthru
      _
    // Predicated region
    $region34: #{_lambda_.1} parent=1 // pred_check
      _
    $region35: #{_lambda_.1} parent=1 // pred_check_branch
      %105 = sbr.rel (0) target = $region37
    $region36: #{_lambda_.1} parent=1 // pred_region
      %106 = dma.done [#allocation6], 4096
    $region37: #{_lambda_.1} parent=1 // pred_fallthru
      _
    // Predicated region
    $region38: #{_lambda_.1} parent=1 // pred_check
      _
    $region39: #{_lambda_.1} parent=1 // pred_check_branch
      %108 = sbr.rel (0) target = $region41
    $region40: #{_lambda_.1} parent=1 // pred_region
      %109 = dma.done [#allocation6], 4096
    $region41: #{_lambda_.1} parent=1 // pred_fallthru
      _
    // Predicated region
    $region42: #{_lambda_.1} parent=1 // pred_check
      _
    $region43: #{_lambda_.1} parent=1 // pred_check_branch
      %111 = sbr.rel (0) target = $region45
    $region44: #{_lambda_.1} parent=1 // pred_region
      %112 = dma.done [#allocation9], 2048
    $region45: #{_lambda_.1} parent=1 // pred_fallthru
      _
    // Predicated region
    $region46: #{_lambda_.1} parent=1 // pred_check
      _
    $region47: #{_lambda_.1} parent=1 // pred_check_branch
      %114 = sbr.rel (0) target = $region49
    $region48: #{_lambda_.1} parent=1 // pred_region
      %115 = dma.done [#allocation9], 2048
    $region49: #{_lambda_.1} parent=1 // pred_fallthru
      _
    // Predicated region
    $region50: #{_lambda_.1} parent=1 // pred_check
      _
    $region51: #{_lambda_.1} parent=1 // pred_check_branch
      %117 = sbr.rel (0) target = $region53
    $region52: #{_lambda_.1} parent=1 // pred_region
      %118 = dma.done [#allocation12], 1024
    $region53: #{_lambda_.1} parent=1 // pred_fallthru
      _
    // Predicated region
    $region54: #{_lambda_.1} parent=1 // pred_check
      _
    $region55: #{_lambda_.1} parent=1 // pred_check_branch
      %120 = sbr.rel (0) target = $region57
    $region56: #{_lambda_.1} parent=1 // pred_region
      %121 = dma.done [#allocation12], 256
    $region57: #{_lambda_.1} parent=1 // pred_fallthru
      _
    %v122 = vld [vmem:[#allocation2] sm:$0xff]
    %v123 = vld [vmem:[#allocation2 + $0x8] sm:$0xff]
    %v124 = vld [vmem:[#allocation11] sm:$0xff]
    %v125 = vld [vmem:[#allocation11 + $0x8] sm:$0xff]
    %vm126 = vcmask 130048
    %v128 = vsel %vm126, %v124, 0
    %v131 = vsel %vm126, %v125, 0
    %133 = vmatprep.subr.mxu0 0.0
    %134 = vmatpush1.msra.mxu0 0.0
    %135 = vmatprep.subr.mxu0 0.0
    %136 = vmatpush1.msra.mxu0 0.0
    %137 = vmatprep.subr.mxu0 0.0
    %138 = vmatpush1.msra.mxu0 0.0
    %139 = vmatprep.subr.mxu0 0.0
    %140 = vmatpush1.msra.mxu0 0.0
    %141 = vmatprep.subr.mxu0 0.0
    %142 = vmatpush1.msra.mxu0 0.0
    %143 = vmatprep.subr.mxu0 0.0
    %144 = vmatpush1.msra.mxu0 0.0
    %145 = vmatprep.subr.mxu0 0.0
    %146 = vmatpush1.msra.mxu0 0.0
    %147 = vmatprep.subr.mxu0 0.0
    %148 = vmatpush1.msra.mxu0 0.0
    %149 = vmatprep.subr.mxu0 0.0
    %150 = vmatpush1.msra.mxu0 0.0
    %151 = vmatprep.subr.mxu0 0.0
    %152 = vmatpush1.msra.mxu0 0.0
    %153 = vmatprep.subr.mxu0 0.0
    %154 = vmatpush1.msra.mxu0 0.0
    %155 = vmatprep.subr.mxu0 0.0
    %156 = vmatpush1.msra.mxu0 0.0
    %157 = vmatprep.subr.mxu0 0.0
    %158 = vmatpush1.msra.mxu0 0.0
    %159 = vmatprep.subr.mxu0 0.0
    %160 = vmatpush1.msra.mxu0 0.0
    %161 = vmatprep.subr.mxu0 0.0
    %162 = vmatpush1.msra.mxu0 %v123
    %163 = vmatprep.subr.mxu0 0.0
    %164 = vmatpush1.msra.mxu0 %v122
    %165 = vmatprep.subr.mxu0 0.0
    %166 = vmatpush2.msra.mxu0 0.0
    %167 = vmatprep.subr.mxu0 0.0
    %168 = vmatpush2.msra.mxu0 0.0
    %169 = vmatprep.subr.mxu0 0.0
    %170 = vmatpush2.msra.mxu0 0.0
    %171 = vmatprep.subr.mxu0 0.0
    %172 = vmatpush2.msra.mxu0 0.0
    %173 = vmatprep.subr.mxu0 0.0
    %174 = vmatpush2.msra.mxu0 0.0
    %175 = vmatprep.subr.mxu0 0.0
    %176 = vmatpush2.msra.mxu0 0.0
    %177 = vmatprep.subr.mxu0 0.0
    %178 = vmatpush2.msra.mxu0 0.0
    %179 = vmatprep.subr.mxu0 0.0
    %180 = vmatpush2.msra.mxu0 0.0
    %181 = vmatprep.subr.mxu0 0.0
    %182 = vmatpush2.msra.mxu0 0.0
    %183 = vmatprep.subr.mxu0 0.0
    %184 = vmatpush2.msra.mxu0 0.0
    %185 = vmatprep.subr.mxu0 0.0
    %186 = vmatpush2.msra.mxu0 0.0
    %187 = vmatprep.subr.mxu0 0.0
    %188 = vmatpush2.msra.mxu0 0.0
    %189 = vmatprep.subr.mxu0 0.0
    %190 = vmatpush2.msra.mxu0 0.0
    %191 = vmatprep.subr.mxu0 0.0
    %192 = vmatpush2.msra.mxu0 0.0
    %193 = vmatprep.subr.mxu0 0.0
    %194 = vmatpush2.msra.mxu0 0.0
    %195 = vmatprep.subr.mxu0 0.0
    %196 = vmatpush2.msra.mxu0 0.0
    %197 = vmatprep.mubr.f32.mxu0 0.0
    %198 = vmatmul.mubr.f32.gmra.mxu0 %v128
    %v199 = vpop.f32.mrf.mxu0
    %v200 = vadd.f32 0.0, %v199
    %v201 = vpop.f32.mrf.mxu0
    %202 = vmatprep.mubr.f32.mxu0 0.0
    %203 = vmatmul.mubr.f32.gmra.mxu0 %v131
    %v204 = vpop.f32.mrf.mxu0
    %v205 = vadd.f32 0.0, %v204
    %v206 = vpop.f32.mrf.mxu0
    %207 = vdwg.mxu0
    %v208 = vld [vmem:[#allocation5] sm:$0xff]
    %v209 = vld [vmem:[#allocation5 + $0x8] sm:$0xff]
    %v210 = vld [vmem:[#allocation5 + $0x10] sm:$0xff]
    %v211 = vld [vmem:[#allocation5 + $0x18] sm:$0xff]
    %v212 = vld [vmem:[#allocation7] sm:$0xff]
    %v213 = vld [vmem:[#allocation7 + $0x8] sm:$0xff]
    %v214 = vld [vmem:[#allocation7 + $0x10] sm:$0xff]
    %v215 = vld [vmem:[#allocation7 + $0x18] sm:$0xff]
    %217 = vset.pattern.permute.xlu0 0
    %218 = vperm.xlu0 %217, %v212
    %v219 = vpop.permute.xlu0 %218
    %222 = vset.pattern.permute.xlu0 0
    %223 = vperm.xlu0 %222, %v213
    %v224 = vpop.permute.xlu0 %223
    %227 = vset.pattern.permute.xlu0 0
    %228 = vperm.xlu0 %227, %v214
    %v229 = vpop.permute.xlu0 %228
    %232 = vset.pattern.permute.xlu0 0
    %233 = vperm.xlu0 %232, %v215
    %v234 = vpop.permute.xlu0 %233
    %vm236 = vcmask 64512
    %v238 = vsel %vm236, %v208, 0
    %v241 = vsel %vm236, %v209, 0
    %v244 = vsel %vm236, %v210, 0
    %v247 = vsel %vm236, %v211, 0
    %249 = vmatprep.subr.mxu0 0.0
    %250 = vmatpush1.msra.mxu0 0.0
    %251 = vmatprep.subr.mxu0 0.0
    %252 = vmatpush1.msra.mxu0 0.0
    %253 = vmatprep.subr.mxu0 0.0
    %254 = vmatpush1.msra.mxu0 0.0
    %255 = vmatprep.subr.mxu0 0.0
    %256 = vmatpush1.msra.mxu0 0.0
    %257 = vmatprep.subr.mxu0 0.0
    %258 = vmatpush1.msra.mxu0 0.0
    %259 = vmatprep.subr.mxu0 0.0
    %260 = vmatpush1.msra.mxu0 0.0
    %261 = vmatprep.subr.mxu0 0.0
    %262 = vmatpush1.msra.mxu0 0.0
    %263 = vmatprep.subr.mxu0 0.0
    %264 = vmatpush1.msra.mxu0 0.0
    %265 = vmatprep.subr.mxu0 0.0
    %266 = vmatpush1.msra.mxu0 0.0
    %267 = vmatprep.subr.mxu0 0.0
    %268 = vmatpush1.msra.mxu0 0.0
    %269 = vmatprep.subr.mxu0 0.0
    %270 = vmatpush1.msra.mxu0 0.0
    %271 = vmatprep.subr.mxu0 0.0
    %272 = vmatpush1.msra.mxu0 0.0
    %273 = vmatprep.subr.mxu0 0.0
    %274 = vmatpush1.msra.mxu0 0.0
    %275 = vmatprep.subr.mxu0 0.0
    %276 = vmatpush1.msra.mxu0 0.0
    %277 = vmatprep.subr.mxu0 0.0
    %278 = vmatpush1.msra.mxu0 0.0
    %279 = vmatprep.subr.mxu0 0.0
    %280 = vmatpush1.msra.mxu0 %v205
    %281 = vmatprep.subr.mxu0 0.0
    %282 = vmatpush2.msra.mxu0 0.0
    %283 = vmatprep.subr.mxu0 0.0
    %284 = vmatpush2.msra.mxu0 0.0
    %285 = vmatprep.subr.mxu0 0.0
    %286 = vmatpush2.msra.mxu0 0.0
    %287 = vmatprep.subr.mxu0 0.0
    %288 = vmatpush2.msra.mxu0 0.0
    %289 = vmatprep.subr.mxu0 0.0
    %290 = vmatpush2.msra.mxu0 0.0
    %291 = vmatprep.subr.mxu0 0.0
    %292 = vmatpush2.msra.mxu0 0.0
    %293 = vmatprep.subr.mxu0 0.0
    %294 = vmatpush2.msra.mxu0 0.0
    %295 = vmatprep.subr.mxu0 0.0
    %296 = vmatpush2.msra.mxu0 0.0
    %297 = vmatprep.subr.mxu0 0.0
    %298 = vmatpush2.msra.mxu0 0.0
    %299 = vmatprep.subr.mxu0 0.0
    %300 = vmatpush2.msra.mxu0 0.0
    %301 = vmatprep.subr.mxu0 0.0
    %302 = vmatpush2.msra.mxu0 0.0
    %303 = vmatprep.subr.mxu0 0.0
    %304 = vmatpush2.msra.mxu0 0.0
    %305 = vmatprep.subr.mxu0 0.0
    %306 = vmatpush2.msra.mxu0 0.0
    %307 = vmatprep.subr.mxu0 0.0
    %308 = vmatpush2.msra.mxu0 0.0
    %309 = vmatprep.subr.mxu0 0.0
    %310 = vmatpush2.msra.mxu0 0.0
    %311 = vmatprep.subr.mxu0 0.0
    %312 = vmatpush2.msra.mxu0 0.0
    %313 = vmatprep.mubr.f32.mxu0 0.0
    %314 = vmatmul.mubr.f32.gmra.mxu0 %v238
    %v315 = vpop.f32.mrf.mxu0
    %v316 = vadd.f32 %v219, %v315
    %v317 = vpop.f32.mrf.mxu0
    %318 = vmatprep.mubr.f32.mxu0 0.0
    %319 = vmatmul.mubr.f32.gmra.mxu0 %v241
    %v320 = vpop.f32.mrf.mxu0
    %v321 = vadd.f32 %v224, %v320
    %v322 = vpop.f32.mrf.mxu0
    %323 = vmatprep.mubr.f32.mxu0 0.0
    %324 = vmatmul.mubr.f32.gmra.mxu0 %v244
    %v325 = vpop.f32.mrf.mxu0
    %v326 = vadd.f32 %v229, %v325
    %v327 = vpop.f32.mrf.mxu0
    %328 = vmatprep.mubr.f32.mxu0 0.0
    %329 = vmatmul.mubr.f32.gmra.mxu0 %v247
    %v330 = vpop.f32.mrf.mxu0
    %v331 = vadd.f32 %v234, %v330
    %v332 = vpop.f32.mrf.mxu0
    %333 = vdwg.mxu0
    %v334 = vmax.f32 %v316, 0.0
    %v335 = vmax.f32 %v321, 0.0
    %v336 = vmax.f32 %v326, 0.0
    %v337 = vmax.f32 %v331, 0.0
    %v338 = vld [vmem:[#allocation8] sm:$0xff]
    %v339 = vld [vmem:[#allocation8 + $0x8] sm:$0xff]
    %v340 = vld [vmem:[#allocation10] sm:$0xff]
    %v341 = vld [vmem:[#allocation10 + $0x8] sm:$0xff]
    %343 = vset.pattern.permute.xlu0 0
    %344 = vperm.xlu0 %343, %v340
    %v345 = vpop.permute.xlu0 %344
    %348 = vset.pattern.permute.xlu0 0
    %349 = vperm.xlu0 %348, %v341
    %v350 = vpop.permute.xlu0 %349
    %vm352 = vcmask 261120
    %v354 = vsel %vm352, %v338, 0
    %v357 = vsel %vm352, %v339, 0
    %359 = vmatprep.subr.mxu0 0.0
    %360 = vmatpush1.msra.mxu0 0.0
    %361 = vmatprep.subr.mxu0 0.0
    %362 = vmatpush1.msra.mxu0 0.0
    %363 = vmatprep.subr.mxu0 0.0
    %364 = vmatpush1.msra.mxu0 0.0
    %365 = vmatprep.subr.mxu0 0.0
    %366 = vmatpush1.msra.mxu0 0.0
    %367 = vmatprep.subr.mxu0 0.0
    %368 = vmatpush1.msra.mxu0 0.0
    %369 = vmatprep.subr.mxu0 0.0
    %370 = vmatpush1.msra.mxu0 0.0
    %371 = vmatprep.subr.mxu0 0.0
    %372 = vmatpush1.msra.mxu0 0.0
    %373 = vmatprep.subr.mxu0 0.0
    %374 = vmatpush1.msra.mxu0 0.0
    %375 = vmatprep.subr.mxu0 0.0
    %376 = vmatpush1.msra.mxu0 0.0
    %377 = vmatprep.subr.mxu0 0.0
    %378 = vmatpush1.msra.mxu0 0.0
    %379 = vmatprep.subr.mxu0 0.0
    %380 = vmatpush1.msra.mxu0 0.0
    %381 = vmatprep.subr.mxu0 0.0
    %382 = vmatpush1.msra.mxu0 0.0
    %383 = vmatprep.subr.mxu0 0.0
    %384 = vmatpush1.msra.mxu0 %v337
    %385 = vmatprep.subr.mxu0 0.0
    %386 = vmatpush1.msra.mxu0 %v336
    %387 = vmatprep.subr.mxu0 0.0
    %388 = vmatpush1.msra.mxu0 %v335
    %389 = vmatprep.subr.mxu0 0.0
    %390 = vmatpush1.msra.mxu0 %v334
    %391 = vmatprep.subr.mxu0 0.0
    %392 = vmatpush2.msra.mxu0 0.0
    %393 = vmatprep.subr.mxu0 0.0
    %394 = vmatpush2.msra.mxu0 0.0
    %395 = vmatprep.subr.mxu0 0.0
    %396 = vmatpush2.msra.mxu0 0.0
    %397 = vmatprep.subr.mxu0 0.0
    %398 = vmatpush2.msra.mxu0 0.0
    %399 = vmatprep.subr.mxu0 0.0
    %400 = vmatpush2.msra.mxu0 0.0
    %401 = vmatprep.subr.mxu0 0.0
    %402 = vmatpush2.msra.mxu0 0.0
    %403 = vmatprep.subr.mxu0 0.0
    %404 = vmatpush2.msra.mxu0 0.0
    %405 = vmatprep.subr.mxu0 0.0
    %406 = vmatpush2.msra.mxu0 0.0
    %407 = vmatprep.subr.mxu0 0.0
    %408 = vmatpush2.msra.mxu0 0.0
    %409 = vmatprep.subr.mxu0 0.0
    %410 = vmatpush2.msra.mxu0 0.0
    %411 = vmatprep.subr.mxu0 0.0
    %412 = vmatpush2.msra.mxu0 0.0
    %413 = vmatprep.subr.mxu0 0.0
    %414 = vmatpush2.msra.mxu0 0.0
    %415 = vmatprep.subr.mxu0 0.0
    %416 = vmatpush2.msra.mxu0 0.0
    %417 = vmatprep.subr.mxu0 0.0
    %418 = vmatpush2.msra.mxu0 0.0
    %419 = vmatprep.subr.mxu0 0.0
    %420 = vmatpush2.msra.mxu0 0.0
    %421 = vmatprep.subr.mxu0 0.0
    %422 = vmatpush2.msra.mxu0 0.0
    %423 = vmatprep.mubr.f32.mxu0 0.0
    %424 = vmatmul.mubr.f32.gmra.mxu0 %v354
    %v425 = vpop.f32.mrf.mxu0
    %v426 = vadd.f32 %v345, %v425
    %v427 = vpop.f32.mrf.mxu0
    %428 = vmatprep.mubr.f32.mxu0 0.0
    %429 = vmatmul.mubr.f32.gmra.mxu0 %v357
    %v430 = vpop.f32.mrf.mxu0
    %v431 = vadd.f32 %v350, %v430
    %v432 = vpop.f32.mrf.mxu0
    %433 = vdwg.mxu0
    %v434 = vmul.f32 %v426, 0.5
    %v435 = vand.u32 2147483647, %v434
    %vm436 = vcmp.gt.f32.partialorder %v435, 2.4142137
    %v437 = vrcp.pop %v435
    %v438 = vmul.f32 -1.0, %v437
    %vm439 = vcmp.gt.f32.partialorder %v435, 0.41421357
    %v440 = vsub.f32 %v435, 1.0
    %v441 = vadd.f32 %v435, 1.0
    %v442 = vrcp.pop %v441
    %v443 = vmul.f32 %v440, %v442
    %v444 = vsel %vm439, %v443, %v435
    %v445 = vsel %vm436, %v438, %v444
    %v446 = vsel %vm439, 0.7853982, 0.0
    %v447 = vsel %vm436, 1.5707964, %v446
    %v448 = vmul.f32 %v445, %v445
    %v449 = vmul.f32 %v448, 0.080537446
    %v450 = vsub.f32 %v449, 0.13877685
    %v451 = vmul.f32 %v450, %v448
    %v452 = vadd.f32 %v451, 0.19977711
    %v453 = vmul.f32 %v452, %v448
    %v454 = vsub.f32 %v453, 0.3333295
    %v455 = vadd.f32 %v447, %v445
    %v456 = vmul.f32 %v445, %v448
    %v457 = vmul.f32 %v456, %v454
    %v458 = vadd.f32 %v455, %v457
    %vm459 = vcmp.lt.f32.partialorder %v434, 0.0
    %v460 = vsub.f32 0.0, %v458
    %v461 = vsel %vm459, %v460, %v458
    %v462 = vmul.f32 %v461, 1.272
    %v463 = vmul.f32 %v462, 1.442695
    %v464 = vpow.pop %v463
    %v465 = vmul.f32 %v464, %v200
    %v466 = vadd.f32 %v465, %v431
    %s467 = scalar_lea.vmem [#allocation5], 32
    %v468 = vld [vmem:[%s467] sm:$0xff]
    %v469 = vld [vmem:[%s467 + $0x8] sm:$0xff]
    %v470 = vld [vmem:[%s467 + $0x10] sm:$0xff]
    %v471 = vld [vmem:[%s467 + $0x18] sm:$0xff]
    %s472 = scalar_lea.vmem [#allocation7], 32
    %v473 = vld [vmem:[%s472] sm:$0xff]
    %v474 = vld [vmem:[%s472 + $0x8] sm:$0xff]
    %v475 = vld [vmem:[%s472 + $0x10] sm:$0xff]
    %v476 = vld [vmem:[%s472 + $0x18] sm:$0xff]
    %478 = vset.pattern.permute.xlu0 0
    %479 = vperm.xlu0 %478, %v473
    %v480 = vpop.permute.xlu0 %479
    %483 = vset.pattern.permute.xlu0 0
    %484 = vperm.xlu0 %483, %v474
    %v485 = vpop.permute.xlu0 %484
    %488 = vset.pattern.permute.xlu0 0
    %489 = vperm.xlu0 %488, %v475
    %v490 = vpop.permute.xlu0 %489
    %493 = vset.pattern.permute.xlu0 0
    %494 = vperm.xlu0 %493, %v476
    %v495 = vpop.permute.xlu0 %494
    %v498 = vsel %vm236, %v468, 0
    %v501 = vsel %vm236, %v469, 0
    %v504 = vsel %vm236, %v470, 0
    %v507 = vsel %vm236, %v471, 0
    %509 = vmatprep.subr.mxu0 0.0
    %510 = vmatpush1.msra.mxu0 0.0
    %511 = vmatprep.subr.mxu0 0.0
    %512 = vmatpush1.msra.mxu0 0.0
    %513 = vmatprep.subr.mxu0 0.0
    %514 = vmatpush1.msra.mxu0 0.0
    %515 = vmatprep.subr.mxu0 0.0
    %516 = vmatpush1.msra.mxu0 0.0
    %517 = vmatprep.subr.mxu0 0.0
    %518 = vmatpush1.msra.mxu0 0.0
    %519 = vmatprep.subr.mxu0 0.0
    %520 = vmatpush1.msra.mxu0 0.0
    %521 = vmatprep.subr.mxu0 0.0
    %522 = vmatpush1.msra.mxu0 0.0
    %523 = vmatprep.subr.mxu0 0.0
    %524 = vmatpush1.msra.mxu0 0.0
    %525 = vmatprep.subr.mxu0 0.0
    %526 = vmatpush1.msra.mxu0 0.0
    %527 = vmatprep.subr.mxu0 0.0
    %528 = vmatpush1.msra.mxu0 0.0
    %529 = vmatprep.subr.mxu0 0.0
    %530 = vmatpush1.msra.mxu0 0.0
    %531 = vmatprep.subr.mxu0 0.0
    %532 = vmatpush1.msra.mxu0 0.0
    %533 = vmatprep.subr.mxu0 0.0
    %534 = vmatpush1.msra.mxu0 0.0
    %535 = vmatprep.subr.mxu0 0.0
    %536 = vmatpush1.msra.mxu0 0.0
    %537 = vmatprep.subr.mxu0 0.0
    %538 = vmatpush1.msra.mxu0 0.0
    %539 = vmatprep.subr.mxu0 0.0
    %540 = vmatpush1.msra.mxu0 %v466
    %541 = vmatprep.subr.mxu0 0.0
    %542 = vmatpush2.msra.mxu0 0.0
    %543 = vmatprep.subr.mxu0 0.0
    %544 = vmatpush2.msra.mxu0 0.0
    %545 = vmatprep.subr.mxu0 0.0
    %546 = vmatpush2.msra.mxu0 0.0
    %547 = vmatprep.subr.mxu0 0.0
    %548 = vmatpush2.msra.mxu0 0.0
    %549 = vmatprep.subr.mxu0 0.0
    %550 = vmatpush2.msra.mxu0 0.0
    %551 = vmatprep.subr.mxu0 0.0
    %552 = vmatpush2.msra.mxu0 0.0
    %553 = vmatprep.subr.mxu0 0.0
    %554 = vmatpush2.msra.mxu0 0.0
    %555 = vmatprep.subr.mxu0 0.0
    %556 = vmatpush2.msra.mxu0 0.0
    %557 = vmatprep.subr.mxu0 0.0
    %558 = vmatpush2.msra.mxu0 0.0
    %559 = vmatprep.subr.mxu0 0.0
    %560 = vmatpush2.msra.mxu0 0.0
    %561 = vmatprep.subr.mxu0 0.0
    %562 = vmatpush2.msra.mxu0 0.0
    %563 = vmatprep.subr.mxu0 0.0
    %564 = vmatpush2.msra.mxu0 0.0
    %565 = vmatprep.subr.mxu0 0.0
    %566 = vmatpush2.msra.mxu0 0.0
    %567 = vmatprep.subr.mxu0 0.0
    %568 = vmatpush2.msra.mxu0 0.0
    %569 = vmatprep.subr.mxu0 0.0
    %570 = vmatpush2.msra.mxu0 0.0
    %571 = vmatprep.subr.mxu0 0.0
    %572 = vmatpush2.msra.mxu0 0.0
    %573 = vmatprep.mubr.f32.mxu0 0.0
    %574 = vmatmul.mubr.f32.gmra.mxu0 %v498
    %v575 = vpop.f32.mrf.mxu0
    %v576 = vadd.f32 %v480, %v575
    %v577 = vpop.f32.mrf.mxu0
    %578 = vmatprep.mubr.f32.mxu0 0.0
    %579 = vmatmul.mubr.f32.gmra.mxu0 %v501
    %v580 = vpop.f32.mrf.mxu0
    %v581 = vadd.f32 %v485, %v580
    %v582 = vpop.f32.mrf.mxu0
    %583 = vmatprep.mubr.f32.mxu0 0.0
    %584 = vmatmul.mubr.f32.gmra.mxu0 %v504
    %v585 = vpop.f32.mrf.mxu0
    %v586 = vadd.f32 %v490, %v585
    %v587 = vpop.f32.mrf.mxu0
    %588 = vmatprep.mubr.f32.mxu0 0.0
    %589 = vmatmul.mubr.f32.gmra.mxu0 %v507
    %v590 = vpop.f32.mrf.mxu0
    %v591 = vadd.f32 %v495, %v590
    %v592 = vpop.f32.mrf.mxu0
    %593 = vdwg.mxu0
    %v594 = vmax.f32 %v576, 0.0
    %v595 = vmax.f32 %v581, 0.0
    %v596 = vmax.f32 %v586, 0.0
    %v597 = vmax.f32 %v591, 0.0
    %s598 = scalar_lea.vmem [#allocation8], 16
    %v599 = vld [vmem:[%s598] sm:$0xff]
    %v600 = vld [vmem:[%s598 + $0x8] sm:$0xff]
    %s601 = scalar_lea.vmem [#allocation10], 16
    %v602 = vld [vmem:[%s601] sm:$0xff]
    %v603 = vld [vmem:[%s601 + $0x8] sm:$0xff]
    %605 = vset.pattern.permute.xlu0 0
    %606 = vperm.xlu0 %605, %v602
    %v607 = vpop.permute.xlu0 %606
    %610 = vset.pattern.permute.xlu0 0
    %611 = vperm.xlu0 %610, %v603
    %v612 = vpop.permute.xlu0 %611
    %v615 = vsel %vm352, %v599, 0
    %v618 = vsel %vm352, %v600, 0
    %620 = vmatprep.subr.mxu0 0.0
    %621 = vmatpush1.msra.mxu0 0.0
    %622 = vmatprep.subr.mxu0 0.0
    %623 = vmatpush1.msra.mxu0 0.0
    %624 = vmatprep.subr.mxu0 0.0
    %625 = vmatpush1.msra.mxu0 0.0
    %626 = vmatprep.subr.mxu0 0.0
    %627 = vmatpush1.msra.mxu0 0.0
    %628 = vmatprep.subr.mxu0 0.0
    %629 = vmatpush1.msra.mxu0 0.0
    %630 = vmatprep.subr.mxu0 0.0
    %631 = vmatpush1.msra.mxu0 0.0
    %632 = vmatprep.subr.mxu0 0.0
    %633 = vmatpush1.msra.mxu0 0.0
    %634 = vmatprep.subr.mxu0 0.0
    %635 = vmatpush1.msra.mxu0 0.0
    %636 = vmatprep.subr.mxu0 0.0
    %637 = vmatpush1.msra.mxu0 0.0
    %638 = vmatprep.subr.mxu0 0.0
    %639 = vmatpush1.msra.mxu0 0.0
    %640 = vmatprep.subr.mxu0 0.0
    %641 = vmatpush1.msra.mxu0 0.0
    %642 = vmatprep.subr.mxu0 0.0
    %643 = vmatpush1.msra.mxu0 0.0
    %644 = vmatprep.subr.mxu0 0.0
    %645 = vmatpush1.msra.mxu0 %v597
    %646 = vmatprep.subr.mxu0 0.0
    %647 = vmatpush1.msra.mxu0 %v596
    %648 = vmatprep.subr.mxu0 0.0
    %649 = vmatpush1.msra.mxu0 %v595
    %650 = vmatprep.subr.mxu0 0.0
    %651 = vmatpush1.msra.mxu0 %v594
    %652 = vmatprep.subr.mxu0 0.0
    %653 = vmatpush2.msra.mxu0 0.0
    %654 = vmatprep.subr.mxu0 0.0
    %655 = vmatpush2.msra.mxu0 0.0
    %656 = vmatprep.subr.mxu0 0.0
    %657 = vmatpush2.msra.mxu0 0.0
    %658 = vmatprep.subr.mxu0 0.0
    %659 = vmatpush2.msra.mxu0 0.0
    %660 = vmatprep.subr.mxu0 0.0
    %661 = vmatpush2.msra.mxu0 0.0
    %662 = vmatprep.subr.mxu0 0.0
    %663 = vmatpush2.msra.mxu0 0.0
    %664 = vmatprep.subr.mxu0 0.0
    %665 = vmatpush2.msra.mxu0 0.0
    %666 = vmatprep.subr.mxu0 0.0
    %667 = vmatpush2.msra.mxu0 0.0
    %668 = vmatprep.subr.mxu0 0.0
    %669 = vmatpush2.msra.mxu0 0.0
    %670 = vmatprep.subr.mxu0 0.0
    %671 = vmatpush2.msra.mxu0 0.0
    %672 = vmatprep.subr.mxu0 0.0
    %673 = vmatpush2.msra.mxu0 0.0
    %674 = vmatprep.subr.mxu0 0.0
    %675 = vmatpush2.msra.mxu0 0.0
    %676 = vmatprep.subr.mxu0 0.0
    %677 = vmatpush2.msra.mxu0 0.0
    %678 = vmatprep.subr.mxu0 0.0
    %679 = vmatpush2.msra.mxu0 0.0
    %680 = vmatprep.subr.mxu0 0.0
    %681 = vmatpush2.msra.mxu0 0.0
    %682 = vmatprep.subr.mxu0 0.0
    %683 = vmatpush2.msra.mxu0 0.0
    %684 = vmatprep.mubr.f32.mxu0 0.0
    %685 = vmatmul.mubr.f32.gmra.mxu0 %v615
    %v686 = vpop.f32.mrf.mxu0
    %v687 = vadd.f32 %v607, %v686
    %v688 = vpop.f32.mrf.mxu0
    %689 = vmatprep.mubr.f32.mxu0 0.0
    %690 = vmatmul.mubr.f32.gmra.mxu0 %v618
    %v691 = vpop.f32.mrf.mxu0
    %v692 = vadd.f32 %v612, %v691
    %v693 = vpop.f32.mrf.mxu0
    %694 = vdwg.mxu0
    %v695 = vmul.f32 %v687, 0.5
    %v696 = vand.u32 2147483647, %v695
    %vm697 = vcmp.gt.f32.partialorder %v696, 2.4142137
    %v698 = vrcp.pop %v696
    %v699 = vmul.f32 -1.0, %v698
    %vm700 = vcmp.gt.f32.partialorder %v696, 0.41421357
    %v701 = vsub.f32 %v696, 1.0
    %v702 = vadd.f32 %v696, 1.0
    %v703 = vrcp.pop %v702
    %v704 = vmul.f32 %v701, %v703
    %v705 = vsel %vm700, %v704, %v696
    %v706 = vsel %vm697, %v699, %v705
    %v707 = vsel %vm700, 0.7853982, 0.0
    %v708 = vsel %vm697, 1.5707964, %v707
    %v709 = vmul.f32 %v706, %v706
    %v710 = vmul.f32 %v709, 0.080537446
    %v711 = vsub.f32 %v710, 0.13877685
    %v712 = vmul.f32 %v711, %v709
    %v713 = vadd.f32 %v712, 0.19977711
    %v714 = vmul.f32 %v713, %v709
    %v715 = vsub.f32 %v714, 0.3333295
    %v716 = vadd.f32 %v708, %v706
    %v717 = vmul.f32 %v706, %v709
    %v718 = vmul.f32 %v717, %v715
    %v719 = vadd.f32 %v716, %v718
    %vm720 = vcmp.lt.f32.partialorder %v695, 0.0
    %v721 = vsub.f32 0.0, %v719
    %v722 = vsel %vm720, %v721, %v719
    %v723 = vmul.f32 %v722, 1.272
    %v724 = vmul.f32 %v723, 1.442695
    %v725 = vpow.pop %v724
    %v726 = vmul.f32 %v725, %v205
    %v727 = vadd.f32 %v726, %v692
    %s728 = scalar_lea.vmem [#allocation11], 16
    %v729 = vld [vmem:[%s728] sm:$0xff]
    %v730 = vld [vmem:[%s728 + $0x8] sm:$0xff]
    %v732 = vsel %vm126, %v729, 0
    %v735 = vsel %vm126, %v730, 0
    %737 = vmatprep.subr.mxu0 0.0
    %738 = vmatpush1.msra.mxu0 0.0
    %739 = vmatprep.subr.mxu0 0.0
    %740 = vmatpush1.msra.mxu0 0.0
    %741 = vmatprep.subr.mxu0 0.0
    %742 = vmatpush1.msra.mxu0 0.0
    %743 = vmatprep.subr.mxu0 0.0
    %744 = vmatpush1.msra.mxu0 0.0
    %745 = vmatprep.subr.mxu0 0.0
    %746 = vmatpush1.msra.mxu0 0.0
    %747 = vmatprep.subr.mxu0 0.0
    %748 = vmatpush1.msra.mxu0 0.0
    %749 = vmatprep.subr.mxu0 0.0
    %750 = vmatpush1.msra.mxu0 0.0
    %751 = vmatprep.subr.mxu0 0.0
    %752 = vmatpush1.msra.mxu0 0.0
    %753 = vmatprep.subr.mxu0 0.0
    %754 = vmatpush1.msra.mxu0 0.0
    %755 = vmatprep.subr.mxu0 0.0
    %756 = vmatpush1.msra.mxu0 0.0
    %757 = vmatprep.subr.mxu0 0.0
    %758 = vmatpush1.msra.mxu0 0.0
    %759 = vmatprep.subr.mxu0 0.0
    %760 = vmatpush1.msra.mxu0 0.0
    %761 = vmatprep.subr.mxu0 0.0
    %762 = vmatpush1.msra.mxu0 0.0
    %763 = vmatprep.subr.mxu0 0.0
    %764 = vmatpush1.msra.mxu0 0.0
    %765 = vmatprep.subr.mxu0 0.0
    %766 = vmatpush1.msra.mxu0 %v727
    %767 = vmatprep.subr.mxu0 0.0
    %768 = vmatpush1.msra.mxu0 %v466
    %769 = vmatprep.subr.mxu0 0.0
    %770 = vmatpush2.msra.mxu0 0.0
    %771 = vmatprep.subr.mxu0 0.0
    %772 = vmatpush2.msra.mxu0 0.0
    %773 = vmatprep.subr.mxu0 0.0
    %774 = vmatpush2.msra.mxu0 0.0
    %775 = vmatprep.subr.mxu0 0.0
    %776 = vmatpush2.msra.mxu0 0.0
    %777 = vmatprep.subr.mxu0 0.0
    %778 = vmatpush2.msra.mxu0 0.0
    %779 = vmatprep.subr.mxu0 0.0
    %780 = vmatpush2.msra.mxu0 0.0
    %781 = vmatprep.subr.mxu0 0.0
    %782 = vmatpush2.msra.mxu0 0.0
    %783 = vmatprep.subr.mxu0 0.0
    %784 = vmatpush2.msra.mxu0 0.0
    %785 = vmatprep.subr.mxu0 0.0
    %786 = vmatpush2.msra.mxu0 0.0
    %787 = vmatprep.subr.mxu0 0.0
    %788 = vmatpush2.msra.mxu0 0.0
    %789 = vmatprep.subr.mxu0 0.0
    %790 = vmatpush2.msra.mxu0 0.0
    %791 = vmatprep.subr.mxu0 0.0
    %792 = vmatpush2.msra.mxu0 0.0
    %793 = vmatprep.subr.mxu0 0.0
    %794 = vmatpush2.msra.mxu0 0.0
    %795 = vmatprep.subr.mxu0 0.0
    %796 = vmatpush2.msra.mxu0 0.0
    %797 = vmatprep.subr.mxu0 0.0
    %798 = vmatpush2.msra.mxu0 0.0
    %799 = vmatprep.subr.mxu0 0.0
    %800 = vmatpush2.msra.mxu0 0.0
    %801 = vmatprep.mubr.f32.mxu0 0.0
    %802 = vmatmul.mubr.f32.gmra.mxu0 %v732
    %v803 = vpop.f32.mrf.mxu0
    %v804 = vadd.f32 0.0, %v803
    %v805 = vpop.f32.mrf.mxu0
    %806 = vmatprep.mubr.f32.mxu0 0.0
    %807 = vmatmul.mubr.f32.gmra.mxu0 %v735
    %v808 = vpop.f32.mrf.mxu0
    %v809 = vadd.f32 0.0, %v808
    %v810 = vpop.f32.mrf.mxu0
    %811 = vdwg.mxu0
    %s812 = scalar_lea.vmem [#allocation5], 64
    %v813 = vld [vmem:[%s812] sm:$0xff]
    %v814 = vld [vmem:[%s812 + $0x8] sm:$0xff]
    %v815 = vld [vmem:[%s812 + $0x10] sm:$0xff]
    %v816 = vld [vmem:[%s812 + $0x18] sm:$0xff]
    %s817 = scalar_lea.vmem [#allocation7], 64
    %v818 = vld [vmem:[%s817] sm:$0xff]
    %v819 = vld [vmem:[%s817 + $0x8] sm:$0xff]
    %v820 = vld [vmem:[%s817 + $0x10] sm:$0xff]
    %v821 = vld [vmem:[%s817 + $0x18] sm:$0xff]
    %823 = vset.pattern.permute.xlu0 0
    %824 = vperm.xlu0 %823, %v818
    %v825 = vpop.permute.xlu0 %824
    %828 = vset.pattern.permute.xlu0 0
    %829 = vperm.xlu0 %828, %v819
    %v830 = vpop.permute.xlu0 %829
    %833 = vset.pattern.permute.xlu0 0
    %834 = vperm.xlu0 %833, %v820
    %v835 = vpop.permute.xlu0 %834
    %838 = vset.pattern.permute.xlu0 0
    %839 = vperm.xlu0 %838, %v821
    %v840 = vpop.permute.xlu0 %839
    %v843 = vsel %vm236, %v813, 0
    %v846 = vsel %vm236, %v814, 0
    %v849 = vsel %vm236, %v815, 0
    %v852 = vsel %vm236, %v816, 0
    %854 = vmatprep.subr.mxu0 0.0
    %855 = vmatpush1.msra.mxu0 0.0
    %856 = vmatprep.subr.mxu0 0.0
    %857 = vmatpush1.msra.mxu0 0.0
    %858 = vmatprep.subr.mxu0 0.0
    %859 = vmatpush1.msra.mxu0 0.0
    %860 = vmatprep.subr.mxu0 0.0
    %861 = vmatpush1.msra.mxu0 0.0
    %862 = vmatprep.subr.mxu0 0.0
    %863 = vmatpush1.msra.mxu0 0.0
    %864 = vmatprep.subr.mxu0 0.0
    %865 = vmatpush1.msra.mxu0 0.0
    %866 = vmatprep.subr.mxu0 0.0
    %867 = vmatpush1.msra.mxu0 0.0
    %868 = vmatprep.subr.mxu0 0.0
    %869 = vmatpush1.msra.mxu0 0.0
    %870 = vmatprep.subr.mxu0 0.0
    %871 = vmatpush1.msra.mxu0 0.0
    %872 = vmatprep.subr.mxu0 0.0
    %873 = vmatpush1.msra.mxu0 0.0
    %874 = vmatprep.subr.mxu0 0.0
    %875 = vmatpush1.msra.mxu0 0.0
    %876 = vmatprep.subr.mxu0 0.0
    %877 = vmatpush1.msra.mxu0 0.0
    %878 = vmatprep.subr.mxu0 0.0
    %879 = vmatpush1.msra.mxu0 0.0
    %880 = vmatprep.subr.mxu0 0.0
    %881 = vmatpush1.msra.mxu0 0.0
    %882 = vmatprep.subr.mxu0 0.0
    %883 = vmatpush1.msra.mxu0 0.0
    %884 = vmatprep.subr.mxu0 0.0
    %885 = vmatpush1.msra.mxu0 %v809
    %886 = vmatprep.subr.mxu0 0.0
    %887 = vmatpush2.msra.mxu0 0.0
    %888 = vmatprep.subr.mxu0 0.0
    %889 = vmatpush2.msra.mxu0 0.0
    %890 = vmatprep.subr.mxu0 0.0
    %891 = vmatpush2.msra.mxu0 0.0
    %892 = vmatprep.subr.mxu0 0.0
    %893 = vmatpush2.msra.mxu0 0.0
    %894 = vmatprep.subr.mxu0 0.0
    %895 = vmatpush2.msra.mxu0 0.0
    %896 = vmatprep.subr.mxu0 0.0
    %897 = vmatpush2.msra.mxu0 0.0
    %898 = vmatprep.subr.mxu0 0.0
    %899 = vmatpush2.msra.mxu0 0.0
    %900 = vmatprep.subr.mxu0 0.0
    %901 = vmatpush2.msra.mxu0 0.0
    %902 = vmatprep.subr.mxu0 0.0
    %903 = vmatpush2.msra.mxu0 0.0
    %904 = vmatprep.subr.mxu0 0.0
    %905 = vmatpush2.msra.mxu0 0.0
    %906 = vmatprep.subr.mxu0 0.0
    %907 = vmatpush2.msra.mxu0 0.0
    %908 = vmatprep.subr.mxu0 0.0
    %909 = vmatpush2.msra.mxu0 0.0
    %910 = vmatprep.subr.mxu0 0.0
    %911 = vmatpush2.msra.mxu0 0.0
    %912 = vmatprep.subr.mxu0 0.0
    %913 = vmatpush2.msra.mxu0 0.0
    %914 = vmatprep.subr.mxu0 0.0
    %915 = vmatpush2.msra.mxu0 0.0
    %916 = vmatprep.subr.mxu0 0.0
    %917 = vmatpush2.msra.mxu0 0.0
    %918 = vmatprep.mubr.f32.mxu0 0.0
    %919 = vmatmul.mubr.f32.gmra.mxu0 %v843
    %v920 = vpop.f32.mrf.mxu0
    %v921 = vadd.f32 %v825, %v920
    %v922 = vpop.f32.mrf.mxu0
    %923 = vmatprep.mubr.f32.mxu0 0.0
    %924 = vmatmul.mubr.f32.gmra.mxu0 %v846
    %v925 = vpop.f32.mrf.mxu0
    %v926 = vadd.f32 %v830, %v925
    %v927 = vpop.f32.mrf.mxu0
    %928 = vmatprep.mubr.f32.mxu0 0.0
    %929 = vmatmul.mubr.f32.gmra.mxu0 %v849
    %v930 = vpop.f32.mrf.mxu0
    %v931 = vadd.f32 %v835, %v930
    %v932 = vpop.f32.mrf.mxu0
    %933 = vmatprep.mubr.f32.mxu0 0.0
    %934 = vmatmul.mubr.f32.gmra.mxu0 %v852
    %v935 = vpop.f32.mrf.mxu0
    %v936 = vadd.f32 %v840, %v935
    %v937 = vpop.f32.mrf.mxu0
    %938 = vdwg.mxu0
    %v939 = vmax.f32 %v921, 0.0
    %v940 = vmax.f32 %v926, 0.0
    %v941 = vmax.f32 %v931, 0.0
    %v942 = vmax.f32 %v936, 0.0
    %s943 = scalar_lea.vmem [#allocation8], 32
    %v944 = vld [vmem:[%s943] sm:$0xff]
    %v945 = vld [vmem:[%s943 + $0x8] sm:$0xff]
    %s946 = scalar_lea.vmem [#allocation10], 32
    %v947 = vld [vmem:[%s946] sm:$0xff]
    %v948 = vld [vmem:[%s946 + $0x8] sm:$0xff]
    %950 = vset.pattern.permute.xlu0 0
    %951 = vperm.xlu0 %950, %v947
    %v952 = vpop.permute.xlu0 %951
    %955 = vset.pattern.permute.xlu0 0
    %956 = vperm.xlu0 %955, %v948
    %v957 = vpop.permute.xlu0 %956
    %v960 = vsel %vm352, %v944, 0
    %v963 = vsel %vm352, %v945, 0
    %965 = vmatprep.subr.mxu0 0.0
    %966 = vmatpush1.msra.mxu0 0.0
    %967 = vmatprep.subr.mxu0 0.0
    %968 = vmatpush1.msra.mxu0 0.0
    %969 = vmatprep.subr.mxu0 0.0
    %970 = vmatpush1.msra.mxu0 0.0
    %971 = vmatprep.subr.mxu0 0.0
    %972 = vmatpush1.msra.mxu0 0.0
    %973 = vmatprep.subr.mxu0 0.0
    %974 = vmatpush1.msra.mxu0 0.0
    %975 = vmatprep.subr.mxu0 0.0
    %976 = vmatpush1.msra.mxu0 0.0
    %977 = vmatprep.subr.mxu0 0.0
    %978 = vmatpush1.msra.mxu0 0.0
    %979 = vmatprep.subr.mxu0 0.0
    %980 = vmatpush1.msra.mxu0 0.0
    %981 = vmatprep.subr.mxu0 0.0
    %982 = vmatpush1.msra.mxu0 0.0
    %983 = vmatprep.subr.mxu0 0.0
    %984 = vmatpush1.msra.mxu0 0.0
    %985 = vmatprep.subr.mxu0 0.0
    %986 = vmatpush1.msra.mxu0 0.0
    %987 = vmatprep.subr.mxu0 0.0
    %988 = vmatpush1.msra.mxu0 0.0
    %989 = vmatprep.subr.mxu0 0.0
    %990 = vmatpush1.msra.mxu0 %v942
    %991 = vmatprep.subr.mxu0 0.0
    %992 = vmatpush1.msra.mxu0 %v941
    %993 = vmatprep.subr.mxu0 0.0
    %994 = vmatpush1.msra.mxu0 %v940
    %995 = vmatprep.subr.mxu0 0.0
    %996 = vmatpush1.msra.mxu0 %v939
    %997 = vmatprep.subr.mxu0 0.0
    %998 = vmatpush2.msra.mxu0 0.0
    %999 = vmatprep.subr.mxu0 0.0
    %1000 = vmatpush2.msra.mxu0 0.0
    %1001 = vmatprep.subr.mxu0 0.0
    %1002 = vmatpush2.msra.mxu0 0.0
    %1003 = vmatprep.subr.mxu0 0.0
    %1004 = vmatpush2.msra.mxu0 0.0
    %1005 = vmatprep.subr.mxu0 0.0
    %1006 = vmatpush2.msra.mxu0 0.0
    %1007 = vmatprep.subr.mxu0 0.0
    %1008 = vmatpush2.msra.mxu0 0.0
    %1009 = vmatprep.subr.mxu0 0.0
    %1010 = vmatpush2.msra.mxu0 0.0
    %1011 = vmatprep.subr.mxu0 0.0
    %1012 = vmatpush2.msra.mxu0 0.0
    %1013 = vmatprep.subr.mxu0 0.0
    %1014 = vmatpush2.msra.mxu0 0.0
    %1015 = vmatprep.subr.mxu0 0.0
    %1016 = vmatpush2.msra.mxu0 0.0
    %1017 = vmatprep.subr.mxu0 0.0
    %1018 = vmatpush2.msra.mxu0 0.0
    %1019 = vmatprep.subr.mxu0 0.0
    %1020 = vmatpush2.msra.mxu0 0.0
    %1021 = vmatprep.subr.mxu0 0.0
    %1022 = vmatpush2.msra.mxu0 0.0
    %1023 = vmatprep.subr.mxu0 0.0
    %1024 = vmatpush2.msra.mxu0 0.0
    %1025 = vmatprep.subr.mxu0 0.0
    %1026 = vmatpush2.msra.mxu0 0.0
    %1027 = vmatprep.subr.mxu0 0.0
    %1028 = vmatpush2.msra.mxu0 0.0
    %1029 = vmatprep.mubr.f32.mxu0 0.0
    %1030 = vmatmul.mubr.f32.gmra.mxu0 %v960
    %v1031 = vpop.f32.mrf.mxu0
    %v1032 = vadd.f32 %v952, %v1031
    %v1033 = vpop.f32.mrf.mxu0
    %1034 = vmatprep.mubr.f32.mxu0 0.0
    %1035 = vmatmul.mubr.f32.gmra.mxu0 %v963
    %v1036 = vpop.f32.mrf.mxu0
    %v1037 = vadd.f32 %v957, %v1036
    %v1038 = vpop.f32.mrf.mxu0
    %1039 = vdwg.mxu0
    %v1040 = vmul.f32 %v1032, 0.5
    %v1041 = vand.u32 2147483647, %v1040
    %vm1042 = vcmp.gt.f32.partialorder %v1041, 2.4142137
    %v1043 = vrcp.pop %v1041
    %v1044 = vmul.f32 -1.0, %v1043
    %vm1045 = vcmp.gt.f32.partialorder %v1041, 0.41421357
    %v1046 = vsub.f32 %v1041, 1.0
    %v1047 = vadd.f32 %v1041, 1.0
    %v1048 = vrcp.pop %v1047
    %v1049 = vmul.f32 %v1046, %v1048
    %v1050 = vsel %vm1045, %v1049, %v1041
    %v1051 = vsel %vm1042, %v1044, %v1050
    %v1052 = vsel %vm1045, 0.7853982, 0.0
    %v1053 = vsel %vm1042, 1.5707964, %v1052
    %v1054 = vmul.f32 %v1051, %v1051
    %v1055 = vmul.f32 %v1054, 0.080537446
    %v1056 = vsub.f32 %v1055, 0.13877685
    %v1057 = vmul.f32 %v1056, %v1054
    %v1058 = vadd.f32 %v1057, 0.19977711
    %v1059 = vmul.f32 %v1058, %v1054
    %v1060 = vsub.f32 %v1059, 0.3333295
    %v1061 = vadd.f32 %v1053, %v1051
    %v1062 = vmul.f32 %v1051, %v1054
    %v1063 = vmul.f32 %v1062, %v1060
    %v1064 = vadd.f32 %v1061, %v1063
    %vm1065 = vcmp.lt.f32.partialorder %v1040, 0.0
    %v1066 = vsub.f32 0.0, %v1064
    %v1067 = vsel %vm1065, %v1066, %v1064
    %v1068 = vmul.f32 %v1067, 1.272
    %v1069 = vmul.f32 %v1068, 1.442695
    %v1070 = vpow.pop %v1069
    %v1071 = vmul.f32 %v1070, %v804
    %v1072 = vadd.f32 %v1071, %v1037
    %s1073 = scalar_lea.vmem [#allocation5], 96
    %v1074 = vld [vmem:[%s1073] sm:$0xff]
    %v1075 = vld [vmem:[%s1073 + $0x8] sm:$0xff]
    %v1076 = vld [vmem:[%s1073 + $0x10] sm:$0xff]
    %v1077 = vld [vmem:[%s1073 + $0x18] sm:$0xff]
    %s1078 = scalar_lea.vmem [#allocation7], 96
    %v1079 = vld [vmem:[%s1078] sm:$0xff]
    %v1080 = vld [vmem:[%s1078 + $0x8] sm:$0xff]
    %v1081 = vld [vmem:[%s1078 + $0x10] sm:$0xff]
    %v1082 = vld [vmem:[%s1078 + $0x18] sm:$0xff]
    %1084 = vset.pattern.permute.xlu0 0
    %1085 = vperm.xlu0 %1084, %v1079
    %v1086 = vpop.permute.xlu0 %1085
    %1089 = vset.pattern.permute.xlu0 0
    %1090 = vperm.xlu0 %1089, %v1080
    %v1091 = vpop.permute.xlu0 %1090
    %1094 = vset.pattern.permute.xlu0 0
    %1095 = vperm.xlu0 %1094, %v1081
    %v1096 = vpop.permute.xlu0 %1095
    %1099 = vset.pattern.permute.xlu0 0
    %1100 = vperm.xlu0 %1099, %v1082
    %v1101 = vpop.permute.xlu0 %1100
    %v1104 = vsel %vm236, %v1074, 0
    %v1107 = vsel %vm236, %v1075, 0
    %v1110 = vsel %vm236, %v1076, 0
    %v1113 = vsel %vm236, %v1077, 0
    %1115 = vmatprep.subr.mxu0 0.0
    %1116 = vmatpush1.msra.mxu0 0.0
    %1117 = vmatprep.subr.mxu0 0.0
    %1118 = vmatpush1.msra.mxu0 0.0
    %1119 = vmatprep.subr.mxu0 0.0
    %1120 = vmatpush1.msra.mxu0 0.0
    %1121 = vmatprep.subr.mxu0 0.0
    %1122 = vmatpush1.msra.mxu0 0.0
    %1123 = vmatprep.subr.mxu0 0.0
    %1124 = vmatpush1.msra.mxu0 0.0
    %1125 = vmatprep.subr.mxu0 0.0
    %1126 = vmatpush1.msra.mxu0 0.0
    %1127 = vmatprep.subr.mxu0 0.0
    %1128 = vmatpush1.msra.mxu0 0.0
    %1129 = vmatprep.subr.mxu0 0.0
    %1130 = vmatpush1.msra.mxu0 0.0
    %1131 = vmatprep.subr.mxu0 0.0
    %1132 = vmatpush1.msra.mxu0 0.0
    %1133 = vmatprep.subr.mxu0 0.0
    %1134 = vmatpush1.msra.mxu0 0.0
    %1135 = vmatprep.subr.mxu0 0.0
    %1136 = vmatpush1.msra.mxu0 0.0
    %1137 = vmatprep.subr.mxu0 0.0
    %1138 = vmatpush1.msra.mxu0 0.0
    %1139 = vmatprep.subr.mxu0 0.0
    %1140 = vmatpush1.msra.mxu0 0.0
    %1141 = vmatprep.subr.mxu0 0.0
    %1142 = vmatpush1.msra.mxu0 0.0
    %1143 = vmatprep.subr.mxu0 0.0
    %1144 = vmatpush1.msra.mxu0 0.0
    %1145 = vmatprep.subr.mxu0 0.0
    %1146 = vmatpush1.msra.mxu0 %v1072
    %1147 = vmatprep.subr.mxu0 0.0
    %1148 = vmatpush2.msra.mxu0 0.0
    %1149 = vmatprep.subr.mxu0 0.0
    %1150 = vmatpush2.msra.mxu0 0.0
    %1151 = vmatprep.subr.mxu0 0.0
    %1152 = vmatpush2.msra.mxu0 0.0
    %1153 = vmatprep.subr.mxu0 0.0
    %1154 = vmatpush2.msra.mxu0 0.0
    %1155 = vmatprep.subr.mxu0 0.0
    %1156 = vmatpush2.msra.mxu0 0.0
    %1157 = vmatprep.subr.mxu0 0.0
    %1158 = vmatpush2.msra.mxu0 0.0
    %1159 = vmatprep.subr.mxu0 0.0
    %1160 = vmatpush2.msra.mxu0 0.0
    %1161 = vmatprep.subr.mxu0 0.0
    %1162 = vmatpush2.msra.mxu0 0.0
    %1163 = vmatprep.subr.mxu0 0.0
    %1164 = vmatpush2.msra.mxu0 0.0
    %1165 = vmatprep.subr.mxu0 0.0
    %1166 = vmatpush2.msra.mxu0 0.0
    %1167 = vmatprep.subr.mxu0 0.0
    %1168 = vmatpush2.msra.mxu0 0.0
    %1169 = vmatprep.subr.mxu0 0.0
    %1170 = vmatpush2.msra.mxu0 0.0
    %1171 = vmatprep.subr.mxu0 0.0
    %1172 = vmatpush2.msra.mxu0 0.0
    %1173 = vmatprep.subr.mxu0 0.0
    %1174 = vmatpush2.msra.mxu0 0.0
    %1175 = vmatprep.subr.mxu0 0.0
    %1176 = vmatpush2.msra.mxu0 0.0
    %1177 = vmatprep.subr.mxu0 0.0
    %1178 = vmatpush2.msra.mxu0 0.0
    %1179 = vmatprep.mubr.f32.mxu0 0.0
    %1180 = vmatmul.mubr.f32.gmra.mxu0 %v1104
    %v1181 = vpop.f32.mrf.mxu0
    %v1182 = vadd.f32 %v1086, %v1181
    %v1183 = vpop.f32.mrf.mxu0
    %1184 = vmatprep.mubr.f32.mxu0 0.0
    %1185 = vmatmul.mubr.f32.gmra.mxu0 %v1107
    %v1186 = vpop.f32.mrf.mxu0
    %v1187 = vadd.f32 %v1091, %v1186
    %v1188 = vpop.f32.mrf.mxu0
    %1189 = vmatprep.mubr.f32.mxu0 0.0
    %1190 = vmatmul.mubr.f32.gmra.mxu0 %v1110
    %v1191 = vpop.f32.mrf.mxu0
    %v1192 = vadd.f32 %v1096, %v1191
    %v1193 = vpop.f32.mrf.mxu0
    %1194 = vmatprep.mubr.f32.mxu0 0.0
    %1195 = vmatmul.mubr.f32.gmra.mxu0 %v1113
    %v1196 = vpop.f32.mrf.mxu0
    %v1197 = vadd.f32 %v1101, %v1196
    %v1198 = vpop.f32.mrf.mxu0
    %1199 = vdwg.mxu0
    %v1200 = vmax.f32 %v1182, 0.0
    %v1201 = vmax.f32 %v1187, 0.0
    %v1202 = vmax.f32 %v1192, 0.0
    %v1203 = vmax.f32 %v1197, 0.0
    %s1204 = scalar_lea.vmem [#allocation8], 48
    %v1205 = vld [vmem:[%s1204] sm:$0xff]
    %v1206 = vld [vmem:[%s1204 + $0x8] sm:$0xff]
    %s1207 = scalar_lea.vmem [#allocation10], 48
    %v1208 = vld [vmem:[%s1207] sm:$0xff]
    %v1209 = vld [vmem:[%s1207 + $0x8] sm:$0xff]
    %1211 = vset.pattern.permute.xlu0 0
    %1212 = vperm.xlu0 %1211, %v1208
    %v1213 = vpop.permute.xlu0 %1212
    %1216 = vset.pattern.permute.xlu0 0
    %1217 = vperm.xlu0 %1216, %v1209
    %v1218 = vpop.permute.xlu0 %1217
    %v1221 = vsel %vm352, %v1205, 0
    %v1224 = vsel %vm352, %v1206, 0
    %1226 = vmatprep.subr.mxu0 0.0
    %1227 = vmatpush1.msra.mxu0 0.0
    %1228 = vmatprep.subr.mxu0 0.0
    %1229 = vmatpush1.msra.mxu0 0.0
    %1230 = vmatprep.subr.mxu0 0.0
    %1231 = vmatpush1.msra.mxu0 0.0
    %1232 = vmatprep.subr.mxu0 0.0
    %1233 = vmatpush1.msra.mxu0 0.0
    %1234 = vmatprep.subr.mxu0 0.0
    %1235 = vmatpush1.msra.mxu0 0.0
    %1236 = vmatprep.subr.mxu0 0.0
    %1237 = vmatpush1.msra.mxu0 0.0
    %1238 = vmatprep.subr.mxu0 0.0
    %1239 = vmatpush1.msra.mxu0 0.0
    %1240 = vmatprep.subr.mxu0 0.0
    %1241 = vmatpush1.msra.mxu0 0.0
    %1242 = vmatprep.subr.mxu0 0.0
    %1243 = vmatpush1.msra.mxu0 0.0
    %1244 = vmatprep.subr.mxu0 0.0
    %1245 = vmatpush1.msra.mxu0 0.0
    %1246 = vmatprep.subr.mxu0 0.0
    %1247 = vmatpush1.msra.mxu0 0.0
    %1248 = vmatprep.subr.mxu0 0.0
    %1249 = vmatpush1.msra.mxu0 0.0
    %1250 = vmatprep.subr.mxu0 0.0
    %1251 = vmatpush1.msra.mxu0 %v1203
    %1252 = vmatprep.subr.mxu0 0.0
    %1253 = vmatpush1.msra.mxu0 %v1202
    %1254 = vmatprep.subr.mxu0 0.0
    %1255 = vmatpush1.msra.mxu0 %v1201
    %1256 = vmatprep.subr.mxu0 0.0
    %1257 = vmatpush1.msra.mxu0 %v1200
    %1258 = vmatprep.subr.mxu0 0.0
    %1259 = vmatpush2.msra.mxu0 0.0
    %1260 = vmatprep.subr.mxu0 0.0
    %1261 = vmatpush2.msra.mxu0 0.0
    %1262 = vmatprep.subr.mxu0 0.0
    %1263 = vmatpush2.msra.mxu0 0.0
    %1264 = vmatprep.subr.mxu0 0.0
    %1265 = vmatpush2.msra.mxu0 0.0
    %1266 = vmatprep.subr.mxu0 0.0
    %1267 = vmatpush2.msra.mxu0 0.0
    %1268 = vmatprep.subr.mxu0 0.0
    %1269 = vmatpush2.msra.mxu0 0.0
    %1270 = vmatprep.subr.mxu0 0.0
    %1271 = vmatpush2.msra.mxu0 0.0
    %1272 = vmatprep.subr.mxu0 0.0
    %1273 = vmatpush2.msra.mxu0 0.0
    %1274 = vmatprep.subr.mxu0 0.0
    %1275 = vmatpush2.msra.mxu0 0.0
    %1276 = vmatprep.subr.mxu0 0.0
    %1277 = vmatpush2.msra.mxu0 0.0
    %1278 = vmatprep.subr.mxu0 0.0
    %1279 = vmatpush2.msra.mxu0 0.0
    %1280 = vmatprep.subr.mxu0 0.0
    %1281 = vmatpush2.msra.mxu0 0.0
    %1282 = vmatprep.subr.mxu0 0.0
    %1283 = vmatpush2.msra.mxu0 0.0
    %1284 = vmatprep.subr.mxu0 0.0
    %1285 = vmatpush2.msra.mxu0 0.0
    %1286 = vmatprep.subr.mxu0 0.0
    %1287 = vmatpush2.msra.mxu0 0.0
    %1288 = vmatprep.subr.mxu0 0.0
    %1289 = vmatpush2.msra.mxu0 0.0
    %1290 = vmatprep.mubr.f32.mxu0 0.0
    %1291 = vmatmul.mubr.f32.gmra.mxu0 %v1221
    %v1292 = vpop.f32.mrf.mxu0
    %v1293 = vadd.f32 %v1213, %v1292
    %v1294 = vpop.f32.mrf.mxu0
    %1295 = vmatprep.mubr.f32.mxu0 0.0
    %1296 = vmatmul.mubr.f32.gmra.mxu0 %v1224
    %v1297 = vpop.f32.mrf.mxu0
    %v1298 = vadd.f32 %v1218, %v1297
    %v1299 = vpop.f32.mrf.mxu0
    %1300 = vdwg.mxu0
    %v1301 = vmul.f32 %v1293, 0.5
    %v1302 = vand.u32 2147483647, %v1301
    %vm1303 = vcmp.gt.f32.partialorder %v1302, 2.4142137
    %v1304 = vrcp.pop %v1302
    %v1305 = vmul.f32 -1.0, %v1304
    %vm1306 = vcmp.gt.f32.partialorder %v1302, 0.41421357
    %v1307 = vsub.f32 %v1302, 1.0
    %v1308 = vadd.f32 %v1302, 1.0
    %v1309 = vrcp.pop %v1308
    %v1310 = vmul.f32 %v1307, %v1309
    %v1311 = vsel %vm1306, %v1310, %v1302
    %v1312 = vsel %vm1303, %v1305, %v1311
    %v1313 = vsel %vm1306, 0.7853982, 0.0
    %v1314 = vsel %vm1303, 1.5707964, %v1313
    %v1315 = vmul.f32 %v1312, %v1312
    %v1316 = vmul.f32 %v1315, 0.080537446
    %v1317 = vsub.f32 %v1316, 0.13877685
    %v1318 = vmul.f32 %v1317, %v1315
    %v1319 = vadd.f32 %v1318, 0.19977711
    %v1320 = vmul.f32 %v1319, %v1315
    %v1321 = vsub.f32 %v1320, 0.3333295
    %v1322 = vadd.f32 %v1314, %v1312
    %v1323 = vmul.f32 %v1312, %v1315
    %v1324 = vmul.f32 %v1323, %v1321
    %v1325 = vadd.f32 %v1322, %v1324
    %vm1326 = vcmp.lt.f32.partialorder %v1301, 0.0
    %v1327 = vsub.f32 0.0, %v1325
    %v1328 = vsel %vm1326, %v1327, %v1325
    %v1329 = vmul.f32 %v1328, 1.272
    %v1330 = vmul.f32 %v1329, 1.442695
    %v1331 = vpow.pop %v1330
    %v1332 = vmul.f32 %v1331, %v809
    %v1333 = vadd.f32 %v1332, %v1298
    %s1334 = scalar_lea.vmem [#allocation11], 32
    %v1335 = vld [vmem:[%s1334] sm:$0xff]
    %v1336 = vld [vmem:[%s1334 + $0x8] sm:$0xff]
    %v1338 = vsel %vm126, %v1335, 0
    %v1341 = vsel %vm126, %v1336, 0
    %1343 = vmatprep.subr.mxu0 0.0
    %1344 = vmatpush1.msra.mxu0 0.0
    %1345 = vmatprep.subr.mxu0 0.0
    %1346 = vmatpush1.msra.mxu0 0.0
    %1347 = vmatprep.subr.mxu0 0.0
    %1348 = vmatpush1.msra.mxu0 0.0
    %1349 = vmatprep.subr.mxu0 0.0
    %1350 = vmatpush1.msra.mxu0 0.0
    %1351 = vmatprep.subr.mxu0 0.0
    %1352 = vmatpush1.msra.mxu0 0.0
    %1353 = vmatprep.subr.mxu0 0.0
    %1354 = vmatpush1.msra.mxu0 0.0
    %1355 = vmatprep.subr.mxu0 0.0
    %1356 = vmatpush1.msra.mxu0 0.0
    %1357 = vmatprep.subr.mxu0 0.0
    %1358 = vmatpush1.msra.mxu0 0.0
    %1359 = vmatprep.subr.mxu0 0.0
    %1360 = vmatpush1.msra.mxu0 0.0
    %1361 = vmatprep.subr.mxu0 0.0
    %1362 = vmatpush1.msra.mxu0 0.0
    %1363 = vmatprep.subr.mxu0 0.0
    %1364 = vmatpush1.msra.mxu0 0.0
    %1365 = vmatprep.subr.mxu0 0.0
    %1366 = vmatpush1.msra.mxu0 0.0
    %1367 = vmatprep.subr.mxu0 0.0
    %1368 = vmatpush1.msra.mxu0 0.0
    %1369 = vmatprep.subr.mxu0 0.0
    %1370 = vmatpush1.msra.mxu0 0.0
    %1371 = vmatprep.subr.mxu0 0.0
    %1372 = vmatpush1.msra.mxu0 %v1333
    %1373 = vmatprep.subr.mxu0 0.0
    %1374 = vmatpush1.msra.mxu0 %v1072
    %1375 = vmatprep.subr.mxu0 0.0
    %1376 = vmatpush2.msra.mxu0 0.0
    %1377 = vmatprep.subr.mxu0 0.0
    %1378 = vmatpush2.msra.mxu0 0.0
    %1379 = vmatprep.subr.mxu0 0.0
    %1380 = vmatpush2.msra.mxu0 0.0
    %1381 = vmatprep.subr.mxu0 0.0
    %1382 = vmatpush2.msra.mxu0 0.0
    %1383 = vmatprep.subr.mxu0 0.0
    %1384 = vmatpush2.msra.mxu0 0.0
    %1385 = vmatprep.subr.mxu0 0.0
    %1386 = vmatpush2.msra.mxu0 0.0
    %1387 = vmatprep.subr.mxu0 0.0
    %1388 = vmatpush2.msra.mxu0 0.0
    %1389 = vmatprep.subr.mxu0 0.0
    %1390 = vmatpush2.msra.mxu0 0.0
    %1391 = vmatprep.subr.mxu0 0.0
    %1392 = vmatpush2.msra.mxu0 0.0
    %1393 = vmatprep.subr.mxu0 0.0
    %1394 = vmatpush2.msra.mxu0 0.0
    %1395 = vmatprep.subr.mxu0 0.0
    %1396 = vmatpush2.msra.mxu0 0.0
    %1397 = vmatprep.subr.mxu0 0.0
    %1398 = vmatpush2.msra.mxu0 0.0
    %1399 = vmatprep.subr.mxu0 0.0
    %1400 = vmatpush2.msra.mxu0 0.0
    %1401 = vmatprep.subr.mxu0 0.0
    %1402 = vmatpush2.msra.mxu0 0.0
    %1403 = vmatprep.subr.mxu0 0.0
    %1404 = vmatpush2.msra.mxu0 0.0
    %1405 = vmatprep.subr.mxu0 0.0
    %1406 = vmatpush2.msra.mxu0 0.0
    %1407 = vmatprep.mubr.f32.mxu0 0.0
    %1408 = vmatmul.mubr.f32.gmra.mxu0 %v1338
    %v1409 = vpop.f32.mrf.mxu0
    %v1410 = vadd.f32 0.0, %v1409
    %v1411 = vpop.f32.mrf.mxu0
    %1412 = vmatprep.mubr.f32.mxu0 0.0
    %1413 = vmatmul.mubr.f32.gmra.mxu0 %v1341
    %v1414 = vpop.f32.mrf.mxu0
    %v1415 = vadd.f32 0.0, %v1414
    %v1416 = vpop.f32.mrf.mxu0
    %1417 = vdwg.mxu0
    %s1418 = scalar_lea.vmem [#allocation5], 128
    %v1419 = vld [vmem:[%s1418] sm:$0xff]
    %v1420 = vld [vmem:[%s1418 + $0x8] sm:$0xff]
    %v1421 = vld [vmem:[%s1418 + $0x10] sm:$0xff]
    %v1422 = vld [vmem:[%s1418 + $0x18] sm:$0xff]
    %s1423 = scalar_lea.vmem [#allocation7], 128
    %v1424 = vld [vmem:[%s1423] sm:$0xff]
    %v1425 = vld [vmem:[%s1423 + $0x8] sm:$0xff]
    %v1426 = vld [vmem:[%s1423 + $0x10] sm:$0xff]
    %v1427 = vld [vmem:[%s1423 + $0x18] sm:$0xff]
    %1429 = vset.pattern.permute.xlu0 0
    %1430 = vperm.xlu0 %1429, %v1424
    %v1431 = vpop.permute.xlu0 %1430
    %1434 = vset.pattern.permute.xlu0 0
    %1435 = vperm.xlu0 %1434, %v1425
    %v1436 = vpop.permute.xlu0 %1435
    %1439 = vset.pattern.permute.xlu0 0
    %1440 = vperm.xlu0 %1439, %v1426
    %v1441 = vpop.permute.xlu0 %1440
    %1444 = vset.pattern.permute.xlu0 0
    %1445 = vperm.xlu0 %1444, %v1427
    %v1446 = vpop.permute.xlu0 %1445
    %v1449 = vsel %vm236, %v1419, 0
    %v1452 = vsel %vm236, %v1420, 0
    %v1455 = vsel %vm236, %v1421, 0
    %v1458 = vsel %vm236, %v1422, 0
    %1460 = vmatprep.subr.mxu0 0.0
    %1461 = vmatpush1.msra.mxu0 0.0
    %1462 = vmatprep.subr.mxu0 0.0
    %1463 = vmatpush1.msra.mxu0 0.0
    %1464 = vmatprep.subr.mxu0 0.0
    %1465 = vmatpush1.msra.mxu0 0.0
    %1466 = vmatprep.subr.mxu0 0.0
    %1467 = vmatpush1.msra.mxu0 0.0
    %1468 = vmatprep.subr.mxu0 0.0
    %1469 = vmatpush1.msra.mxu0 0.0
    %1470 = vmatprep.subr.mxu0 0.0
    %1471 = vmatpush1.msra.mxu0 0.0
    %1472 = vmatprep.subr.mxu0 0.0
    %1473 = vmatpush1.msra.mxu0 0.0
    %1474 = vmatprep.subr.mxu0 0.0
    %1475 = vmatpush1.msra.mxu0 0.0
    %1476 = vmatprep.subr.mxu0 0.0
    %1477 = vmatpush1.msra.mxu0 0.0
    %1478 = vmatprep.subr.mxu0 0.0
    %1479 = vmatpush1.msra.mxu0 0.0
    %1480 = vmatprep.subr.mxu0 0.0
    %1481 = vmatpush1.msra.mxu0 0.0
    %1482 = vmatprep.subr.mxu0 0.0
    %1483 = vmatpush1.msra.mxu0 0.0
    %1484 = vmatprep.subr.mxu0 0.0
    %1485 = vmatpush1.msra.mxu0 0.0
    %1486 = vmatprep.subr.mxu0 0.0
    %1487 = vmatpush1.msra.mxu0 0.0
    %1488 = vmatprep.subr.mxu0 0.0
    %1489 = vmatpush1.msra.mxu0 0.0
    %1490 = vmatprep.subr.mxu0 0.0
    %1491 = vmatpush1.msra.mxu0 %v1415
    %1492 = vmatprep.subr.mxu0 0.0
    %1493 = vmatpush2.msra.mxu0 0.0
    %1494 = vmatprep.subr.mxu0 0.0
    %1495 = vmatpush2.msra.mxu0 0.0
    %1496 = vmatprep.subr.mxu0 0.0
    %1497 = vmatpush2.msra.mxu0 0.0
    %1498 = vmatprep.subr.mxu0 0.0
    %1499 = vmatpush2.msra.mxu0 0.0
    %1500 = vmatprep.subr.mxu0 0.0
    %1501 = vmatpush2.msra.mxu0 0.0
    %1502 = vmatprep.subr.mxu0 0.0
    %1503 = vmatpush2.msra.mxu0 0.0
    %1504 = vmatprep.subr.mxu0 0.0
    %1505 = vmatpush2.msra.mxu0 0.0
    %1506 = vmatprep.subr.mxu0 0.0
    %1507 = vmatpush2.msra.mxu0 0.0
    %1508 = vmatprep.subr.mxu0 0.0
    %1509 = vmatpush2.msra.mxu0 0.0
    %1510 = vmatprep.subr.mxu0 0.0
    %1511 = vmatpush2.msra.mxu0 0.0
    %1512 = vmatprep.subr.mxu0 0.0
    %1513 = vmatpush2.msra.mxu0 0.0
    %1514 = vmatprep.subr.mxu0 0.0
    %1515 = vmatpush2.msra.mxu0 0.0
    %1516 = vmatprep.subr.mxu0 0.0
    %1517 = vmatpush2.msra.mxu0 0.0
    %1518 = vmatprep.subr.mxu0 0.0
    %1519 = vmatpush2.msra.mxu0 0.0
    %1520 = vmatprep.subr.mxu0 0.0
    %1521 = vmatpush2.msra.mxu0 0.0
    %1522 = vmatprep.subr.mxu0 0.0
    %1523 = vmatpush2.msra.mxu0 0.0
    %1524 = vmatprep.mubr.f32.mxu0 0.0
    %1525 = vmatmul.mubr.f32.gmra.mxu0 %v1449
    %v1526 = vpop.f32.mrf.mxu0
    %v1527 = vadd.f32 %v1431, %v1526
    %v1528 = vpop.f32.mrf.mxu0
    %1529 = vmatprep.mubr.f32.mxu0 0.0
    %1530 = vmatmul.mubr.f32.gmra.mxu0 %v1452
    %v1531 = vpop.f32.mrf.mxu0
    %v1532 = vadd.f32 %v1436, %v1531
    %v1533 = vpop.f32.mrf.mxu0
    %1534 = vmatprep.mubr.f32.mxu0 0.0
    %1535 = vmatmul.mubr.f32.gmra.mxu0 %v1455
    %v1536 = vpop.f32.mrf.mxu0
    %v1537 = vadd.f32 %v1441, %v1536
    %v1538 = vpop.f32.mrf.mxu0
    %1539 = vmatprep.mubr.f32.mxu0 0.0
    %1540 = vmatmul.mubr.f32.gmra.mxu0 %v1458
    %v1541 = vpop.f32.mrf.mxu0
    %v1542 = vadd.f32 %v1446, %v1541
    %v1543 = vpop.f32.mrf.mxu0
    %1544 = vdwg.mxu0
    %v1545 = vmax.f32 %v1527, 0.0
    %v1546 = vmax.f32 %v1532, 0.0
    %v1547 = vmax.f32 %v1537, 0.0
    %v1548 = vmax.f32 %v1542, 0.0
    %s1549 = scalar_lea.vmem [#allocation8], 64
    %v1550 = vld [vmem:[%s1549] sm:$0xff]
    %v1551 = vld [vmem:[%s1549 + $0x8] sm:$0xff]
    %s1552 = scalar_lea.vmem [#allocation10], 64
    %v1553 = vld [vmem:[%s1552] sm:$0xff]
    %v1554 = vld [vmem:[%s1552 + $0x8] sm:$0xff]
    %1556 = vset.pattern.permute.xlu0 0
    %1557 = vperm.xlu0 %1556, %v1553
    %v1558 = vpop.permute.xlu0 %1557
    %1561 = vset.pattern.permute.xlu0 0
    %1562 = vperm.xlu0 %1561, %v1554
    %v1563 = vpop.permute.xlu0 %1562
    %v1566 = vsel %vm352, %v1550, 0
    %v1569 = vsel %vm352, %v1551, 0
    %1571 = vmatprep.subr.mxu0 0.0
    %1572 = vmatpush1.msra.mxu0 0.0
    %1573 = vmatprep.subr.mxu0 0.0
    %1574 = vmatpush1.msra.mxu0 0.0
    %1575 = vmatprep.subr.mxu0 0.0
    %1576 = vmatpush1.msra.mxu0 0.0
    %1577 = vmatprep.subr.mxu0 0.0
    %1578 = vmatpush1.msra.mxu0 0.0
    %1579 = vmatprep.subr.mxu0 0.0
    %1580 = vmatpush1.msra.mxu0 0.0
    %1581 = vmatprep.subr.mxu0 0.0
    %1582 = vmatpush1.msra.mxu0 0.0
    %1583 = vmatprep.subr.mxu0 0.0
    %1584 = vmatpush1.msra.mxu0 0.0
    %1585 = vmatprep.subr.mxu0 0.0
    %1586 = vmatpush1.msra.mxu0 0.0
    %1587 = vmatprep.subr.mxu0 0.0
    %1588 = vmatpush1.msra.mxu0 0.0
    %1589 = vmatprep.subr.mxu0 0.0
    %1590 = vmatpush1.msra.mxu0 0.0
    %1591 = vmatprep.subr.mxu0 0.0
    %1592 = vmatpush1.msra.mxu0 0.0
    %1593 = vmatprep.subr.mxu0 0.0
    %1594 = vmatpush1.msra.mxu0 0.0
    %1595 = vmatprep.subr.mxu0 0.0
    %1596 = vmatpush1.msra.mxu0 %v1548
    %1597 = vmatprep.subr.mxu0 0.0
    %1598 = vmatpush1.msra.mxu0 %v1547
    %1599 = vmatprep.subr.mxu0 0.0
    %1600 = vmatpush1.msra.mxu0 %v1546
    %1601 = vmatprep.subr.mxu0 0.0
    %1602 = vmatpush1.msra.mxu0 %v1545
    %1603 = vmatprep.subr.mxu0 0.0
    %1604 = vmatpush2.msra.mxu0 0.0
    %1605 = vmatprep.subr.mxu0 0.0
    %1606 = vmatpush2.msra.mxu0 0.0
    %1607 = vmatprep.subr.mxu0 0.0
    %1608 = vmatpush2.msra.mxu0 0.0
    %1609 = vmatprep.subr.mxu0 0.0
    %1610 = vmatpush2.msra.mxu0 0.0
    %1611 = vmatprep.subr.mxu0 0.0
    %1612 = vmatpush2.msra.mxu0 0.0
    %1613 = vmatprep.subr.mxu0 0.0
    %1614 = vmatpush2.msra.mxu0 0.0
    %1615 = vmatprep.subr.mxu0 0.0
    %1616 = vmatpush2.msra.mxu0 0.0
    %1617 = vmatprep.subr.mxu0 0.0
    %1618 = vmatpush2.msra.mxu0 0.0
    %1619 = vmatprep.subr.mxu0 0.0
    %1620 = vmatpush2.msra.mxu0 0.0
    %1621 = vmatprep.subr.mxu0 0.0
    %1622 = vmatpush2.msra.mxu0 0.0
    %1623 = vmatprep.subr.mxu0 0.0
    %1624 = vmatpush2.msra.mxu0 0.0
    %1625 = vmatprep.subr.mxu0 0.0
    %1626 = vmatpush2.msra.mxu0 0.0
    %1627 = vmatprep.subr.mxu0 0.0
    %1628 = vmatpush2.msra.mxu0 0.0
    %1629 = vmatprep.subr.mxu0 0.0
    %1630 = vmatpush2.msra.mxu0 0.0
    %1631 = vmatprep.subr.mxu0 0.0
    %1632 = vmatpush2.msra.mxu0 0.0
    %1633 = vmatprep.subr.mxu0 0.0
    %1634 = vmatpush2.msra.mxu0 0.0
    %1635 = vmatprep.mubr.f32.mxu0 0.0
    %1636 = vmatmul.mubr.f32.gmra.mxu0 %v1566
    %v1637 = vpop.f32.mrf.mxu0
    %v1638 = vadd.f32 %v1558, %v1637
    %v1639 = vpop.f32.mrf.mxu0
    %1640 = vmatprep.mubr.f32.mxu0 0.0
    %1641 = vmatmul.mubr.f32.gmra.mxu0 %v1569
    %v1642 = vpop.f32.mrf.mxu0
    %v1643 = vadd.f32 %v1563, %v1642
    %v1644 = vpop.f32.mrf.mxu0
    %1645 = vdwg.mxu0
    %v1646 = vmul.f32 %v1638, 0.5
    %v1647 = vand.u32 2147483647, %v1646
    %vm1648 = vcmp.gt.f32.partialorder %v1647, 2.4142137
    %v1649 = vrcp.pop %v1647
    %v1650 = vmul.f32 -1.0, %v1649
    %vm1651 = vcmp.gt.f32.partialorder %v1647, 0.41421357
    %v1652 = vsub.f32 %v1647, 1.0
    %v1653 = vadd.f32 %v1647, 1.0
    %v1654 = vrcp.pop %v1653
    %v1655 = vmul.f32 %v1652, %v1654
    %v1656 = vsel %vm1651, %v1655, %v1647
    %v1657 = vsel %vm1648, %v1650, %v1656
    %v1658 = vsel %vm1651, 0.7853982, 0.0
    %v1659 = vsel %vm1648, 1.5707964, %v1658
    %v1660 = vmul.f32 %v1657, %v1657
    %v1661 = vmul.f32 %v1660, 0.080537446
    %v1662 = vsub.f32 %v1661, 0.13877685
    %v1663 = vmul.f32 %v1662, %v1660
    %v1664 = vadd.f32 %v1663, 0.19977711
    %v1665 = vmul.f32 %v1664, %v1660
    %v1666 = vsub.f32 %v1665, 0.3333295
    %v1667 = vadd.f32 %v1659, %v1657
    %v1668 = vmul.f32 %v1657, %v1660
    %v1669 = vmul.f32 %v1668, %v1666
    %v1670 = vadd.f32 %v1667, %v1669
    %vm1671 = vcmp.lt.f32.partialorder %v1646, 0.0
    %v1672 = vsub.f32 0.0, %v1670
    %v1673 = vsel %vm1671, %v1672, %v1670
    %v1674 = vmul.f32 %v1673, 1.272
    %v1675 = vmul.f32 %v1674, 1.442695
    %v1676 = vpow.pop %v1675
    %v1677 = vmul.f32 %v1676, %v1410
    %v1678 = vadd.f32 %v1677, %v1643
    %s1679 = scalar_lea.vmem [#allocation5], 160
    %v1680 = vld [vmem:[%s1679] sm:$0xff]
    %v1681 = vld [vmem:[%s1679 + $0x8] sm:$0xff]
    %v1682 = vld [vmem:[%s1679 + $0x10] sm:$0xff]
    %v1683 = vld [vmem:[%s1679 + $0x18] sm:$0xff]
    %s1684 = scalar_lea.vmem [#allocation7], 160
    %v1685 = vld [vmem:[%s1684] sm:$0xff]
    %v1686 = vld [vmem:[%s1684 + $0x8] sm:$0xff]
    %v1687 = vld [vmem:[%s1684 + $0x10] sm:$0xff]
    %v1688 = vld [vmem:[%s1684 + $0x18] sm:$0xff]
    %1690 = vset.pattern.permute.xlu0 0
    %1691 = vperm.xlu0 %1690, %v1685
    %v1692 = vpop.permute.xlu0 %1691
    %1695 = vset.pattern.permute.xlu0 0
    %1696 = vperm.xlu0 %1695, %v1686
    %v1697 = vpop.permute.xlu0 %1696
    %1700 = vset.pattern.permute.xlu0 0
    %1701 = vperm.xlu0 %1700, %v1687
    %v1702 = vpop.permute.xlu0 %1701
    %1705 = vset.pattern.permute.xlu0 0
    %1706 = vperm.xlu0 %1705, %v1688
    %v1707 = vpop.permute.xlu0 %1706
    %v1710 = vsel %vm236, %v1680, 0
    %v1713 = vsel %vm236, %v1681, 0
    %v1716 = vsel %vm236, %v1682, 0
    %v1719 = vsel %vm236, %v1683, 0
    %1721 = vmatprep.subr.mxu0 0.0
    %1722 = vmatpush1.msra.mxu0 0.0
    %1723 = vmatprep.subr.mxu0 0.0
    %1724 = vmatpush1.msra.mxu0 0.0
    %1725 = vmatprep.subr.mxu0 0.0
    %1726 = vmatpush1.msra.mxu0 0.0
    %1727 = vmatprep.subr.mxu0 0.0
    %1728 = vmatpush1.msra.mxu0 0.0
    %1729 = vmatprep.subr.mxu0 0.0
    %1730 = vmatpush1.msra.mxu0 0.0
    %1731 = vmatprep.subr.mxu0 0.0
    %1732 = vmatpush1.msra.mxu0 0.0
    %1733 = vmatprep.subr.mxu0 0.0
    %1734 = vmatpush1.msra.mxu0 0.0
    %1735 = vmatprep.subr.mxu0 0.0
    %1736 = vmatpush1.msra.mxu0 0.0
    %1737 = vmatprep.subr.mxu0 0.0
    %1738 = vmatpush1.msra.mxu0 0.0
    %1739 = vmatprep.subr.mxu0 0.0
    %1740 = vmatpush1.msra.mxu0 0.0
    %1741 = vmatprep.subr.mxu0 0.0
    %1742 = vmatpush1.msra.mxu0 0.0
    %1743 = vmatprep.subr.mxu0 0.0
    %1744 = vmatpush1.msra.mxu0 0.0
    %1745 = vmatprep.subr.mxu0 0.0
    %1746 = vmatpush1.msra.mxu0 0.0
    %1747 = vmatprep.subr.mxu0 0.0
    %1748 = vmatpush1.msra.mxu0 0.0
    %1749 = vmatprep.subr.mxu0 0.0
    %1750 = vmatpush1.msra.mxu0 0.0
    %1751 = vmatprep.subr.mxu0 0.0
    %1752 = vmatpush1.msra.mxu0 %v1678
    %1753 = vmatprep.subr.mxu0 0.0
    %1754 = vmatpush2.msra.mxu0 0.0
    %1755 = vmatprep.subr.mxu0 0.0
    %1756 = vmatpush2.msra.mxu0 0.0
    %1757 = vmatprep.subr.mxu0 0.0
    %1758 = vmatpush2.msra.mxu0 0.0
    %1759 = vmatprep.subr.mxu0 0.0
    %1760 = vmatpush2.msra.mxu0 0.0
    %1761 = vmatprep.subr.mxu0 0.0
    %1762 = vmatpush2.msra.mxu0 0.0
    %1763 = vmatprep.subr.mxu0 0.0
    %1764 = vmatpush2.msra.mxu0 0.0
    %1765 = vmatprep.subr.mxu0 0.0
    %1766 = vmatpush2.msra.mxu0 0.0
    %1767 = vmatprep.subr.mxu0 0.0
    %1768 = vmatpush2.msra.mxu0 0.0
    %1769 = vmatprep.subr.mxu0 0.0
    %1770 = vmatpush2.msra.mxu0 0.0
    %1771 = vmatprep.subr.mxu0 0.0
    %1772 = vmatpush2.msra.mxu0 0.0
    %1773 = vmatprep.subr.mxu0 0.0
    %1774 = vmatpush2.msra.mxu0 0.0
    %1775 = vmatprep.subr.mxu0 0.0
    %1776 = vmatpush2.msra.mxu0 0.0
    %1777 = vmatprep.subr.mxu0 0.0
    %1778 = vmatpush2.msra.mxu0 0.0
    %1779 = vmatprep.subr.mxu0 0.0
    %1780 = vmatpush2.msra.mxu0 0.0
    %1781 = vmatprep.subr.mxu0 0.0
    %1782 = vmatpush2.msra.mxu0 0.0
    %1783 = vmatprep.subr.mxu0 0.0
    %1784 = vmatpush2.msra.mxu0 0.0
    %1785 = vmatprep.mubr.f32.mxu0 0.0
    %1786 = vmatmul.mubr.f32.gmra.mxu0 %v1710
    %v1787 = vpop.f32.mrf.mxu0
    %v1788 = vadd.f32 %v1692, %v1787
    %v1789 = vpop.f32.mrf.mxu0
    %1790 = vmatprep.mubr.f32.mxu0 0.0
    %1791 = vmatmul.mubr.f32.gmra.mxu0 %v1713
    %v1792 = vpop.f32.mrf.mxu0
    %v1793 = vadd.f32 %v1697, %v1792
    %v1794 = vpop.f32.mrf.mxu0
    %1795 = vmatprep.mubr.f32.mxu0 0.0
    %1796 = vmatmul.mubr.f32.gmra.mxu0 %v1716
    %v1797 = vpop.f32.mrf.mxu0
    %v1798 = vadd.f32 %v1702, %v1797
    %v1799 = vpop.f32.mrf.mxu0
    %1800 = vmatprep.mubr.f32.mxu0 0.0
    %1801 = vmatmul.mubr.f32.gmra.mxu0 %v1719
    %v1802 = vpop.f32.mrf.mxu0
    %v1803 = vadd.f32 %v1707, %v1802
    %v1804 = vpop.f32.mrf.mxu0
    %1805 = vdwg.mxu0
    %v1806 = vmax.f32 %v1788, 0.0
    %v1807 = vmax.f32 %v1793, 0.0
    %v1808 = vmax.f32 %v1798, 0.0
    %v1809 = vmax.f32 %v1803, 0.0
    %s1810 = scalar_lea.vmem [#allocation8], 80
    %v1811 = vld [vmem:[%s1810] sm:$0xff]
    %v1812 = vld [vmem:[%s1810 + $0x8] sm:$0xff]
    %s1813 = scalar_lea.vmem [#allocation10], 80
    %v1814 = vld [vmem:[%s1813] sm:$0xff]
    %v1815 = vld [vmem:[%s1813 + $0x8] sm:$0xff]
    %1817 = vset.pattern.permute.xlu0 0
    %1818 = vperm.xlu0 %1817, %v1814
    %v1819 = vpop.permute.xlu0 %1818
    %1822 = vset.pattern.permute.xlu0 0
    %1823 = vperm.xlu0 %1822, %v1815
    %v1824 = vpop.permute.xlu0 %1823
    %v1827 = vsel %vm352, %v1811, 0
    %v1830 = vsel %vm352, %v1812, 0
    %1832 = vmatprep.subr.mxu0 0.0
    %1833 = vmatpush1.msra.mxu0 0.0
    %1834 = vmatprep.subr.mxu0 0.0
    %1835 = vmatpush1.msra.mxu0 0.0
    %1836 = vmatprep.subr.mxu0 0.0
    %1837 = vmatpush1.msra.mxu0 0.0
    %1838 = vmatprep.subr.mxu0 0.0
    %1839 = vmatpush1.msra.mxu0 0.0
    %1840 = vmatprep.subr.mxu0 0.0
    %1841 = vmatpush1.msra.mxu0 0.0
    %1842 = vmatprep.subr.mxu0 0.0
    %1843 = vmatpush1.msra.mxu0 0.0
    %1844 = vmatprep.subr.mxu0 0.0
    %1845 = vmatpush1.msra.mxu0 0.0
    %1846 = vmatprep.subr.mxu0 0.0
    %1847 = vmatpush1.msra.mxu0 0.0
    %1848 = vmatprep.subr.mxu0 0.0
    %1849 = vmatpush1.msra.mxu0 0.0
    %1850 = vmatprep.subr.mxu0 0.0
    %1851 = vmatpush1.msra.mxu0 0.0
    %1852 = vmatprep.subr.mxu0 0.0
    %1853 = vmatpush1.msra.mxu0 0.0
    %1854 = vmatprep.subr.mxu0 0.0
    %1855 = vmatpush1.msra.mxu0 0.0
    %1856 = vmatprep.subr.mxu0 0.0
    %1857 = vmatpush1.msra.mxu0 %v1809
    %1858 = vmatprep.subr.mxu0 0.0
    %1859 = vmatpush1.msra.mxu0 %v1808
    %1860 = vmatprep.subr.mxu0 0.0
    %1861 = vmatpush1.msra.mxu0 %v1807
    %1862 = vmatprep.subr.mxu0 0.0
    %1863 = vmatpush1.msra.mxu0 %v1806
    %1864 = vmatprep.subr.mxu0 0.0
    %1865 = vmatpush2.msra.mxu0 0.0
    %1866 = vmatprep.subr.mxu0 0.0
    %1867 = vmatpush2.msra.mxu0 0.0
    %1868 = vmatprep.subr.mxu0 0.0
    %1869 = vmatpush2.msra.mxu0 0.0
    %1870 = vmatprep.subr.mxu0 0.0
    %1871 = vmatpush2.msra.mxu0 0.0
    %1872 = vmatprep.subr.mxu0 0.0
    %1873 = vmatpush2.msra.mxu0 0.0
    %1874 = vmatprep.subr.mxu0 0.0
    %1875 = vmatpush2.msra.mxu0 0.0
    %1876 = vmatprep.subr.mxu0 0.0
    %1877 = vmatpush2.msra.mxu0 0.0
    %1878 = vmatprep.subr.mxu0 0.0
    %1879 = vmatpush2.msra.mxu0 0.0
    %1880 = vmatprep.subr.mxu0 0.0
    %1881 = vmatpush2.msra.mxu0 0.0
    %1882 = vmatprep.subr.mxu0 0.0
    %1883 = vmatpush2.msra.mxu0 0.0
    %1884 = vmatprep.subr.mxu0 0.0
    %1885 = vmatpush2.msra.mxu0 0.0
    %1886 = vmatprep.subr.mxu0 0.0
    %1887 = vmatpush2.msra.mxu0 0.0
    %1888 = vmatprep.subr.mxu0 0.0
    %1889 = vmatpush2.msra.mxu0 0.0
    %1890 = vmatprep.subr.mxu0 0.0
    %1891 = vmatpush2.msra.mxu0 0.0
    %1892 = vmatprep.subr.mxu0 0.0
    %1893 = vmatpush2.msra.mxu0 0.0
    %1894 = vmatprep.subr.mxu0 0.0
    %1895 = vmatpush2.msra.mxu0 0.0
    %1896 = vmatprep.mubr.f32.mxu0 0.0
    %1897 = vmatmul.mubr.f32.gmra.mxu0 %v1827
    %v1898 = vpop.f32.mrf.mxu0
    %v1899 = vadd.f32 %v1819, %v1898
    %v1900 = vpop.f32.mrf.mxu0
    %1901 = vmatprep.mubr.f32.mxu0 0.0
    %1902 = vmatmul.mubr.f32.gmra.mxu0 %v1830
    %v1903 = vpop.f32.mrf.mxu0
    %v1904 = vadd.f32 %v1824, %v1903
    %v1905 = vpop.f32.mrf.mxu0
    %1906 = vdwg.mxu0
    %v1907 = vmul.f32 %v1899, 0.5
    %v1908 = vand.u32 2147483647, %v1907
    %vm1909 = vcmp.gt.f32.partialorder %v1908, 2.4142137
    %v1910 = vrcp.pop %v1908
    %v1911 = vmul.f32 -1.0, %v1910
    %vm1912 = vcmp.gt.f32.partialorder %v1908, 0.41421357
    %v1913 = vsub.f32 %v1908, 1.0
    %v1914 = vadd.f32 %v1908, 1.0
    %v1915 = vrcp.pop %v1914
    %v1916 = vmul.f32 %v1913, %v1915
    %v1917 = vsel %vm1912, %v1916, %v1908
    %v1918 = vsel %vm1909, %v1911, %v1917
    %v1919 = vsel %vm1912, 0.7853982, 0.0
    %v1920 = vsel %vm1909, 1.5707964, %v1919
    %v1921 = vmul.f32 %v1918, %v1918
    %v1922 = vmul.f32 %v1921, 0.080537446
    %v1923 = vsub.f32 %v1922, 0.13877685
    %v1924 = vmul.f32 %v1923, %v1921
    %v1925 = vadd.f32 %v1924, 0.19977711
    %v1926 = vmul.f32 %v1925, %v1921
    %v1927 = vsub.f32 %v1926, 0.3333295
    %v1928 = vadd.f32 %v1920, %v1918
    %v1929 = vmul.f32 %v1918, %v1921
    %v1930 = vmul.f32 %v1929, %v1927
    %v1931 = vadd.f32 %v1928, %v1930
    %vm1932 = vcmp.lt.f32.partialorder %v1907, 0.0
    %v1933 = vsub.f32 0.0, %v1931
    %v1934 = vsel %vm1932, %v1933, %v1931
    %v1935 = vmul.f32 %v1934, 1.272
    %v1936 = vmul.f32 %v1935, 1.442695
    %v1937 = vpow.pop %v1936
    %v1938 = vmul.f32 %v1937, %v1415
    %v1939 = vadd.f32 %v1938, %v1904
    %s1940 = scalar_lea.vmem [#allocation11], 48
    %v1941 = vld [vmem:[%s1940] sm:$0xff]
    %v1942 = vld [vmem:[%s1940 + $0x8] sm:$0xff]
    %v1944 = vsel %vm126, %v1941, 0
    %v1947 = vsel %vm126, %v1942, 0
    %1949 = vmatprep.subr.mxu0 0.0
    %1950 = vmatpush1.msra.mxu0 0.0
    %1951 = vmatprep.subr.mxu0 0.0
    %1952 = vmatpush1.msra.mxu0 0.0
    %1953 = vmatprep.subr.mxu0 0.0
    %1954 = vmatpush1.msra.mxu0 0.0
    %1955 = vmatprep.subr.mxu0 0.0
    %1956 = vmatpush1.msra.mxu0 0.0
    %1957 = vmatprep.subr.mxu0 0.0
    %1958 = vmatpush1.msra.mxu0 0.0
    %1959 = vmatprep.subr.mxu0 0.0
    %1960 = vmatpush1.msra.mxu0 0.0
    %1961 = vmatprep.subr.mxu0 0.0
    %1962 = vmatpush1.msra.mxu0 0.0
    %1963 = vmatprep.subr.mxu0 0.0
    %1964 = vmatpush1.msra.mxu0 0.0
    %1965 = vmatprep.subr.mxu0 0.0
    %1966 = vmatpush1.msra.mxu0 0.0
    %1967 = vmatprep.subr.mxu0 0.0
    %1968 = vmatpush1.msra.mxu0 0.0
    %1969 = vmatprep.subr.mxu0 0.0
    %1970 = vmatpush1.msra.mxu0 0.0
    %1971 = vmatprep.subr.mxu0 0.0
    %1972 = vmatpush1.msra.mxu0 0.0
    %1973 = vmatprep.subr.mxu0 0.0
    %1974 = vmatpush1.msra.mxu0 0.0
    %1975 = vmatprep.subr.mxu0 0.0
    %1976 = vmatpush1.msra.mxu0 0.0
    %1977 = vmatprep.subr.mxu0 0.0
    %1978 = vmatpush1.msra.mxu0 %v1939
    %1979 = vmatprep.subr.mxu0 0.0
    %1980 = vmatpush1.msra.mxu0 %v1678
    %1981 = vmatprep.subr.mxu0 0.0
    %1982 = vmatpush2.msra.mxu0 0.0
    %1983 = vmatprep.subr.mxu0 0.0
    %1984 = vmatpush2.msra.mxu0 0.0
    %1985 = vmatprep.subr.mxu0 0.0
    %1986 = vmatpush2.msra.mxu0 0.0
    %1987 = vmatprep.subr.mxu0 0.0
    %1988 = vmatpush2.msra.mxu0 0.0
    %1989 = vmatprep.subr.mxu0 0.0
    %1990 = vmatpush2.msra.mxu0 0.0
    %1991 = vmatprep.subr.mxu0 0.0
    %1992 = vmatpush2.msra.mxu0 0.0
    %1993 = vmatprep.subr.mxu0 0.0
    %1994 = vmatpush2.msra.mxu0 0.0
    %1995 = vmatprep.subr.mxu0 0.0
    %1996 = vmatpush2.msra.mxu0 0.0
    %1997 = vmatprep.subr.mxu0 0.0
    %1998 = vmatpush2.msra.mxu0 0.0
    %1999 = vmatprep.subr.mxu0 0.0
    %2000 = vmatpush2.msra.mxu0 0.0
    %2001 = vmatprep.subr.mxu0 0.0
    %2002 = vmatpush2.msra.mxu0 0.0
    %2003 = vmatprep.subr.mxu0 0.0
    %2004 = vmatpush2.msra.mxu0 0.0
    %2005 = vmatprep.subr.mxu0 0.0
    %2006 = vmatpush2.msra.mxu0 0.0
    %2007 = vmatprep.subr.mxu0 0.0
    %2008 = vmatpush2.msra.mxu0 0.0
    %2009 = vmatprep.subr.mxu0 0.0
    %2010 = vmatpush2.msra.mxu0 0.0
    %2011 = vmatprep.subr.mxu0 0.0
    %2012 = vmatpush2.msra.mxu0 0.0
    %2013 = vmatprep.mubr.f32.mxu0 0.0
    %2014 = vmatmul.mubr.f32.gmra.mxu0 %v1944
    %v2015 = vpop.f32.mrf.mxu0
    %v2016 = vadd.f32 0.0, %v2015
    %v2017 = vpop.f32.mrf.mxu0
    %2018 = vmatprep.mubr.f32.mxu0 0.0
    %2019 = vmatmul.mubr.f32.gmra.mxu0 %v1947
    %v2020 = vpop.f32.mrf.mxu0
    %v2021 = vadd.f32 0.0, %v2020
    %v2022 = vpop.f32.mrf.mxu0
    %2023 = vdwg.mxu0
    %s2024 = scalar_lea.vmem [#allocation5], 192
    %v2025 = vld [vmem:[%s2024] sm:$0xff]
    %v2026 = vld [vmem:[%s2024 + $0x8] sm:$0xff]
    %v2027 = vld [vmem:[%s2024 + $0x10] sm:$0xff]
    %v2028 = vld [vmem:[%s2024 + $0x18] sm:$0xff]
    %s2029 = scalar_lea.vmem [#allocation7], 192
    %v2030 = vld [vmem:[%s2029] sm:$0xff]
    %v2031 = vld [vmem:[%s2029 + $0x8] sm:$0xff]
    %v2032 = vld [vmem:[%s2029 + $0x10] sm:$0xff]
    %v2033 = vld [vmem:[%s2029 + $0x18] sm:$0xff]
    %2035 = vset.pattern.permute.xlu0 0
    %2036 = vperm.xlu0 %2035, %v2030
    %v2037 = vpop.permute.xlu0 %2036
    %2040 = vset.pattern.permute.xlu0 0
    %2041 = vperm.xlu0 %2040, %v2031
    %v2042 = vpop.permute.xlu0 %2041
    %2045 = vset.pattern.permute.xlu0 0
    %2046 = vperm.xlu0 %2045, %v2032
    %v2047 = vpop.permute.xlu0 %2046
    %2050 = vset.pattern.permute.xlu0 0
    %2051 = vperm.xlu0 %2050, %v2033
    %v2052 = vpop.permute.xlu0 %2051
    %v2055 = vsel %vm236, %v2025, 0
    %v2058 = vsel %vm236, %v2026, 0
    %v2061 = vsel %vm236, %v2027, 0
    %v2064 = vsel %vm236, %v2028, 0
    %2066 = vmatprep.subr.mxu0 0.0
    %2067 = vmatpush1.msra.mxu0 0.0
    %2068 = vmatprep.subr.mxu0 0.0
    %2069 = vmatpush1.msra.mxu0 0.0
    %2070 = vmatprep.subr.mxu0 0.0
    %2071 = vmatpush1.msra.mxu0 0.0
    %2072 = vmatprep.subr.mxu0 0.0
    %2073 = vmatpush1.msra.mxu0 0.0
    %2074 = vmatprep.subr.mxu0 0.0
    %2075 = vmatpush1.msra.mxu0 0.0
    %2076 = vmatprep.subr.mxu0 0.0
    %2077 = vmatpush1.msra.mxu0 0.0
    %2078 = vmatprep.subr.mxu0 0.0
    %2079 = vmatpush1.msra.mxu0 0.0
    %2080 = vmatprep.subr.mxu0 0.0
    %2081 = vmatpush1.msra.mxu0 0.0
    %2082 = vmatprep.subr.mxu0 0.0
    %2083 = vmatpush1.msra.mxu0 0.0
    %2084 = vmatprep.subr.mxu0 0.0
    %2085 = vmatpush1.msra.mxu0 0.0
    %2086 = vmatprep.subr.mxu0 0.0
    %2087 = vmatpush1.msra.mxu0 0.0
    %2088 = vmatprep.subr.mxu0 0.0
    %2089 = vmatpush1.msra.mxu0 0.0
    %2090 = vmatprep.subr.mxu0 0.0
    %2091 = vmatpush1.msra.mxu0 0.0
    %2092 = vmatprep.subr.mxu0 0.0
    %2093 = vmatpush1.msra.mxu0 0.0
    %2094 = vmatprep.subr.mxu0 0.0
    %2095 = vmatpush1.msra.mxu0 0.0
    %2096 = vmatprep.subr.mxu0 0.0
    %2097 = vmatpush1.msra.mxu0 %v2021
    %2098 = vmatprep.subr.mxu0 0.0
    %2099 = vmatpush2.msra.mxu0 0.0
    %2100 = vmatprep.subr.mxu0 0.0
    %2101 = vmatpush2.msra.mxu0 0.0
    %2102 = vmatprep.subr.mxu0 0.0
    %2103 = vmatpush2.msra.mxu0 0.0
    %2104 = vmatprep.subr.mxu0 0.0
    %2105 = vmatpush2.msra.mxu0 0.0
    %2106 = vmatprep.subr.mxu0 0.0
    %2107 = vmatpush2.msra.mxu0 0.0
    %2108 = vmatprep.subr.mxu0 0.0
    %2109 = vmatpush2.msra.mxu0 0.0
    %2110 = vmatprep.subr.mxu0 0.0
    %2111 = vmatpush2.msra.mxu0 0.0
    %2112 = vmatprep.subr.mxu0 0.0
    %2113 = vmatpush2.msra.mxu0 0.0
    %2114 = vmatprep.subr.mxu0 0.0
    %2115 = vmatpush2.msra.mxu0 0.0
    %2116 = vmatprep.subr.mxu0 0.0
    %2117 = vmatpush2.msra.mxu0 0.0
    %2118 = vmatprep.subr.mxu0 0.0
    %2119 = vmatpush2.msra.mxu0 0.0
    %2120 = vmatprep.subr.mxu0 0.0
    %2121 = vmatpush2.msra.mxu0 0.0
    %2122 = vmatprep.subr.mxu0 0.0
    %2123 = vmatpush2.msra.mxu0 0.0
    %2124 = vmatprep.subr.mxu0 0.0
    %2125 = vmatpush2.msra.mxu0 0.0
    %2126 = vmatprep.subr.mxu0 0.0
    %2127 = vmatpush2.msra.mxu0 0.0
    %2128 = vmatprep.subr.mxu0 0.0
    %2129 = vmatpush2.msra.mxu0 0.0
    %2130 = vmatprep.mubr.f32.mxu0 0.0
    %2131 = vmatmul.mubr.f32.gmra.mxu0 %v2055
    %v2132 = vpop.f32.mrf.mxu0
    %v2133 = vadd.f32 %v2037, %v2132
    %v2134 = vpop.f32.mrf.mxu0
    %2135 = vmatprep.mubr.f32.mxu0 0.0
    %2136 = vmatmul.mubr.f32.gmra.mxu0 %v2058
    %v2137 = vpop.f32.mrf.mxu0
    %v2138 = vadd.f32 %v2042, %v2137
    %v2139 = vpop.f32.mrf.mxu0
    %2140 = vmatprep.mubr.f32.mxu0 0.0
    %2141 = vmatmul.mubr.f32.gmra.mxu0 %v2061
    %v2142 = vpop.f32.mrf.mxu0
    %v2143 = vadd.f32 %v2047, %v2142
    %v2144 = vpop.f32.mrf.mxu0
    %2145 = vmatprep.mubr.f32.mxu0 0.0
    %2146 = vmatmul.mubr.f32.gmra.mxu0 %v2064
    %v2147 = vpop.f32.mrf.mxu0
    %v2148 = vadd.f32 %v2052, %v2147
    %v2149 = vpop.f32.mrf.mxu0
    %2150 = vdwg.mxu0
    %v2151 = vmax.f32 %v2133, 0.0
    %v2152 = vmax.f32 %v2138, 0.0
    %v2153 = vmax.f32 %v2143, 0.0
    %v2154 = vmax.f32 %v2148, 0.0
    %s2155 = scalar_lea.vmem [#allocation8], 96
    %v2156 = vld [vmem:[%s2155] sm:$0xff]
    %v2157 = vld [vmem:[%s2155 + $0x8] sm:$0xff]
    %s2158 = scalar_lea.vmem [#allocation10], 96
    %v2159 = vld [vmem:[%s2158] sm:$0xff]
    %v2160 = vld [vmem:[%s2158 + $0x8] sm:$0xff]
    %2162 = vset.pattern.permute.xlu0 0
    %2163 = vperm.xlu0 %2162, %v2159
    %v2164 = vpop.permute.xlu0 %2163
    %2167 = vset.pattern.permute.xlu0 0
    %2168 = vperm.xlu0 %2167, %v2160
    %v2169 = vpop.permute.xlu0 %2168
    %v2172 = vsel %vm352, %v2156, 0
    %v2175 = vsel %vm352, %v2157, 0
    %2177 = vmatprep.subr.mxu0 0.0
    %2178 = vmatpush1.msra.mxu0 0.0
    %2179 = vmatprep.subr.mxu0 0.0
    %2180 = vmatpush1.msra.mxu0 0.0
    %2181 = vmatprep.subr.mxu0 0.0
    %2182 = vmatpush1.msra.mxu0 0.0
    %2183 = vmatprep.subr.mxu0 0.0
    %2184 = vmatpush1.msra.mxu0 0.0
    %2185 = vmatprep.subr.mxu0 0.0
    %2186 = vmatpush1.msra.mxu0 0.0
    %2187 = vmatprep.subr.mxu0 0.0
    %2188 = vmatpush1.msra.mxu0 0.0
    %2189 = vmatprep.subr.mxu0 0.0
    %2190 = vmatpush1.msra.mxu0 0.0
    %2191 = vmatprep.subr.mxu0 0.0
    %2192 = vmatpush1.msra.mxu0 0.0
    %2193 = vmatprep.subr.mxu0 0.0
    %2194 = vmatpush1.msra.mxu0 0.0
    %2195 = vmatprep.subr.mxu0 0.0
    %2196 = vmatpush1.msra.mxu0 0.0
    %2197 = vmatprep.subr.mxu0 0.0
    %2198 = vmatpush1.msra.mxu0 0.0
    %2199 = vmatprep.subr.mxu0 0.0
    %2200 = vmatpush1.msra.mxu0 0.0
    %2201 = vmatprep.subr.mxu0 0.0
    %2202 = vmatpush1.msra.mxu0 %v2154
    %2203 = vmatprep.subr.mxu0 0.0
    %2204 = vmatpush1.msra.mxu0 %v2153
    %2205 = vmatprep.subr.mxu0 0.0
    %2206 = vmatpush1.msra.mxu0 %v2152
    %2207 = vmatprep.subr.mxu0 0.0
    %2208 = vmatpush1.msra.mxu0 %v2151
    %2209 = vmatprep.subr.mxu0 0.0
    %2210 = vmatpush2.msra.mxu0 0.0
    %2211 = vmatprep.subr.mxu0 0.0
    %2212 = vmatpush2.msra.mxu0 0.0
    %2213 = vmatprep.subr.mxu0 0.0
    %2214 = vmatpush2.msra.mxu0 0.0
    %2215 = vmatprep.subr.mxu0 0.0
    %2216 = vmatpush2.msra.mxu0 0.0
    %2217 = vmatprep.subr.mxu0 0.0
    %2218 = vmatpush2.msra.mxu0 0.0
    %2219 = vmatprep.subr.mxu0 0.0
    %2220 = vmatpush2.msra.mxu0 0.0
    %2221 = vmatprep.subr.mxu0 0.0
    %2222 = vmatpush2.msra.mxu0 0.0
    %2223 = vmatprep.subr.mxu0 0.0
    %2224 = vmatpush2.msra.mxu0 0.0
    %2225 = vmatprep.subr.mxu0 0.0
    %2226 = vmatpush2.msra.mxu0 0.0
    %2227 = vmatprep.subr.mxu0 0.0
    %2228 = vmatpush2.msra.mxu0 0.0
    %2229 = vmatprep.subr.mxu0 0.0
    %2230 = vmatpush2.msra.mxu0 0.0
    %2231 = vmatprep.subr.mxu0 0.0
    %2232 = vmatpush2.msra.mxu0 0.0
    %2233 = vmatprep.subr.mxu0 0.0
    %2234 = vmatpush2.msra.mxu0 0.0
    %2235 = vmatprep.subr.mxu0 0.0
    %2236 = vmatpush2.msra.mxu0 0.0
    %2237 = vmatprep.subr.mxu0 0.0
    %2238 = vmatpush2.msra.mxu0 0.0
    %2239 = vmatprep.subr.mxu0 0.0
    %2240 = vmatpush2.msra.mxu0 0.0
    %2241 = vmatprep.mubr.f32.mxu0 0.0
    %2242 = vmatmul.mubr.f32.gmra.mxu0 %v2172
    %v2243 = vpop.f32.mrf.mxu0
    %v2244 = vadd.f32 %v2164, %v2243
    %v2245 = vpop.f32.mrf.mxu0
    %2246 = vmatprep.mubr.f32.mxu0 0.0
    %2247 = vmatmul.mubr.f32.gmra.mxu0 %v2175
    %v2248 = vpop.f32.mrf.mxu0
    %v2249 = vadd.f32 %v2169, %v2248
    %v2250 = vpop.f32.mrf.mxu0
    %2251 = vdwg.mxu0
    %v2252 = vmul.f32 %v2244, 0.5
    %v2253 = vand.u32 2147483647, %v2252
    %vm2254 = vcmp.gt.f32.partialorder %v2253, 2.4142137
    %v2255 = vrcp.pop %v2253
    %v2256 = vmul.f32 -1.0, %v2255
    %vm2257 = vcmp.gt.f32.partialorder %v2253, 0.41421357
    %v2258 = vsub.f32 %v2253, 1.0
    %v2259 = vadd.f32 %v2253, 1.0
    %v2260 = vrcp.pop %v2259
    %v2261 = vmul.f32 %v2258, %v2260
    %v2262 = vsel %vm2257, %v2261, %v2253
    %v2263 = vsel %vm2254, %v2256, %v2262
    %v2264 = vsel %vm2257, 0.7853982, 0.0
    %v2265 = vsel %vm2254, 1.5707964, %v2264
    %v2266 = vmul.f32 %v2263, %v2263
    %v2267 = vmul.f32 %v2266, 0.080537446
    %v2268 = vsub.f32 %v2267, 0.13877685
    %v2269 = vmul.f32 %v2268, %v2266
    %v2270 = vadd.f32 %v2269, 0.19977711
    %v2271 = vmul.f32 %v2270, %v2266
    %v2272 = vsub.f32 %v2271, 0.3333295
    %v2273 = vadd.f32 %v2265, %v2263
    %v2274 = vmul.f32 %v2263, %v2266
    %v2275 = vmul.f32 %v2274, %v2272
    %v2276 = vadd.f32 %v2273, %v2275
    %vm2277 = vcmp.lt.f32.partialorder %v2252, 0.0
    %v2278 = vsub.f32 0.0, %v2276
    %v2279 = vsel %vm2277, %v2278, %v2276
    %v2280 = vmul.f32 %v2279, 1.272
    %v2281 = vmul.f32 %v2280, 1.442695
    %v2282 = vpow.pop %v2281
    %v2283 = vmul.f32 %v2282, %v2016
    %v2284 = vadd.f32 %v2283, %v2249
    %s2285 = scalar_lea.vmem [#allocation5], 224
    %v2286 = vld [vmem:[%s2285] sm:$0xff]
    %v2287 = vld [vmem:[%s2285 + $0x8] sm:$0xff]
    %v2288 = vld [vmem:[%s2285 + $0x10] sm:$0xff]
    %v2289 = vld [vmem:[%s2285 + $0x18] sm:$0xff]
    %s2290 = scalar_lea.vmem [#allocation7], 224
    %v2291 = vld [vmem:[%s2290] sm:$0xff]
    %v2292 = vld [vmem:[%s2290 + $0x8] sm:$0xff]
    %v2293 = vld [vmem:[%s2290 + $0x10] sm:$0xff]
    %v2294 = vld [vmem:[%s2290 + $0x18] sm:$0xff]
    %2296 = vset.pattern.permute.xlu0 0
    %2297 = vperm.xlu0 %2296, %v2291
    %v2298 = vpop.permute.xlu0 %2297
    %2301 = vset.pattern.permute.xlu0 0
    %2302 = vperm.xlu0 %2301, %v2292
    %v2303 = vpop.permute.xlu0 %2302
    %2306 = vset.pattern.permute.xlu0 0
    %2307 = vperm.xlu0 %2306, %v2293
    %v2308 = vpop.permute.xlu0 %2307
    %2311 = vset.pattern.permute.xlu0 0
    %2312 = vperm.xlu0 %2311, %v2294
    %v2313 = vpop.permute.xlu0 %2312
    %v2316 = vsel %vm236, %v2286, 0
    %v2319 = vsel %vm236, %v2287, 0
    %v2322 = vsel %vm236, %v2288, 0
    %v2325 = vsel %vm236, %v2289, 0
    %2327 = vmatprep.subr.mxu0 0.0
    %2328 = vmatpush1.msra.mxu0 0.0
    %2329 = vmatprep.subr.mxu0 0.0
    %2330 = vmatpush1.msra.mxu0 0.0
    %2331 = vmatprep.subr.mxu0 0.0
    %2332 = vmatpush1.msra.mxu0 0.0
    %2333 = vmatprep.subr.mxu0 0.0
    %2334 = vmatpush1.msra.mxu0 0.0
    %2335 = vmatprep.subr.mxu0 0.0
    %2336 = vmatpush1.msra.mxu0 0.0
    %2337 = vmatprep.subr.mxu0 0.0
    %2338 = vmatpush1.msra.mxu0 0.0
    %2339 = vmatprep.subr.mxu0 0.0
    %2340 = vmatpush1.msra.mxu0 0.0
    %2341 = vmatprep.subr.mxu0 0.0
    %2342 = vmatpush1.msra.mxu0 0.0
    %2343 = vmatprep.subr.mxu0 0.0
    %2344 = vmatpush1.msra.mxu0 0.0
    %2345 = vmatprep.subr.mxu0 0.0
    %2346 = vmatpush1.msra.mxu0 0.0
    %2347 = vmatprep.subr.mxu0 0.0
    %2348 = vmatpush1.msra.mxu0 0.0
    %2349 = vmatprep.subr.mxu0 0.0
    %2350 = vmatpush1.msra.mxu0 0.0
    %2351 = vmatprep.subr.mxu0 0.0
    %2352 = vmatpush1.msra.mxu0 0.0
    %2353 = vmatprep.subr.mxu0 0.0
    %2354 = vmatpush1.msra.mxu0 0.0
    %2355 = vmatprep.subr.mxu0 0.0
    %2356 = vmatpush1.msra.mxu0 0.0
    %2357 = vmatprep.subr.mxu0 0.0
    %2358 = vmatpush1.msra.mxu0 %v2284
    %2359 = vmatprep.subr.mxu0 0.0
    %2360 = vmatpush2.msra.mxu0 0.0
    %2361 = vmatprep.subr.mxu0 0.0
    %2362 = vmatpush2.msra.mxu0 0.0
    %2363 = vmatprep.subr.mxu0 0.0
    %2364 = vmatpush2.msra.mxu0 0.0
    %2365 = vmatprep.subr.mxu0 0.0
    %2366 = vmatpush2.msra.mxu0 0.0
    %2367 = vmatprep.subr.mxu0 0.0
    %2368 = vmatpush2.msra.mxu0 0.0
    %2369 = vmatprep.subr.mxu0 0.0
    %2370 = vmatpush2.msra.mxu0 0.0
    %2371 = vmatprep.subr.mxu0 0.0
    %2372 = vmatpush2.msra.mxu0 0.0
    %2373 = vmatprep.subr.mxu0 0.0
    %2374 = vmatpush2.msra.mxu0 0.0
    %2375 = vmatprep.subr.mxu0 0.0
    %2376 = vmatpush2.msra.mxu0 0.0
    %2377 = vmatprep.subr.mxu0 0.0
    %2378 = vmatpush2.msra.mxu0 0.0
    %2379 = vmatprep.subr.mxu0 0.0
    %2380 = vmatpush2.msra.mxu0 0.0
    %2381 = vmatprep.subr.mxu0 0.0
    %2382 = vmatpush2.msra.mxu0 0.0
    %2383 = vmatprep.subr.mxu0 0.0
    %2384 = vmatpush2.msra.mxu0 0.0
    %2385 = vmatprep.subr.mxu0 0.0
    %2386 = vmatpush2.msra.mxu0 0.0
    %2387 = vmatprep.subr.mxu0 0.0
    %2388 = vmatpush2.msra.mxu0 0.0
    %2389 = vmatprep.subr.mxu0 0.0
    %2390 = vmatpush2.msra.mxu0 0.0
    %2391 = vmatprep.mubr.f32.mxu0 0.0
    %2392 = vmatmul.mubr.f32.gmra.mxu0 %v2316
    %v2393 = vpop.f32.mrf.mxu0
    %v2394 = vadd.f32 %v2298, %v2393
    %v2395 = vpop.f32.mrf.mxu0
    %2396 = vmatprep.mubr.f32.mxu0 0.0
    %2397 = vmatmul.mubr.f32.gmra.mxu0 %v2319
    %v2398 = vpop.f32.mrf.mxu0
    %v2399 = vadd.f32 %v2303, %v2398
    %v2400 = vpop.f32.mrf.mxu0
    %2401 = vmatprep.mubr.f32.mxu0 0.0
    %2402 = vmatmul.mubr.f32.gmra.mxu0 %v2322
    %v2403 = vpop.f32.mrf.mxu0
    %v2404 = vadd.f32 %v2308, %v2403
    %v2405 = vpop.f32.mrf.mxu0
    %2406 = vmatprep.mubr.f32.mxu0 0.0
    %2407 = vmatmul.mubr.f32.gmra.mxu0 %v2325
    %v2408 = vpop.f32.mrf.mxu0
    %v2409 = vadd.f32 %v2313, %v2408
    %v2410 = vpop.f32.mrf.mxu0
    %2411 = vdwg.mxu0
    %v2412 = vmax.f32 %v2394, 0.0
    %v2413 = vmax.f32 %v2399, 0.0
    %v2414 = vmax.f32 %v2404, 0.0
    %v2415 = vmax.f32 %v2409, 0.0
    %s2416 = scalar_lea.vmem [#allocation8], 112
    %v2417 = vld [vmem:[%s2416] sm:$0xff]
    %v2418 = vld [vmem:[%s2416 + $0x8] sm:$0xff]
    %s2419 = scalar_lea.vmem [#allocation10], 112
    %v2420 = vld [vmem:[%s2419] sm:$0xff]
    %v2421 = vld [vmem:[%s2419 + $0x8] sm:$0xff]
    %2423 = vset.pattern.permute.xlu0 0
    %2424 = vperm.xlu0 %2423, %v2420
    %v2425 = vpop.permute.xlu0 %2424
    %2428 = vset.pattern.permute.xlu0 0
    %2429 = vperm.xlu0 %2428, %v2421
    %v2430 = vpop.permute.xlu0 %2429
    %v2433 = vsel %vm352, %v2417, 0
    %v2436 = vsel %vm352, %v2418, 0
    %2438 = vmatprep.subr.mxu0 0.0
    %2439 = vmatpush1.msra.mxu0 0.0
    %2440 = vmatprep.subr.mxu0 0.0
    %2441 = vmatpush1.msra.mxu0 0.0
    %2442 = vmatprep.subr.mxu0 0.0
    %2443 = vmatpush1.msra.mxu0 0.0
    %2444 = vmatprep.subr.mxu0 0.0
    %2445 = vmatpush1.msra.mxu0 0.0
    %2446 = vmatprep.subr.mxu0 0.0
    %2447 = vmatpush1.msra.mxu0 0.0
    %2448 = vmatprep.subr.mxu0 0.0
    %2449 = vmatpush1.msra.mxu0 0.0
    %2450 = vmatprep.subr.mxu0 0.0
    %2451 = vmatpush1.msra.mxu0 0.0
    %2452 = vmatprep.subr.mxu0 0.0
    %2453 = vmatpush1.msra.mxu0 0.0
    %2454 = vmatprep.subr.mxu0 0.0
    %2455 = vmatpush1.msra.mxu0 0.0
    %2456 = vmatprep.subr.mxu0 0.0
    %2457 = vmatpush1.msra.mxu0 0.0
    %2458 = vmatprep.subr.mxu0 0.0
    %2459 = vmatpush1.msra.mxu0 0.0
    %2460 = vmatprep.subr.mxu0 0.0
    %2461 = vmatpush1.msra.mxu0 0.0
    %2462 = vmatprep.subr.mxu0 0.0
    %2463 = vmatpush1.msra.mxu0 %v2415
    %2464 = vmatprep.subr.mxu0 0.0
    %2465 = vmatpush1.msra.mxu0 %v2414
    %2466 = vmatprep.subr.mxu0 0.0
    %2467 = vmatpush1.msra.mxu0 %v2413
    %2468 = vmatprep.subr.mxu0 0.0
    %2469 = vmatpush1.msra.mxu0 %v2412
    %2470 = vmatprep.subr.mxu0 0.0
    %2471 = vmatpush2.msra.mxu0 0.0
    %2472 = vmatprep.subr.mxu0 0.0
    %2473 = vmatpush2.msra.mxu0 0.0
    %2474 = vmatprep.subr.mxu0 0.0
    %2475 = vmatpush2.msra.mxu0 0.0
    %2476 = vmatprep.subr.mxu0 0.0
    %2477 = vmatpush2.msra.mxu0 0.0
    %2478 = vmatprep.subr.mxu0 0.0
    %2479 = vmatpush2.msra.mxu0 0.0
    %2480 = vmatprep.subr.mxu0 0.0
    %2481 = vmatpush2.msra.mxu0 0.0
    %2482 = vmatprep.subr.mxu0 0.0
    %2483 = vmatpush2.msra.mxu0 0.0
    %2484 = vmatprep.subr.mxu0 0.0
    %2485 = vmatpush2.msra.mxu0 0.0
    %2486 = vmatprep.subr.mxu0 0.0
    %2487 = vmatpush2.msra.mxu0 0.0
    %2488 = vmatprep.subr.mxu0 0.0
    %2489 = vmatpush2.msra.mxu0 0.0
    %2490 = vmatprep.subr.mxu0 0.0
    %2491 = vmatpush2.msra.mxu0 0.0
    %2492 = vmatprep.subr.mxu0 0.0
    %2493 = vmatpush2.msra.mxu0 0.0
    %2494 = vmatprep.subr.mxu0 0.0
    %2495 = vmatpush2.msra.mxu0 0.0
    %2496 = vmatprep.subr.mxu0 0.0
    %2497 = vmatpush2.msra.mxu0 0.0
    %2498 = vmatprep.subr.mxu0 0.0
    %2499 = vmatpush2.msra.mxu0 0.0
    %2500 = vmatprep.subr.mxu0 0.0
    %2501 = vmatpush2.msra.mxu0 0.0
    %2502 = vmatprep.mubr.f32.mxu0 0.0
    %2503 = vmatmul.mubr.f32.gmra.mxu0 %v2433
    %v2504 = vpop.f32.mrf.mxu0
    %v2505 = vadd.f32 %v2425, %v2504
    %v2506 = vpop.f32.mrf.mxu0
    %2507 = vmatprep.mubr.f32.mxu0 0.0
    %2508 = vmatmul.mubr.f32.gmra.mxu0 %v2436
    %v2509 = vpop.f32.mrf.mxu0
    %v2510 = vadd.f32 %v2430, %v2509
    %v2511 = vpop.f32.mrf.mxu0
    %2512 = vdwg.mxu0
    %v2513 = vmul.f32 %v2505, 0.5
    %v2514 = vand.u32 2147483647, %v2513
    %vm2515 = vcmp.gt.f32.partialorder %v2514, 2.4142137
    %v2516 = vrcp.pop %v2514
    %v2517 = vmul.f32 -1.0, %v2516
    %vm2518 = vcmp.gt.f32.partialorder %v2514, 0.41421357
    %v2519 = vsub.f32 %v2514, 1.0
    %v2520 = vadd.f32 %v2514, 1.0
    %v2521 = vrcp.pop %v2520
    %v2522 = vmul.f32 %v2519, %v2521
    %v2523 = vsel %vm2518, %v2522, %v2514
    %v2524 = vsel %vm2515, %v2517, %v2523
    %v2525 = vsel %vm2518, 0.7853982, 0.0
    %v2526 = vsel %vm2515, 1.5707964, %v2525
    %v2527 = vmul.f32 %v2524, %v2524
    %v2528 = vmul.f32 %v2527, 0.080537446
    %v2529 = vsub.f32 %v2528, 0.13877685
    %v2530 = vmul.f32 %v2529, %v2527
    %v2531 = vadd.f32 %v2530, 0.19977711
    %v2532 = vmul.f32 %v2531, %v2527
    %v2533 = vsub.f32 %v2532, 0.3333295
    %v2534 = vadd.f32 %v2526, %v2524
    %v2535 = vmul.f32 %v2524, %v2527
    %v2536 = vmul.f32 %v2535, %v2533
    %v2537 = vadd.f32 %v2534, %v2536
    %vm2538 = vcmp.lt.f32.partialorder %v2513, 0.0
    %v2539 = vsub.f32 0.0, %v2537
    %v2540 = vsel %vm2538, %v2539, %v2537
    %v2541 = vmul.f32 %v2540, 1.272
    %v2542 = vmul.f32 %v2541, 1.442695
    %v2543 = vpow.pop %v2542
    %v2544 = vmul.f32 %v2543, %v2021
    %v2545 = vadd.f32 %v2544, %v2510
    %v2546 = vld [vmem:[#allocation13] sm:$0xff]
    %v2547 = vld [vmem:[#allocation13 + $0x8] sm:$0xff]
    %v2549 = vsel %vm126, %v2546, 0
    %v2552 = vsel %vm126, %v2547, 0
    %2554 = vmatprep.subr.mxu0 0.0
    %2555 = vmatpush1.msra.mxu0 0.0
    %2556 = vmatprep.subr.mxu0 0.0
    %2557 = vmatpush1.msra.mxu0 0.0
    %2558 = vmatprep.subr.mxu0 0.0
    %2559 = vmatpush1.msra.mxu0 0.0
    %2560 = vmatprep.subr.mxu0 0.0
    %2561 = vmatpush1.msra.mxu0 0.0
    %2562 = vmatprep.subr.mxu0 0.0
    %2563 = vmatpush1.msra.mxu0 0.0
    %2564 = vmatprep.subr.mxu0 0.0
    %2565 = vmatpush1.msra.mxu0 0.0
    %2566 = vmatprep.subr.mxu0 0.0
    %2567 = vmatpush1.msra.mxu0 0.0
    %2568 = vmatprep.subr.mxu0 0.0
    %2569 = vmatpush1.msra.mxu0 0.0
    %2570 = vmatprep.subr.mxu0 0.0
    %2571 = vmatpush1.msra.mxu0 0.0
    %2572 = vmatprep.subr.mxu0 0.0
    %2573 = vmatpush1.msra.mxu0 0.0
    %2574 = vmatprep.subr.mxu0 0.0
    %2575 = vmatpush1.msra.mxu0 0.0
    %2576 = vmatprep.subr.mxu0 0.0
    %2577 = vmatpush1.msra.mxu0 0.0
    %2578 = vmatprep.subr.mxu0 0.0
    %2579 = vmatpush1.msra.mxu0 0.0
    %2580 = vmatprep.subr.mxu0 0.0
    %2581 = vmatpush1.msra.mxu0 0.0
    %2582 = vmatprep.subr.mxu0 0.0
    %2583 = vmatpush1.msra.mxu0 %v2545
    %2584 = vmatprep.subr.mxu0 0.0
    %2585 = vmatpush1.msra.mxu0 %v2284
    %2586 = vmatprep.subr.mxu0 0.0
    %2587 = vmatpush2.msra.mxu0 0.0
    %2588 = vmatprep.subr.mxu0 0.0
    %2589 = vmatpush2.msra.mxu0 0.0
    %2590 = vmatprep.subr.mxu0 0.0
    %2591 = vmatpush2.msra.mxu0 0.0
    %2592 = vmatprep.subr.mxu0 0.0
    %2593 = vmatpush2.msra.mxu0 0.0
    %2594 = vmatprep.subr.mxu0 0.0
    %2595 = vmatpush2.msra.mxu0 0.0
    %2596 = vmatprep.subr.mxu0 0.0
    %2597 = vmatpush2.msra.mxu0 0.0
    %2598 = vmatprep.subr.mxu0 0.0
    %2599 = vmatpush2.msra.mxu0 0.0
    %2600 = vmatprep.subr.mxu0 0.0
    %2601 = vmatpush2.msra.mxu0 0.0
    %2602 = vmatprep.subr.mxu0 0.0
    %2603 = vmatpush2.msra.mxu0 0.0
    %2604 = vmatprep.subr.mxu0 0.0
    %2605 = vmatpush2.msra.mxu0 0.0
    %2606 = vmatprep.subr.mxu0 0.0
    %2607 = vmatpush2.msra.mxu0 0.0
    %2608 = vmatprep.subr.mxu0 0.0
    %2609 = vmatpush2.msra.mxu0 0.0
    %2610 = vmatprep.subr.mxu0 0.0
    %2611 = vmatpush2.msra.mxu0 0.0
    %2612 = vmatprep.subr.mxu0 0.0
    %2613 = vmatpush2.msra.mxu0 0.0
    %2614 = vmatprep.subr.mxu0 0.0
    %2615 = vmatpush2.msra.mxu0 0.0
    %2616 = vmatprep.subr.mxu0 0.0
    %2617 = vmatpush2.msra.mxu0 0.0
    %2618 = vmatprep.mubr.f32.mxu0 0.0
    %2619 = vmatmul.mubr.f32.gmra.mxu0 %v2549
    %v2620 = vpop.f32.mrf.mxu0
    %v2621 = vadd.f32 0.0, %v2620
    %v2622 = vpop.f32.mrf.mxu0
    %2623 = vmatprep.mubr.f32.mxu0 0.0
    %2624 = vmatmul.mubr.f32.gmra.mxu0 %v2552
    %v2625 = vpop.f32.mrf.mxu0
    %v2626 = vadd.f32 0.0, %v2625
    %v2627 = vpop.f32.mrf.mxu0
    %2628 = vdwg.mxu0
    %2629 = vst [vmem:[#allocation14] sm:$0xff] %v2621
    %2630 = vst [vmem:[#allocation14 + $0x8] sm:$0xff] %v2626
    // Predicated region
    $region58: #{_lambda_.1} parent=1 // pred_check
      _
    $region59: #{_lambda_.1} parent=1 // pred_check_branch
      %2632 = sbr.rel (0) target = $region61
    $region60: #{_lambda_.1} parent=1 // pred_region
      %s2634 = ssub.s32 256, 256
      %2635 = vsyncadd [#allocation4], %s2634
      %s2636 = sshll.u32 [#allocation14], 4
      %s2637 = int_to_ptr.vmem [resolvable:$true] %s2636
      %2642 = dma.vmem_to_hbm [thread:$0]  %s2637, 256, %s7, [#allocation4], 128, 128, 8
    $region61: #{_lambda_.1} parent=1 // pred_fallthru
      _
    // Predicated region
    $region62: #{_lambda_.1} parent=1 // pred_check
      _
    $region63: #{_lambda_.1} parent=1 // pred_check_branch
      %2644 = sbr.rel (0) target = $region65
    $region64: #{_lambda_.1} parent=1 // pred_region
      %2645 = dma.done [#allocation4], 256
    $region65: #{_lambda_.1} parent=1 // pred_fallthru
      _
    %2646 = vsyncpa [#allocation3], 1
    %2647 = vsyncpa [#allocation6], 1
    %2648 = vsyncpa [#allocation9], 1
    %2649 = vsyncpa [#allocation12], 1
    %2650 = vsyncpa [#allocation4], 1

</llo_original>
